<compile_context>
chip_gen: v5e
topology: v5e:2x2
jax: 0.10.0
libtpu: 0.0.40
codegen_flags: <defaults>
</compile_context>

<pallas_src>
import jax
import jax.numpy as jnp
from jax.experimental import pallas as pl
from jax.experimental.pallas import tpu as pltpu


def _mul_conv1x1_kernel(x_ref, s_ref, w_ref, o_ref):
    """Single-shot fused scale + 1x1 conv (as a matmul).

    x_ref: (Cin, M)   input, channels x flattened-spatial (native NCHW layout)
    s_ref: (Cin, 1)   per-channel scale (broadcast over spatial lanes)
    w_ref: (Cout, Cin) conv weight, used as-is
    o_ref: (Cout, M)  output, reshapes directly back to NCHW
    """
    xs = x_ref[...] * s_ref[...]                       # fused per-channel scale
    o_ref[...] = jnp.dot(
        w_ref[...], xs, preferred_element_type=jnp.float32
    ).astype(o_ref.dtype)


def mul_conv1x1(x_nchw, scale_nc11, weight_oi11):
    """Computes Conv2d(k=1, no bias)(x * scale), matching the torch module.

    x_nchw:      (N, Cin, H, W)   with N == 1
    scale_nc11:  (N, Cin, 1, 1)
    weight_oi11: (Cout, Cin, 1, 1)
    returns      (N, Cout, H, W)
    """
    N, Cin, H, W = x_nchw.shape
    Cout = weight_oi11.shape[0]
    assert N == 1, "module inputs have batch 1"

    M = H * W
    x_cm = x_nchw.reshape(Cin, M)            # free view of NCHW memory (N=1)
    s_c1 = scale_nc11.reshape(Cin, 1)        # (Cin, 1)
    w_oc = weight_oi11.reshape(Cout, Cin)    # 1x1 kernel -> plain matrix

    itemsize = jnp.dtype(x_nchw.dtype).itemsize
    cost = pl.CostEstimate(
        flops=2 * M * Cin * Cout,
        transcendentals=0,
        bytes_accessed=(x_cm.size + s_c1.size + w_oc.size + Cout * M) * itemsize,
    )

    out = pl.pallas_call(
        _mul_conv1x1_kernel,
        out_shape=jax.ShapeDtypeStruct((Cout, M), x_nchw.dtype),
        in_specs=[
            pl.BlockSpec(memory_space=pltpu.MemorySpace.VMEM),
            pl.BlockSpec(memory_space=pltpu.MemorySpace.VMEM),
            pl.BlockSpec(memory_space=pltpu.MemorySpace.VMEM),
        ],
        out_specs=pl.BlockSpec(memory_space=pltpu.MemorySpace.VMEM),
        compiler_params=pltpu.CompilerParams(
            vmem_limit_bytes=32 * 1024 * 1024,
        ),
        cost_estimate=cost,
    )(x_cm, s_c1, w_oc)

    return out.reshape(N, Cout, H, W)


if __name__ == "__main__":
    # Shapes fixed by the module's forward / __init__.
    N, Cin, H, W = 1, 2304, 7, 7
    Cout = 384

    key = jax.random.PRNGKey(0)
    kx, ks, kw = jax.random.split(key, 3)
    x685 = jax.random.normal(kx, (N, Cin, H, W), dtype=jnp.float32)
    x690 = jax.random.normal(ks, (N, Cin, 1, 1), dtype=jnp.float32)
    # Conv2d(2304, 384, 1, bias=False) weight: (Cout, Cin, 1, 1)
    w = jax.random.normal(kw, (Cout, Cin, 1, 1), dtype=jnp.float32) * 0.02

    out = mul_conv1x1(x685, x690, w)
    out = jax.block_until_ready(out)

    # Pure-JAX reference: (x * s) then 1x1 conv == per-channel matmul.
    x_scaled = x685 * x690
    ref = jnp.einsum("nchw,oc->nohw", x_scaled, w[:, :, 0, 0])
    assert out.shape == (N, Cout, H, W)
    assert jnp.allclose(out, ref, atol=1e-3, rtol=1e-3)

    print("KERNEL_OK")
</pallas_src>

<mosaic_0001>
module attributes {stable_mosaic.version = 11 : i64} {
  func.func @_mul_conv1x1_kernel(%arg0: memref<2304x49xf32, #tpu.memory_space<vmem>>, %arg1: memref<2304x1xf32, #tpu.memory_space<vmem>>, %arg2: memref<384x2304xf32, #tpu.memory_space<vmem>>, %arg3: memref<384x49xf32, #tpu.memory_space<vmem>>) attributes {dimension_semantics = [], scalar_prefetch = 0 : i64, scratch_operands = 0 : i64, tpu.core_type = #tpu.core_type<tc>} {
    %c0 = arith.constant 0 : index
    %c0_0 = arith.constant 0 : index
    %0 = vector.load %arg0[%c0, %c0_0] : memref<2304x49xf32, #tpu.memory_space<vmem>>, vector<2304x49xf32>
    %c0_1 = arith.constant 0 : index
    %c0_2 = arith.constant 0 : index
    %1 = vector.load %arg1[%c0_1, %c0_2] : memref<2304x1xf32, #tpu.memory_space<vmem>>, vector<2304x1xf32>
    %2 = vector.broadcast %1 : vector<2304x1xf32> to vector<2304x49xf32>
    %3 = arith.mulf %0, %2 : vector<2304x49xf32>
    %c0_3 = arith.constant 0 : index
    %c0_4 = arith.constant 0 : index
    %4 = vector.load %arg2[%c0_3, %c0_4] : memref<384x2304xf32, #tpu.memory_space<vmem>>, vector<384x2304xf32>
    %cst = arith.constant dense<0.000000e+00> : vector<384x49xf32>
    %5 = tpu.matmul %4, %3, %cst {dimension_numbers = #tpu.dot_dimension_numbers<[1], [0], [0], [1], [0, 0, 1, 1], [], []>} : vector<384x2304xf32>, vector<2304x49xf32>, vector<384x49xf32> -> vector<384x49xf32>
    %c0_5 = arith.constant 0 : index
    %c0_6 = arith.constant 0 : index
    %6 = vector.load %arg3[%c0_5, %c0_6] : memref<384x49xf32, #tpu.memory_space<vmem>>, vector<384x49xf32>
    tpu.vector_store %arg3[%c0_5, %c0_6], %5 {strides = array<i32>} : memref<384x49xf32, #tpu.memory_space<vmem>>, vector<384x49xf32>,
    return
  }
}

</mosaic_0001>

<llo_original>
// kernel: tpu_custom_call.1
$region0: #{tpu_custom_call.1}
  #allocation0 [shape = 'u32[]', space=smem, size = 0x4, offset = 0x4, fixed_abs, tag = 'smem constant byte address 0x4 - core index']
  #allocation1 [shape = 'u32[72,128]{1,0:T(1,128)}', space=vmem, size = 0x9000, scoped, tag = 'internal scratch']
  %s0 = inlined_call_operand.vmem [shape: f32[2304,49], index: 0, kind: input, shape index: {}]
  %s1 = inlined_call_operand.vmem [shape: f32[2304,1], index: 1, kind: input, shape index: {}]
  %s2 = inlined_call_operand.hbm [shape: f32[384,2304], index: 2, kind: input, shape index: {}]
  %s3 = inlined_call_operand.vmem [shape: f32[384,49], index: 3, kind: output, shape index: {}]
  %s4 = sld [smem:[#allocation0]]
  $region26: #{tpu_custom_call.1} parent=0
    _
  %s6 = ssub.s32 1, %s4
  %s7 = scalar_select 0, %s6, %s4
  $region1: #{tpu_custom_call.1} parent=0
    #allocation2 [shape = 'u8[3538944]{0}', space=vmem, size = 0x360000, scoped, tag = 'input window, operand 2, single buffered']
    #allocation3 [shape = 's32[1]{0}', space=sflag, size = 0x4, scoped, tag = 'scoped memory for tpu_custom_call.1']
    %8 = vsyncpa [#allocation3], 0
    // Predicated region
    $region2: #{tpu_custom_call.1} parent=1 // pred_check
      _
    $region3: #{tpu_custom_call.1} parent=1 // pred_check_branch
      %10 = sbr.rel (0) target = $region5
    $region4: #{tpu_custom_call.1} parent=1 // pred_region
      _
    $region5: #{tpu_custom_call.1} parent=1 // pred_fallthru
      _
    // Predicated region
    $region6: #{tpu_custom_call.1} parent=1 // pred_check
      _
    $region7: #{tpu_custom_call.1} parent=1 // pred_check_branch
      %12 = sbr.rel (0) target = $region9
    $region8: #{tpu_custom_call.1} parent=1 // pred_region
      _
    $region9: #{tpu_custom_call.1} parent=1 // pred_fallthru
      _
    // Predicated region
    $region10: #{tpu_custom_call.1} parent=1 // pred_check
      _
    $region11: #{tpu_custom_call.1} parent=1 // pred_check_branch
      %14 = sbr.rel (0) target = $region13
    $region12: #{tpu_custom_call.1} parent=1 // pred_region
      %16 = vsyncadd [#allocation3], 0
      %s17 = sshll.u32 %s2, 4
      %s18 = int_to_ptr.hbm [resolvable:$true] %s17
      %s19 = sshll.u32 [#allocation2], 4
      %s20 = int_to_ptr.vmem [resolvable:$true] %s19
      %25 = dma.hbm_to_vmem [thread:$0]  %s18, 110592, %s20, [#allocation3], 2304, 2304, 144
    $region13: #{tpu_custom_call.1} parent=1 // pred_fallthru
      _
    // Predicated region
    $region14: #{tpu_custom_call.1} parent=1 // pred_check
      _
    $region15: #{tpu_custom_call.1} parent=1 // pred_check_branch
      %27 = sbr.rel (0) target = $region17
    $region16: #{tpu_custom_call.1} parent=1 // pred_region
      %29 = dma.done [#allocation3], 110592
    $region17: #{tpu_custom_call.1} parent=1 // pred_fallthru
      _
    %v30 = vld [vmem:[%s0] sm:$0xff]
    %v31 = vld [vmem:[%s0 + $0x8] sm:$0xff]
    %v32 = vld [vmem:[%s0 + $0x10] sm:$0xff]
    %v33 = vld [vmem:[%s0 + $0x18] sm:$0xff]
    %v34 = vld [vmem:[%s0 + $0x20] sm:$0xff]
    %v35 = vld [vmem:[%s0 + $0x28] sm:$0xff]
    %v36 = vld [vmem:[%s0 + $0x30] sm:$0xff]
    %v37 = vld [vmem:[%s0 + $0x38] sm:$0xff]
    %v38 = vld [vmem:[%s0 + $0x40] sm:$0xff]
    %v39 = vld [vmem:[%s0 + $0x48] sm:$0xff]
    %v40 = vld [vmem:[%s0 + $0x50] sm:$0xff]
    %v41 = vld [vmem:[%s0 + $0x58] sm:$0xff]
    %v42 = vld [vmem:[%s0 + $0x60] sm:$0xff]
    %v43 = vld [vmem:[%s0 + $0x68] sm:$0xff]
    %v44 = vld [vmem:[%s0 + $0x70] sm:$0xff]
    %v45 = vld [vmem:[%s0 + $0x78] sm:$0xff]
    %v46 = vld [vmem:[%s0 + $0x80] sm:$0xff]
    %v47 = vld [vmem:[%s0 + $0x88] sm:$0xff]
    %v48 = vld [vmem:[%s0 + $0x90] sm:$0xff]
    %v49 = vld [vmem:[%s0 + $0x98] sm:$0xff]
    %v50 = vld [vmem:[%s0 + $0xa0] sm:$0xff]
    %v51 = vld [vmem:[%s0 + $0xa8] sm:$0xff]
    %v52 = vld [vmem:[%s0 + $0xb0] sm:$0xff]
    %v53 = vld [vmem:[%s0 + $0xb8] sm:$0xff]
    %v54 = vld [vmem:[%s0 + $0xc0] sm:$0xff]
    %v55 = vld [vmem:[%s0 + $0xc8] sm:$0xff]
    %v56 = vld [vmem:[%s0 + $0xd0] sm:$0xff]
    %v57 = vld [vmem:[%s0 + $0xd8] sm:$0xff]
    %v58 = vld [vmem:[%s0 + $0xe0] sm:$0xff]
    %v59 = vld [vmem:[%s0 + $0xe8] sm:$0xff]
    %v60 = vld [vmem:[%s0 + $0xf0] sm:$0xff]
    %v61 = vld [vmem:[%s0 + $0xf8] sm:$0xff]
    %v62 = vld [vmem:[%s0 + $0x100] sm:$0xff]
    %v63 = vld [vmem:[%s0 + $0x108] sm:$0xff]
    %v64 = vld [vmem:[%s0 + $0x110] sm:$0xff]
    %v65 = vld [vmem:[%s0 + $0x118] sm:$0xff]
    %v66 = vld [vmem:[%s0 + $0x120] sm:$0xff]
    %v67 = vld [vmem:[%s0 + $0x128] sm:$0xff]
    %v68 = vld [vmem:[%s0 + $0x130] sm:$0xff]
    %v69 = vld [vmem:[%s0 + $0x138] sm:$0xff]
    %v70 = vld [vmem:[%s0 + $0x140] sm:$0xff]
    %v71 = vld [vmem:[%s0 + $0x148] sm:$0xff]
    %v72 = vld [vmem:[%s0 + $0x150] sm:$0xff]
    %v73 = vld [vmem:[%s0 + $0x158] sm:$0xff]
    %v74 = vld [vmem:[%s0 + $0x160] sm:$0xff]
    %v75 = vld [vmem:[%s0 + $0x168] sm:$0xff]
    %v76 = vld [vmem:[%s0 + $0x170] sm:$0xff]
    %v77 = vld [vmem:[%s0 + $0x178] sm:$0xff]
    %v78 = vld [vmem:[%s0 + $0x180] sm:$0xff]
    %v79 = vld [vmem:[%s0 + $0x188] sm:$0xff]
    %v80 = vld [vmem:[%s0 + $0x190] sm:$0xff]
    %v81 = vld [vmem:[%s0 + $0x198] sm:$0xff]
    %v82 = vld [vmem:[%s0 + $0x1a0] sm:$0xff]
    %v83 = vld [vmem:[%s0 + $0x1a8] sm:$0xff]
    %v84 = vld [vmem:[%s0 + $0x1b0] sm:$0xff]
    %v85 = vld [vmem:[%s0 + $0x1b8] sm:$0xff]
    %v86 = vld [vmem:[%s0 + $0x1c0] sm:$0xff]
    %v87 = vld [vmem:[%s0 + $0x1c8] sm:$0xff]
    %v88 = vld [vmem:[%s0 + $0x1d0] sm:$0xff]
    %v89 = vld [vmem:[%s0 + $0x1d8] sm:$0xff]
    %v90 = vld [vmem:[%s0 + $0x1e0] sm:$0xff]
    %v91 = vld [vmem:[%s0 + $0x1e8] sm:$0xff]
    %v92 = vld [vmem:[%s0 + $0x1f0] sm:$0xff]
    %v93 = vld [vmem:[%s0 + $0x1f8] sm:$0xff]
    %v94 = vld [vmem:[%s0 + $0x200] sm:$0xff]
    %v95 = vld [vmem:[%s0 + $0x208] sm:$0xff]
    %v96 = vld [vmem:[%s0 + $0x210] sm:$0xff]
    %v97 = vld [vmem:[%s0 + $0x218] sm:$0xff]
    %v98 = vld [vmem:[%s0 + $0x220] sm:$0xff]
    %v99 = vld [vmem:[%s0 + $0x228] sm:$0xff]
    %v100 = vld [vmem:[%s0 + $0x230] sm:$0xff]
    %v101 = vld [vmem:[%s0 + $0x238] sm:$0xff]
    %v102 = vld [vmem:[%s0 + $0x240] sm:$0xff]
    %v103 = vld [vmem:[%s0 + $0x248] sm:$0xff]
    %v104 = vld [vmem:[%s0 + $0x250] sm:$0xff]
    %v105 = vld [vmem:[%s0 + $0x258] sm:$0xff]
    %v106 = vld [vmem:[%s0 + $0x260] sm:$0xff]
    %v107 = vld [vmem:[%s0 + $0x268] sm:$0xff]
    %v108 = vld [vmem:[%s0 + $0x270] sm:$0xff]
    %v109 = vld [vmem:[%s0 + $0x278] sm:$0xff]
    %v110 = vld [vmem:[%s0 + $0x280] sm:$0xff]
    %v111 = vld [vmem:[%s0 + $0x288] sm:$0xff]
    %v112 = vld [vmem:[%s0 + $0x290] sm:$0xff]
    %v113 = vld [vmem:[%s0 + $0x298] sm:$0xff]
    %v114 = vld [vmem:[%s0 + $0x2a0] sm:$0xff]
    %v115 = vld [vmem:[%s0 + $0x2a8] sm:$0xff]
    %v116 = vld [vmem:[%s0 + $0x2b0] sm:$0xff]
    %v117 = vld [vmem:[%s0 + $0x2b8] sm:$0xff]
    %v118 = vld [vmem:[%s0 + $0x2c0] sm:$0xff]
    %v119 = vld [vmem:[%s0 + $0x2c8] sm:$0xff]
    %v120 = vld [vmem:[%s0 + $0x2d0] sm:$0xff]
    %v121 = vld [vmem:[%s0 + $0x2d8] sm:$0xff]
    %v122 = vld [vmem:[%s0 + $0x2e0] sm:$0xff]
    %v123 = vld [vmem:[%s0 + $0x2e8] sm:$0xff]
    %v124 = vld [vmem:[%s0 + $0x2f0] sm:$0xff]
    %v125 = vld [vmem:[%s0 + $0x2f8] sm:$0xff]
    %v126 = vld [vmem:[%s0 + $0x300] sm:$0xff]
    %v127 = vld [vmem:[%s0 + $0x308] sm:$0xff]
    %v128 = vld [vmem:[%s0 + $0x310] sm:$0xff]
    %v129 = vld [vmem:[%s0 + $0x318] sm:$0xff]
    %v130 = vld [vmem:[%s0 + $0x320] sm:$0xff]
    %v131 = vld [vmem:[%s0 + $0x328] sm:$0xff]
    %v132 = vld [vmem:[%s0 + $0x330] sm:$0xff]
    %v133 = vld [vmem:[%s0 + $0x338] sm:$0xff]
    %v134 = vld [vmem:[%s0 + $0x340] sm:$0xff]
    %v135 = vld [vmem:[%s0 + $0x348] sm:$0xff]
    %v136 = vld [vmem:[%s0 + $0x350] sm:$0xff]
    %v137 = vld [vmem:[%s0 + $0x358] sm:$0xff]
    %v138 = vld [vmem:[%s0 + $0x360] sm:$0xff]
    %v139 = vld [vmem:[%s0 + $0x368] sm:$0xff]
    %v140 = vld [vmem:[%s0 + $0x370] sm:$0xff]
    %v141 = vld [vmem:[%s0 + $0x378] sm:$0xff]
    %v142 = vld [vmem:[%s0 + $0x380] sm:$0xff]
    %v143 = vld [vmem:[%s0 + $0x388] sm:$0xff]
    %v144 = vld [vmem:[%s0 + $0x390] sm:$0xff]
    %v145 = vld [vmem:[%s0 + $0x398] sm:$0xff]
    %v146 = vld [vmem:[%s0 + $0x3a0] sm:$0xff]
    %v147 = vld [vmem:[%s0 + $0x3a8] sm:$0xff]
    %v148 = vld [vmem:[%s0 + $0x3b0] sm:$0xff]
    %v149 = vld [vmem:[%s0 + $0x3b8] sm:$0xff]
    %v150 = vld [vmem:[%s0 + $0x3c0] sm:$0xff]
    %v151 = vld [vmem:[%s0 + $0x3c8] sm:$0xff]
    %v152 = vld [vmem:[%s0 + $0x3d0] sm:$0xff]
    %v153 = vld [vmem:[%s0 + $0x3d8] sm:$0xff]
    %v154 = vld [vmem:[%s0 + $0x3e0] sm:$0xff]
    %v155 = vld [vmem:[%s0 + $0x3e8] sm:$0xff]
    %v156 = vld [vmem:[%s0 + $0x3f0] sm:$0xff]
    %v157 = vld [vmem:[%s0 + $0x3f8] sm:$0xff]
    %v158 = vld [vmem:[%s0 + $0x400] sm:$0xff]
    %v159 = vld [vmem:[%s0 + $0x408] sm:$0xff]
    %v160 = vld [vmem:[%s0 + $0x410] sm:$0xff]
    %v161 = vld [vmem:[%s0 + $0x418] sm:$0xff]
    %v162 = vld [vmem:[%s0 + $0x420] sm:$0xff]
    %v163 = vld [vmem:[%s0 + $0x428] sm:$0xff]
    %v164 = vld [vmem:[%s0 + $0x430] sm:$0xff]
    %v165 = vld [vmem:[%s0 + $0x438] sm:$0xff]
    %v166 = vld [vmem:[%s0 + $0x440] sm:$0xff]
    %v167 = vld [vmem:[%s0 + $0x448] sm:$0xff]
    %v168 = vld [vmem:[%s0 + $0x450] sm:$0xff]
    %v169 = vld [vmem:[%s0 + $0x458] sm:$0xff]
    %v170 = vld [vmem:[%s0 + $0x460] sm:$0xff]
    %v171 = vld [vmem:[%s0 + $0x468] sm:$0xff]
    %v172 = vld [vmem:[%s0 + $0x470] sm:$0xff]
    %v173 = vld [vmem:[%s0 + $0x478] sm:$0xff]
    %v174 = vld [vmem:[%s0 + $0x480] sm:$0xff]
    %v175 = vld [vmem:[%s0 + $0x488] sm:$0xff]
    %v176 = vld [vmem:[%s0 + $0x490] sm:$0xff]
    %v177 = vld [vmem:[%s0 + $0x498] sm:$0xff]
    %v178 = vld [vmem:[%s0 + $0x4a0] sm:$0xff]
    %v179 = vld [vmem:[%s0 + $0x4a8] sm:$0xff]
    %v180 = vld [vmem:[%s0 + $0x4b0] sm:$0xff]
    %v181 = vld [vmem:[%s0 + $0x4b8] sm:$0xff]
    %v182 = vld [vmem:[%s0 + $0x4c0] sm:$0xff]
    %v183 = vld [vmem:[%s0 + $0x4c8] sm:$0xff]
    %v184 = vld [vmem:[%s0 + $0x4d0] sm:$0xff]
    %v185 = vld [vmem:[%s0 + $0x4d8] sm:$0xff]
    %v186 = vld [vmem:[%s0 + $0x4e0] sm:$0xff]
    %v187 = vld [vmem:[%s0 + $0x4e8] sm:$0xff]
    %v188 = vld [vmem:[%s0 + $0x4f0] sm:$0xff]
    %v189 = vld [vmem:[%s0 + $0x4f8] sm:$0xff]
    %v190 = vld [vmem:[%s0 + $0x500] sm:$0xff]
    %v191 = vld [vmem:[%s0 + $0x508] sm:$0xff]
    %v192 = vld [vmem:[%s0 + $0x510] sm:$0xff]
    %v193 = vld [vmem:[%s0 + $0x518] sm:$0xff]
    %v194 = vld [vmem:[%s0 + $0x520] sm:$0xff]
    %v195 = vld [vmem:[%s0 + $0x528] sm:$0xff]
    %v196 = vld [vmem:[%s0 + $0x530] sm:$0xff]
    %v197 = vld [vmem:[%s0 + $0x538] sm:$0xff]
    %v198 = vld [vmem:[%s0 + $0x540] sm:$0xff]
    %v199 = vld [vmem:[%s0 + $0x548] sm:$0xff]
    %v200 = vld [vmem:[%s0 + $0x550] sm:$0xff]
    %v201 = vld [vmem:[%s0 + $0x558] sm:$0xff]
    %v202 = vld [vmem:[%s0 + $0x560] sm:$0xff]
    %v203 = vld [vmem:[%s0 + $0x568] sm:$0xff]
    %v204 = vld [vmem:[%s0 + $0x570] sm:$0xff]
    %v205 = vld [vmem:[%s0 + $0x578] sm:$0xff]
    %v206 = vld [vmem:[%s0 + $0x580] sm:$0xff]
    %v207 = vld [vmem:[%s0 + $0x588] sm:$0xff]
    %v208 = vld [vmem:[%s0 + $0x590] sm:$0xff]
    %v209 = vld [vmem:[%s0 + $0x598] sm:$0xff]
    %v210 = vld [vmem:[%s0 + $0x5a0] sm:$0xff]
    %v211 = vld [vmem:[%s0 + $0x5a8] sm:$0xff]
    %v212 = vld [vmem:[%s0 + $0x5b0] sm:$0xff]
    %v213 = vld [vmem:[%s0 + $0x5b8] sm:$0xff]
    %v214 = vld [vmem:[%s0 + $0x5c0] sm:$0xff]
    %v215 = vld [vmem:[%s0 + $0x5c8] sm:$0xff]
    %v216 = vld [vmem:[%s0 + $0x5d0] sm:$0xff]
    %v217 = vld [vmem:[%s0 + $0x5d8] sm:$0xff]
    %v218 = vld [vmem:[%s0 + $0x5e0] sm:$0xff]
    %v219 = vld [vmem:[%s0 + $0x5e8] sm:$0xff]
    %v220 = vld [vmem:[%s0 + $0x5f0] sm:$0xff]
    %v221 = vld [vmem:[%s0 + $0x5f8] sm:$0xff]
    %v222 = vld [vmem:[%s0 + $0x600] sm:$0xff]
    %v223 = vld [vmem:[%s0 + $0x608] sm:$0xff]
    %v224 = vld [vmem:[%s0 + $0x610] sm:$0xff]
    %v225 = vld [vmem:[%s0 + $0x618] sm:$0xff]
    %v226 = vld [vmem:[%s0 + $0x620] sm:$0xff]
    %v227 = vld [vmem:[%s0 + $0x628] sm:$0xff]
    %v228 = vld [vmem:[%s0 + $0x630] sm:$0xff]
    %v229 = vld [vmem:[%s0 + $0x638] sm:$0xff]
    %v230 = vld [vmem:[%s0 + $0x640] sm:$0xff]
    %v231 = vld [vmem:[%s0 + $0x648] sm:$0xff]
    %v232 = vld [vmem:[%s0 + $0x650] sm:$0xff]
    %v233 = vld [vmem:[%s0 + $0x658] sm:$0xff]
    %v234 = vld [vmem:[%s0 + $0x660] sm:$0xff]
    %v235 = vld [vmem:[%s0 + $0x668] sm:$0xff]
    %v236 = vld [vmem:[%s0 + $0x670] sm:$0xff]
    %v237 = vld [vmem:[%s0 + $0x678] sm:$0xff]
    %v238 = vld [vmem:[%s0 + $0x680] sm:$0xff]
    %v239 = vld [vmem:[%s0 + $0x688] sm:$0xff]
    %v240 = vld [vmem:[%s0 + $0x690] sm:$0xff]
    %v241 = vld [vmem:[%s0 + $0x698] sm:$0xff]
    %v242 = vld [vmem:[%s0 + $0x6a0] sm:$0xff]
    %v243 = vld [vmem:[%s0 + $0x6a8] sm:$0xff]
    %v244 = vld [vmem:[%s0 + $0x6b0] sm:$0xff]
    %v245 = vld [vmem:[%s0 + $0x6b8] sm:$0xff]
    %v246 = vld [vmem:[%s0 + $0x6c0] sm:$0xff]
    %v247 = vld [vmem:[%s0 + $0x6c8] sm:$0xff]
    %v248 = vld [vmem:[%s0 + $0x6d0] sm:$0xff]
    %v249 = vld [vmem:[%s0 + $0x6d8] sm:$0xff]
    %v250 = vld [vmem:[%s0 + $0x6e0] sm:$0xff]
    %v251 = vld [vmem:[%s0 + $0x6e8] sm:$0xff]
    %v252 = vld [vmem:[%s0 + $0x6f0] sm:$0xff]
    %v253 = vld [vmem:[%s0 + $0x6f8] sm:$0xff]
    %v254 = vld [vmem:[%s0 + $0x700] sm:$0xff]
    %v255 = vld [vmem:[%s0 + $0x708] sm:$0xff]
    %v256 = vld [vmem:[%s0 + $0x710] sm:$0xff]
    %v257 = vld [vmem:[%s0 + $0x718] sm:$0xff]
    %v258 = vld [vmem:[%s0 + $0x720] sm:$0xff]
    %v259 = vld [vmem:[%s0 + $0x728] sm:$0xff]
    %v260 = vld [vmem:[%s0 + $0x730] sm:$0xff]
    %v261 = vld [vmem:[%s0 + $0x738] sm:$0xff]
    %v262 = vld [vmem:[%s0 + $0x740] sm:$0xff]
    %v263 = vld [vmem:[%s0 + $0x748] sm:$0xff]
    %v264 = vld [vmem:[%s0 + $0x750] sm:$0xff]
    %v265 = vld [vmem:[%s0 + $0x758] sm:$0xff]
    %v266 = vld [vmem:[%s0 + $0x760] sm:$0xff]
    %v267 = vld [vmem:[%s0 + $0x768] sm:$0xff]
    %v268 = vld [vmem:[%s0 + $0x770] sm:$0xff]
    %v269 = vld [vmem:[%s0 + $0x778] sm:$0xff]
    %v270 = vld [vmem:[%s0 + $0x780] sm:$0xff]
    %v271 = vld [vmem:[%s0 + $0x788] sm:$0xff]
    %v272 = vld [vmem:[%s0 + $0x790] sm:$0xff]
    %v273 = vld [vmem:[%s0 + $0x798] sm:$0xff]
    %v274 = vld [vmem:[%s0 + $0x7a0] sm:$0xff]
    %v275 = vld [vmem:[%s0 + $0x7a8] sm:$0xff]
    %v276 = vld [vmem:[%s0 + $0x7b0] sm:$0xff]
    %v277 = vld [vmem:[%s0 + $0x7b8] sm:$0xff]
    %v278 = vld [vmem:[%s0 + $0x7c0] sm:$0xff]
    %v279 = vld [vmem:[%s0 + $0x7c8] sm:$0xff]
    %v280 = vld [vmem:[%s0 + $0x7d0] sm:$0xff]
    %v281 = vld [vmem:[%s0 + $0x7d8] sm:$0xff]
    %v282 = vld [vmem:[%s0 + $0x7e0] sm:$0xff]
    %v283 = vld [vmem:[%s0 + $0x7e8] sm:$0xff]
    %v284 = vld [vmem:[%s0 + $0x7f0] sm:$0xff]
    %v285 = vld [vmem:[%s0 + $0x7f8] sm:$0xff]
    %v286 = vld [vmem:[%s0 + $0x800] sm:$0xff]
    %v287 = vld [vmem:[%s0 + $0x808] sm:$0xff]
    %v288 = vld [vmem:[%s0 + $0x810] sm:$0xff]
    %v289 = vld [vmem:[%s0 + $0x818] sm:$0xff]
    %v290 = vld [vmem:[%s0 + $0x820] sm:$0xff]
    %v291 = vld [vmem:[%s0 + $0x828] sm:$0xff]
    %v292 = vld [vmem:[%s0 + $0x830] sm:$0xff]
    %v293 = vld [vmem:[%s0 + $0x838] sm:$0xff]
    %v294 = vld [vmem:[%s0 + $0x840] sm:$0xff]
    %v295 = vld [vmem:[%s0 + $0x848] sm:$0xff]
    %v296 = vld [vmem:[%s0 + $0x850] sm:$0xff]
    %v297 = vld [vmem:[%s0 + $0x858] sm:$0xff]
    %v298 = vld [vmem:[%s0 + $0x860] sm:$0xff]
    %v299 = vld [vmem:[%s0 + $0x868] sm:$0xff]
    %v300 = vld [vmem:[%s0 + $0x870] sm:$0xff]
    %v301 = vld [vmem:[%s0 + $0x878] sm:$0xff]
    %v302 = vld [vmem:[%s0 + $0x880] sm:$0xff]
    %v303 = vld [vmem:[%s0 + $0x888] sm:$0xff]
    %v304 = vld [vmem:[%s0 + $0x890] sm:$0xff]
    %v305 = vld [vmem:[%s0 + $0x898] sm:$0xff]
    %v306 = vld [vmem:[%s0 + $0x8a0] sm:$0xff]
    %v307 = vld [vmem:[%s0 + $0x8a8] sm:$0xff]
    %v308 = vld [vmem:[%s0 + $0x8b0] sm:$0xff]
    %v309 = vld [vmem:[%s0 + $0x8b8] sm:$0xff]
    %v310 = vld [vmem:[%s0 + $0x8c0] sm:$0xff]
    %v311 = vld [vmem:[%s0 + $0x8c8] sm:$0xff]
    %v312 = vld [vmem:[%s0 + $0x8d0] sm:$0xff]
    %v313 = vld [vmem:[%s0 + $0x8d8] sm:$0xff]
    %v314 = vld [vmem:[%s0 + $0x8e0] sm:$0xff]
    %v315 = vld [vmem:[%s0 + $0x8e8] sm:$0xff]
    %v316 = vld [vmem:[%s0 + $0x8f0] sm:$0xff]
    %v317 = vld [vmem:[%s0 + $0x8f8] sm:$0xff]
    %v318 = vld [vmem:[%s1] sm:$0xff]
    %v319 = vld [vmem:[%s1 + $0x8] sm:$0xff]
    %v320 = vld [vmem:[%s1 + $0x10] sm:$0xff]
    %v321 = vld [vmem:[%s1 + $0x18] sm:$0xff]
    %v322 = vld [vmem:[%s1 + $0x20] sm:$0xff]
    %v323 = vld [vmem:[%s1 + $0x28] sm:$0xff]
    %v324 = vld [vmem:[%s1 + $0x30] sm:$0xff]
    %v325 = vld [vmem:[%s1 + $0x38] sm:$0xff]
    %v326 = vld [vmem:[%s1 + $0x40] sm:$0xff]
    %v327 = vld [vmem:[%s1 + $0x48] sm:$0xff]
    %v328 = vld [vmem:[%s1 + $0x50] sm:$0xff]
    %v329 = vld [vmem:[%s1 + $0x58] sm:$0xff]
    %v330 = vld [vmem:[%s1 + $0x60] sm:$0xff]
    %v331 = vld [vmem:[%s1 + $0x68] sm:$0xff]
    %v332 = vld [vmem:[%s1 + $0x70] sm:$0xff]
    %v333 = vld [vmem:[%s1 + $0x78] sm:$0xff]
    %v334 = vld [vmem:[%s1 + $0x80] sm:$0xff]
    %v335 = vld [vmem:[%s1 + $0x88] sm:$0xff]
    %v336 = vld [vmem:[%s1 + $0x90] sm:$0xff]
    %v337 = vld [vmem:[%s1 + $0x98] sm:$0xff]
    %v338 = vld [vmem:[%s1 + $0xa0] sm:$0xff]
    %v339 = vld [vmem:[%s1 + $0xa8] sm:$0xff]
    %v340 = vld [vmem:[%s1 + $0xb0] sm:$0xff]
    %v341 = vld [vmem:[%s1 + $0xb8] sm:$0xff]
    %v342 = vld [vmem:[%s1 + $0xc0] sm:$0xff]
    %v343 = vld [vmem:[%s1 + $0xc8] sm:$0xff]
    %v344 = vld [vmem:[%s1 + $0xd0] sm:$0xff]
    %v345 = vld [vmem:[%s1 + $0xd8] sm:$0xff]
    %v346 = vld [vmem:[%s1 + $0xe0] sm:$0xff]
    %v347 = vld [vmem:[%s1 + $0xe8] sm:$0xff]
    %v348 = vld [vmem:[%s1 + $0xf0] sm:$0xff]
    %v349 = vld [vmem:[%s1 + $0xf8] sm:$0xff]
    %v350 = vld [vmem:[%s1 + $0x100] sm:$0xff]
    %v351 = vld [vmem:[%s1 + $0x108] sm:$0xff]
    %v352 = vld [vmem:[%s1 + $0x110] sm:$0xff]
    %v353 = vld [vmem:[%s1 + $0x118] sm:$0xff]
    %v354 = vld [vmem:[%s1 + $0x120] sm:$0xff]
    %v355 = vld [vmem:[%s1 + $0x128] sm:$0xff]
    %v356 = vld [vmem:[%s1 + $0x130] sm:$0xff]
    %v357 = vld [vmem:[%s1 + $0x138] sm:$0xff]
    %v358 = vld [vmem:[%s1 + $0x140] sm:$0xff]
    %v359 = vld [vmem:[%s1 + $0x148] sm:$0xff]
    %v360 = vld [vmem:[%s1 + $0x150] sm:$0xff]
    %v361 = vld [vmem:[%s1 + $0x158] sm:$0xff]
    %v362 = vld [vmem:[%s1 + $0x160] sm:$0xff]
    %v363 = vld [vmem:[%s1 + $0x168] sm:$0xff]
    %v364 = vld [vmem:[%s1 + $0x170] sm:$0xff]
    %v365 = vld [vmem:[%s1 + $0x178] sm:$0xff]
    %v366 = vld [vmem:[%s1 + $0x180] sm:$0xff]
    %v367 = vld [vmem:[%s1 + $0x188] sm:$0xff]
    %v368 = vld [vmem:[%s1 + $0x190] sm:$0xff]
    %v369 = vld [vmem:[%s1 + $0x198] sm:$0xff]
    %v370 = vld [vmem:[%s1 + $0x1a0] sm:$0xff]
    %v371 = vld [vmem:[%s1 + $0x1a8] sm:$0xff]
    %v372 = vld [vmem:[%s1 + $0x1b0] sm:$0xff]
    %v373 = vld [vmem:[%s1 + $0x1b8] sm:$0xff]
    %v374 = vld [vmem:[%s1 + $0x1c0] sm:$0xff]
    %v375 = vld [vmem:[%s1 + $0x1c8] sm:$0xff]
    %v376 = vld [vmem:[%s1 + $0x1d0] sm:$0xff]
    %v377 = vld [vmem:[%s1 + $0x1d8] sm:$0xff]
    %v378 = vld [vmem:[%s1 + $0x1e0] sm:$0xff]
    %v379 = vld [vmem:[%s1 + $0x1e8] sm:$0xff]
    %v380 = vld [vmem:[%s1 + $0x1f0] sm:$0xff]
    %v381 = vld [vmem:[%s1 + $0x1f8] sm:$0xff]
    %v382 = vld [vmem:[%s1 + $0x200] sm:$0xff]
    %v383 = vld [vmem:[%s1 + $0x208] sm:$0xff]
    %v384 = vld [vmem:[%s1 + $0x210] sm:$0xff]
    %v385 = vld [vmem:[%s1 + $0x218] sm:$0xff]
    %v386 = vld [vmem:[%s1 + $0x220] sm:$0xff]
    %v387 = vld [vmem:[%s1 + $0x228] sm:$0xff]
    %v388 = vld [vmem:[%s1 + $0x230] sm:$0xff]
    %v389 = vld [vmem:[%s1 + $0x238] sm:$0xff]
    %v390 = vld [vmem:[%s1 + $0x240] sm:$0xff]
    %v391 = vld [vmem:[%s1 + $0x248] sm:$0xff]
    %v392 = vld [vmem:[%s1 + $0x250] sm:$0xff]
    %v393 = vld [vmem:[%s1 + $0x258] sm:$0xff]
    %v394 = vld [vmem:[%s1 + $0x260] sm:$0xff]
    %v395 = vld [vmem:[%s1 + $0x268] sm:$0xff]
    %v396 = vld [vmem:[%s1 + $0x270] sm:$0xff]
    %v397 = vld [vmem:[%s1 + $0x278] sm:$0xff]
    %v398 = vld [vmem:[%s1 + $0x280] sm:$0xff]
    %v399 = vld [vmem:[%s1 + $0x288] sm:$0xff]
    %v400 = vld [vmem:[%s1 + $0x290] sm:$0xff]
    %v401 = vld [vmem:[%s1 + $0x298] sm:$0xff]
    %v402 = vld [vmem:[%s1 + $0x2a0] sm:$0xff]
    %v403 = vld [vmem:[%s1 + $0x2a8] sm:$0xff]
    %v404 = vld [vmem:[%s1 + $0x2b0] sm:$0xff]
    %v405 = vld [vmem:[%s1 + $0x2b8] sm:$0xff]
    %v406 = vld [vmem:[%s1 + $0x2c0] sm:$0xff]
    %v407 = vld [vmem:[%s1 + $0x2c8] sm:$0xff]
    %v408 = vld [vmem:[%s1 + $0x2d0] sm:$0xff]
    %v409 = vld [vmem:[%s1 + $0x2d8] sm:$0xff]
    %v410 = vld [vmem:[%s1 + $0x2e0] sm:$0xff]
    %v411 = vld [vmem:[%s1 + $0x2e8] sm:$0xff]
    %v412 = vld [vmem:[%s1 + $0x2f0] sm:$0xff]
    %v413 = vld [vmem:[%s1 + $0x2f8] sm:$0xff]
    %v414 = vld [vmem:[%s1 + $0x300] sm:$0xff]
    %v415 = vld [vmem:[%s1 + $0x308] sm:$0xff]
    %v416 = vld [vmem:[%s1 + $0x310] sm:$0xff]
    %v417 = vld [vmem:[%s1 + $0x318] sm:$0xff]
    %v418 = vld [vmem:[%s1 + $0x320] sm:$0xff]
    %v419 = vld [vmem:[%s1 + $0x328] sm:$0xff]
    %v420 = vld [vmem:[%s1 + $0x330] sm:$0xff]
    %v421 = vld [vmem:[%s1 + $0x338] sm:$0xff]
    %v422 = vld [vmem:[%s1 + $0x340] sm:$0xff]
    %v423 = vld [vmem:[%s1 + $0x348] sm:$0xff]
    %v424 = vld [vmem:[%s1 + $0x350] sm:$0xff]
    %v425 = vld [vmem:[%s1 + $0x358] sm:$0xff]
    %v426 = vld [vmem:[%s1 + $0x360] sm:$0xff]
    %v427 = vld [vmem:[%s1 + $0x368] sm:$0xff]
    %v428 = vld [vmem:[%s1 + $0x370] sm:$0xff]
    %v429 = vld [vmem:[%s1 + $0x378] sm:$0xff]
    %v430 = vld [vmem:[%s1 + $0x380] sm:$0xff]
    %v431 = vld [vmem:[%s1 + $0x388] sm:$0xff]
    %v432 = vld [vmem:[%s1 + $0x390] sm:$0xff]
    %v433 = vld [vmem:[%s1 + $0x398] sm:$0xff]
    %v434 = vld [vmem:[%s1 + $0x3a0] sm:$0xff]
    %v435 = vld [vmem:[%s1 + $0x3a8] sm:$0xff]
    %v436 = vld [vmem:[%s1 + $0x3b0] sm:$0xff]
    %v437 = vld [vmem:[%s1 + $0x3b8] sm:$0xff]
    %v438 = vld [vmem:[%s1 + $0x3c0] sm:$0xff]
    %v439 = vld [vmem:[%s1 + $0x3c8] sm:$0xff]
    %v440 = vld [vmem:[%s1 + $0x3d0] sm:$0xff]
    %v441 = vld [vmem:[%s1 + $0x3d8] sm:$0xff]
    %v442 = vld [vmem:[%s1 + $0x3e0] sm:$0xff]
    %v443 = vld [vmem:[%s1 + $0x3e8] sm:$0xff]
    %v444 = vld [vmem:[%s1 + $0x3f0] sm:$0xff]
    %v445 = vld [vmem:[%s1 + $0x3f8] sm:$0xff]
    %v446 = vld [vmem:[%s1 + $0x400] sm:$0xff]
    %v447 = vld [vmem:[%s1 + $0x408] sm:$0xff]
    %v448 = vld [vmem:[%s1 + $0x410] sm:$0xff]
    %v449 = vld [vmem:[%s1 + $0x418] sm:$0xff]
    %v450 = vld [vmem:[%s1 + $0x420] sm:$0xff]
    %v451 = vld [vmem:[%s1 + $0x428] sm:$0xff]
    %v452 = vld [vmem:[%s1 + $0x430] sm:$0xff]
    %v453 = vld [vmem:[%s1 + $0x438] sm:$0xff]
    %v454 = vld [vmem:[%s1 + $0x440] sm:$0xff]
    %v455 = vld [vmem:[%s1 + $0x448] sm:$0xff]
    %v456 = vld [vmem:[%s1 + $0x450] sm:$0xff]
    %v457 = vld [vmem:[%s1 + $0x458] sm:$0xff]
    %v458 = vld [vmem:[%s1 + $0x460] sm:$0xff]
    %v459 = vld [vmem:[%s1 + $0x468] sm:$0xff]
    %v460 = vld [vmem:[%s1 + $0x470] sm:$0xff]
    %v461 = vld [vmem:[%s1 + $0x478] sm:$0xff]
    %v462 = vld [vmem:[%s1 + $0x480] sm:$0xff]
    %v463 = vld [vmem:[%s1 + $0x488] sm:$0xff]
    %v464 = vld [vmem:[%s1 + $0x490] sm:$0xff]
    %v465 = vld [vmem:[%s1 + $0x498] sm:$0xff]
    %v466 = vld [vmem:[%s1 + $0x4a0] sm:$0xff]
    %v467 = vld [vmem:[%s1 + $0x4a8] sm:$0xff]
    %v468 = vld [vmem:[%s1 + $0x4b0] sm:$0xff]
    %v469 = vld [vmem:[%s1 + $0x4b8] sm:$0xff]
    %v470 = vld [vmem:[%s1 + $0x4c0] sm:$0xff]
    %v471 = vld [vmem:[%s1 + $0x4c8] sm:$0xff]
    %v472 = vld [vmem:[%s1 + $0x4d0] sm:$0xff]
    %v473 = vld [vmem:[%s1 + $0x4d8] sm:$0xff]
    %v474 = vld [vmem:[%s1 + $0x4e0] sm:$0xff]
    %v475 = vld [vmem:[%s1 + $0x4e8] sm:$0xff]
    %v476 = vld [vmem:[%s1 + $0x4f0] sm:$0xff]
    %v477 = vld [vmem:[%s1 + $0x4f8] sm:$0xff]
    %v478 = vld [vmem:[%s1 + $0x500] sm:$0xff]
    %v479 = vld [vmem:[%s1 + $0x508] sm:$0xff]
    %v480 = vld [vmem:[%s1 + $0x510] sm:$0xff]
    %v481 = vld [vmem:[%s1 + $0x518] sm:$0xff]
    %v482 = vld [vmem:[%s1 + $0x520] sm:$0xff]
    %v483 = vld [vmem:[%s1 + $0x528] sm:$0xff]
    %v484 = vld [vmem:[%s1 + $0x530] sm:$0xff]
    %v485 = vld [vmem:[%s1 + $0x538] sm:$0xff]
    %v486 = vld [vmem:[%s1 + $0x540] sm:$0xff]
    %v487 = vld [vmem:[%s1 + $0x548] sm:$0xff]
    %v488 = vld [vmem:[%s1 + $0x550] sm:$0xff]
    %v489 = vld [vmem:[%s1 + $0x558] sm:$0xff]
    %v490 = vld [vmem:[%s1 + $0x560] sm:$0xff]
    %v491 = vld [vmem:[%s1 + $0x568] sm:$0xff]
    %v492 = vld [vmem:[%s1 + $0x570] sm:$0xff]
    %v493 = vld [vmem:[%s1 + $0x578] sm:$0xff]
    %v494 = vld [vmem:[%s1 + $0x580] sm:$0xff]
    %v495 = vld [vmem:[%s1 + $0x588] sm:$0xff]
    %v496 = vld [vmem:[%s1 + $0x590] sm:$0xff]
    %v497 = vld [vmem:[%s1 + $0x598] sm:$0xff]
    %v498 = vld [vmem:[%s1 + $0x5a0] sm:$0xff]
    %v499 = vld [vmem:[%s1 + $0x5a8] sm:$0xff]
    %v500 = vld [vmem:[%s1 + $0x5b0] sm:$0xff]
    %v501 = vld [vmem:[%s1 + $0x5b8] sm:$0xff]
    %v502 = vld [vmem:[%s1 + $0x5c0] sm:$0xff]
    %v503 = vld [vmem:[%s1 + $0x5c8] sm:$0xff]
    %v504 = vld [vmem:[%s1 + $0x5d0] sm:$0xff]
    %v505 = vld [vmem:[%s1 + $0x5d8] sm:$0xff]
    %v506 = vld [vmem:[%s1 + $0x5e0] sm:$0xff]
    %v507 = vld [vmem:[%s1 + $0x5e8] sm:$0xff]
    %v508 = vld [vmem:[%s1 + $0x5f0] sm:$0xff]
    %v509 = vld [vmem:[%s1 + $0x5f8] sm:$0xff]
    %v510 = vld [vmem:[%s1 + $0x600] sm:$0xff]
    %v511 = vld [vmem:[%s1 + $0x608] sm:$0xff]
    %v512 = vld [vmem:[%s1 + $0x610] sm:$0xff]
    %v513 = vld [vmem:[%s1 + $0x618] sm:$0xff]
    %v514 = vld [vmem:[%s1 + $0x620] sm:$0xff]
    %v515 = vld [vmem:[%s1 + $0x628] sm:$0xff]
    %v516 = vld [vmem:[%s1 + $0x630] sm:$0xff]
    %v517 = vld [vmem:[%s1 + $0x638] sm:$0xff]
    %v518 = vld [vmem:[%s1 + $0x640] sm:$0xff]
    %v519 = vld [vmem:[%s1 + $0x648] sm:$0xff]
    %v520 = vld [vmem:[%s1 + $0x650] sm:$0xff]
    %v521 = vld [vmem:[%s1 + $0x658] sm:$0xff]
    %v522 = vld [vmem:[%s1 + $0x660] sm:$0xff]
    %v523 = vld [vmem:[%s1 + $0x668] sm:$0xff]
    %v524 = vld [vmem:[%s1 + $0x670] sm:$0xff]
    %v525 = vld [vmem:[%s1 + $0x678] sm:$0xff]
    %v526 = vld [vmem:[%s1 + $0x680] sm:$0xff]
    %v527 = vld [vmem:[%s1 + $0x688] sm:$0xff]
    %v528 = vld [vmem:[%s1 + $0x690] sm:$0xff]
    %v529 = vld [vmem:[%s1 + $0x698] sm:$0xff]
    %v530 = vld [vmem:[%s1 + $0x6a0] sm:$0xff]
    %v531 = vld [vmem:[%s1 + $0x6a8] sm:$0xff]
    %v532 = vld [vmem:[%s1 + $0x6b0] sm:$0xff]
    %v533 = vld [vmem:[%s1 + $0x6b8] sm:$0xff]
    %v534 = vld [vmem:[%s1 + $0x6c0] sm:$0xff]
    %v535 = vld [vmem:[%s1 + $0x6c8] sm:$0xff]
    %v536 = vld [vmem:[%s1 + $0x6d0] sm:$0xff]
    %v537 = vld [vmem:[%s1 + $0x6d8] sm:$0xff]
    %v538 = vld [vmem:[%s1 + $0x6e0] sm:$0xff]
    %v539 = vld [vmem:[%s1 + $0x6e8] sm:$0xff]
    %v540 = vld [vmem:[%s1 + $0x6f0] sm:$0xff]
    %v541 = vld [vmem:[%s1 + $0x6f8] sm:$0xff]
    %v542 = vld [vmem:[%s1 + $0x700] sm:$0xff]
    %v543 = vld [vmem:[%s1 + $0x708] sm:$0xff]
    %v544 = vld [vmem:[%s1 + $0x710] sm:$0xff]
    %v545 = vld [vmem:[%s1 + $0x718] sm:$0xff]
    %v546 = vld [vmem:[%s1 + $0x720] sm:$0xff]
    %v547 = vld [vmem:[%s1 + $0x728] sm:$0xff]
    %v548 = vld [vmem:[%s1 + $0x730] sm:$0xff]
    %v549 = vld [vmem:[%s1 + $0x738] sm:$0xff]
    %v550 = vld [vmem:[%s1 + $0x740] sm:$0xff]
    %v551 = vld [vmem:[%s1 + $0x748] sm:$0xff]
    %v552 = vld [vmem:[%s1 + $0x750] sm:$0xff]
    %v553 = vld [vmem:[%s1 + $0x758] sm:$0xff]
    %v554 = vld [vmem:[%s1 + $0x760] sm:$0xff]
    %v555 = vld [vmem:[%s1 + $0x768] sm:$0xff]
    %v556 = vld [vmem:[%s1 + $0x770] sm:$0xff]
    %v557 = vld [vmem:[%s1 + $0x778] sm:$0xff]
    %v558 = vld [vmem:[%s1 + $0x780] sm:$0xff]
    %v559 = vld [vmem:[%s1 + $0x788] sm:$0xff]
    %v560 = vld [vmem:[%s1 + $0x790] sm:$0xff]
    %v561 = vld [vmem:[%s1 + $0x798] sm:$0xff]
    %v562 = vld [vmem:[%s1 + $0x7a0] sm:$0xff]
    %v563 = vld [vmem:[%s1 + $0x7a8] sm:$0xff]
    %v564 = vld [vmem:[%s1 + $0x7b0] sm:$0xff]
    %v565 = vld [vmem:[%s1 + $0x7b8] sm:$0xff]
    %v566 = vld [vmem:[%s1 + $0x7c0] sm:$0xff]
    %v567 = vld [vmem:[%s1 + $0x7c8] sm:$0xff]
    %v568 = vld [vmem:[%s1 + $0x7d0] sm:$0xff]
    %v569 = vld [vmem:[%s1 + $0x7d8] sm:$0xff]
    %v570 = vld [vmem:[%s1 + $0x7e0] sm:$0xff]
    %v571 = vld [vmem:[%s1 + $0x7e8] sm:$0xff]
    %v572 = vld [vmem:[%s1 + $0x7f0] sm:$0xff]
    %v573 = vld [vmem:[%s1 + $0x7f8] sm:$0xff]
    %v574 = vld [vmem:[%s1 + $0x800] sm:$0xff]
    %v575 = vld [vmem:[%s1 + $0x808] sm:$0xff]
    %v576 = vld [vmem:[%s1 + $0x810] sm:$0xff]
    %v577 = vld [vmem:[%s1 + $0x818] sm:$0xff]
    %v578 = vld [vmem:[%s1 + $0x820] sm:$0xff]
    %v579 = vld [vmem:[%s1 + $0x828] sm:$0xff]
    %v580 = vld [vmem:[%s1 + $0x830] sm:$0xff]
    %v581 = vld [vmem:[%s1 + $0x838] sm:$0xff]
    %v582 = vld [vmem:[%s1 + $0x840] sm:$0xff]
    %v583 = vld [vmem:[%s1 + $0x848] sm:$0xff]
    %v584 = vld [vmem:[%s1 + $0x850] sm:$0xff]
    %v585 = vld [vmem:[%s1 + $0x858] sm:$0xff]
    %v586 = vld [vmem:[%s1 + $0x860] sm:$0xff]
    %v587 = vld [vmem:[%s1 + $0x868] sm:$0xff]
    %v588 = vld [vmem:[%s1 + $0x870] sm:$0xff]
    %v589 = vld [vmem:[%s1 + $0x878] sm:$0xff]
    %v590 = vld [vmem:[%s1 + $0x880] sm:$0xff]
    %v591 = vld [vmem:[%s1 + $0x888] sm:$0xff]
    %v592 = vld [vmem:[%s1 + $0x890] sm:$0xff]
    %v593 = vld [vmem:[%s1 + $0x898] sm:$0xff]
    %v594 = vld [vmem:[%s1 + $0x8a0] sm:$0xff]
    %v595 = vld [vmem:[%s1 + $0x8a8] sm:$0xff]
    %v596 = vld [vmem:[%s1 + $0x8b0] sm:$0xff]
    %v597 = vld [vmem:[%s1 + $0x8b8] sm:$0xff]
    %v598 = vld [vmem:[%s1 + $0x8c0] sm:$0xff]
    %v599 = vld [vmem:[%s1 + $0x8c8] sm:$0xff]
    %v600 = vld [vmem:[%s1 + $0x8d0] sm:$0xff]
    %v601 = vld [vmem:[%s1 + $0x8d8] sm:$0xff]
    %v602 = vld [vmem:[%s1 + $0x8e0] sm:$0xff]
    %v603 = vld [vmem:[%s1 + $0x8e8] sm:$0xff]
    %v604 = vld [vmem:[%s1 + $0x8f0] sm:$0xff]
    %v605 = vld [vmem:[%s1 + $0x8f8] sm:$0xff]
    %607 = vset.pattern.permute.xlu0 0
    %608 = vperm.xlu0 %607, %v318
    %v609 = vpop.permute.xlu0 %608
    %612 = vset.pattern.permute.xlu0 0
    %613 = vperm.xlu0 %612, %v319
    %v614 = vpop.permute.xlu0 %613
    %617 = vset.pattern.permute.xlu0 0
    %618 = vperm.xlu0 %617, %v320
    %v619 = vpop.permute.xlu0 %618
    %622 = vset.pattern.permute.xlu0 0
    %623 = vperm.xlu0 %622, %v321
    %v624 = vpop.permute.xlu0 %623
    %627 = vset.pattern.permute.xlu0 0
    %628 = vperm.xlu0 %627, %v322
    %v629 = vpop.permute.xlu0 %628
    %632 = vset.pattern.permute.xlu0 0
    %633 = vperm.xlu0 %632, %v323
    %v634 = vpop.permute.xlu0 %633
    %637 = vset.pattern.permute.xlu0 0
    %638 = vperm.xlu0 %637, %v324
    %v639 = vpop.permute.xlu0 %638
    %642 = vset.pattern.permute.xlu0 0
    %643 = vperm.xlu0 %642, %v325
    %v644 = vpop.permute.xlu0 %643
    %647 = vset.pattern.permute.xlu0 0
    %648 = vperm.xlu0 %647, %v326
    %v649 = vpop.permute.xlu0 %648
    %652 = vset.pattern.permute.xlu0 0
    %653 = vperm.xlu0 %652, %v327
    %v654 = vpop.permute.xlu0 %653
    %657 = vset.pattern.permute.xlu0 0
    %658 = vperm.xlu0 %657, %v328
    %v659 = vpop.permute.xlu0 %658
    %662 = vset.pattern.permute.xlu0 0
    %663 = vperm.xlu0 %662, %v329
    %v664 = vpop.permute.xlu0 %663
    %667 = vset.pattern.permute.xlu0 0
    %668 = vperm.xlu0 %667, %v330
    %v669 = vpop.permute.xlu0 %668
    %672 = vset.pattern.permute.xlu0 0
    %673 = vperm.xlu0 %672, %v331
    %v674 = vpop.permute.xlu0 %673
    %677 = vset.pattern.permute.xlu0 0
    %678 = vperm.xlu0 %677, %v332
    %v679 = vpop.permute.xlu0 %678
    %682 = vset.pattern.permute.xlu0 0
    %683 = vperm.xlu0 %682, %v333
    %v684 = vpop.permute.xlu0 %683
    %687 = vset.pattern.permute.xlu0 0
    %688 = vperm.xlu0 %687, %v334
    %v689 = vpop.permute.xlu0 %688
    %692 = vset.pattern.permute.xlu0 0
    %693 = vperm.xlu0 %692, %v335
    %v694 = vpop.permute.xlu0 %693
    %697 = vset.pattern.permute.xlu0 0
    %698 = vperm.xlu0 %697, %v336
    %v699 = vpop.permute.xlu0 %698
    %702 = vset.pattern.permute.xlu0 0
    %703 = vperm.xlu0 %702, %v337
    %v704 = vpop.permute.xlu0 %703
    %707 = vset.pattern.permute.xlu0 0
    %708 = vperm.xlu0 %707, %v338
    %v709 = vpop.permute.xlu0 %708
    %712 = vset.pattern.permute.xlu0 0
    %713 = vperm.xlu0 %712, %v339
    %v714 = vpop.permute.xlu0 %713
    %717 = vset.pattern.permute.xlu0 0
    %718 = vperm.xlu0 %717, %v340
    %v719 = vpop.permute.xlu0 %718
    %722 = vset.pattern.permute.xlu0 0
    %723 = vperm.xlu0 %722, %v341
    %v724 = vpop.permute.xlu0 %723
    %727 = vset.pattern.permute.xlu0 0
    %728 = vperm.xlu0 %727, %v342
    %v729 = vpop.permute.xlu0 %728
    %732 = vset.pattern.permute.xlu0 0
    %733 = vperm.xlu0 %732, %v343
    %v734 = vpop.permute.xlu0 %733
    %737 = vset.pattern.permute.xlu0 0
    %738 = vperm.xlu0 %737, %v344
    %v739 = vpop.permute.xlu0 %738
    %742 = vset.pattern.permute.xlu0 0
    %743 = vperm.xlu0 %742, %v345
    %v744 = vpop.permute.xlu0 %743
    %747 = vset.pattern.permute.xlu0 0
    %748 = vperm.xlu0 %747, %v346
    %v749 = vpop.permute.xlu0 %748
    %752 = vset.pattern.permute.xlu0 0
    %753 = vperm.xlu0 %752, %v347
    %v754 = vpop.permute.xlu0 %753
    %757 = vset.pattern.permute.xlu0 0
    %758 = vperm.xlu0 %757, %v348
    %v759 = vpop.permute.xlu0 %758
    %762 = vset.pattern.permute.xlu0 0
    %763 = vperm.xlu0 %762, %v349
    %v764 = vpop.permute.xlu0 %763
    %767 = vset.pattern.permute.xlu0 0
    %768 = vperm.xlu0 %767, %v350
    %v769 = vpop.permute.xlu0 %768
    %772 = vset.pattern.permute.xlu0 0
    %773 = vperm.xlu0 %772, %v351
    %v774 = vpop.permute.xlu0 %773
    %777 = vset.pattern.permute.xlu0 0
    %778 = vperm.xlu0 %777, %v352
    %v779 = vpop.permute.xlu0 %778
    %782 = vset.pattern.permute.xlu0 0
    %783 = vperm.xlu0 %782, %v353
    %v784 = vpop.permute.xlu0 %783
    %787 = vset.pattern.permute.xlu0 0
    %788 = vperm.xlu0 %787, %v354
    %v789 = vpop.permute.xlu0 %788
    %792 = vset.pattern.permute.xlu0 0
    %793 = vperm.xlu0 %792, %v355
    %v794 = vpop.permute.xlu0 %793
    %797 = vset.pattern.permute.xlu0 0
    %798 = vperm.xlu0 %797, %v356
    %v799 = vpop.permute.xlu0 %798
    %802 = vset.pattern.permute.xlu0 0
    %803 = vperm.xlu0 %802, %v357
    %v804 = vpop.permute.xlu0 %803
    %807 = vset.pattern.permute.xlu0 0
    %808 = vperm.xlu0 %807, %v358
    %v809 = vpop.permute.xlu0 %808
    %812 = vset.pattern.permute.xlu0 0
    %813 = vperm.xlu0 %812, %v359
    %v814 = vpop.permute.xlu0 %813
    %817 = vset.pattern.permute.xlu0 0
    %818 = vperm.xlu0 %817, %v360
    %v819 = vpop.permute.xlu0 %818
    %822 = vset.pattern.permute.xlu0 0
    %823 = vperm.xlu0 %822, %v361
    %v824 = vpop.permute.xlu0 %823
    %827 = vset.pattern.permute.xlu0 0
    %828 = vperm.xlu0 %827, %v362
    %v829 = vpop.permute.xlu0 %828
    %832 = vset.pattern.permute.xlu0 0
    %833 = vperm.xlu0 %832, %v363
    %v834 = vpop.permute.xlu0 %833
    %837 = vset.pattern.permute.xlu0 0
    %838 = vperm.xlu0 %837, %v364
    %v839 = vpop.permute.xlu0 %838
    %842 = vset.pattern.permute.xlu0 0
    %843 = vperm.xlu0 %842, %v365
    %v844 = vpop.permute.xlu0 %843
    %847 = vset.pattern.permute.xlu0 0
    %848 = vperm.xlu0 %847, %v366
    %v849 = vpop.permute.xlu0 %848
    %852 = vset.pattern.permute.xlu0 0
    %853 = vperm.xlu0 %852, %v367
    %v854 = vpop.permute.xlu0 %853
    %857 = vset.pattern.permute.xlu0 0
    %858 = vperm.xlu0 %857, %v368
    %v859 = vpop.permute.xlu0 %858
    %862 = vset.pattern.permute.xlu0 0
    %863 = vperm.xlu0 %862, %v369
    %v864 = vpop.permute.xlu0 %863
    %867 = vset.pattern.permute.xlu0 0
    %868 = vperm.xlu0 %867, %v370
    %v869 = vpop.permute.xlu0 %868
    %872 = vset.pattern.permute.xlu0 0
    %873 = vperm.xlu0 %872, %v371
    %v874 = vpop.permute.xlu0 %873
    %877 = vset.pattern.permute.xlu0 0
    %878 = vperm.xlu0 %877, %v372
    %v879 = vpop.permute.xlu0 %878
    %882 = vset.pattern.permute.xlu0 0
    %883 = vperm.xlu0 %882, %v373
    %v884 = vpop.permute.xlu0 %883
    %887 = vset.pattern.permute.xlu0 0
    %888 = vperm.xlu0 %887, %v374
    %v889 = vpop.permute.xlu0 %888
    %892 = vset.pattern.permute.xlu0 0
    %893 = vperm.xlu0 %892, %v375
    %v894 = vpop.permute.xlu0 %893
    %897 = vset.pattern.permute.xlu0 0
    %898 = vperm.xlu0 %897, %v376
    %v899 = vpop.permute.xlu0 %898
    %902 = vset.pattern.permute.xlu0 0
    %903 = vperm.xlu0 %902, %v377
    %v904 = vpop.permute.xlu0 %903
    %907 = vset.pattern.permute.xlu0 0
    %908 = vperm.xlu0 %907, %v378
    %v909 = vpop.permute.xlu0 %908
    %912 = vset.pattern.permute.xlu0 0
    %913 = vperm.xlu0 %912, %v379
    %v914 = vpop.permute.xlu0 %913
    %917 = vset.pattern.permute.xlu0 0
    %918 = vperm.xlu0 %917, %v380
    %v919 = vpop.permute.xlu0 %918
    %922 = vset.pattern.permute.xlu0 0
    %923 = vperm.xlu0 %922, %v381
    %v924 = vpop.permute.xlu0 %923
    %927 = vset.pattern.permute.xlu0 0
    %928 = vperm.xlu0 %927, %v382
    %v929 = vpop.permute.xlu0 %928
    %932 = vset.pattern.permute.xlu0 0
    %933 = vperm.xlu0 %932, %v383
    %v934 = vpop.permute.xlu0 %933
    %937 = vset.pattern.permute.xlu0 0
    %938 = vperm.xlu0 %937, %v384
    %v939 = vpop.permute.xlu0 %938
    %942 = vset.pattern.permute.xlu0 0
    %943 = vperm.xlu0 %942, %v385
    %v944 = vpop.permute.xlu0 %943
    %947 = vset.pattern.permute.xlu0 0
    %948 = vperm.xlu0 %947, %v386
    %v949 = vpop.permute.xlu0 %948
    %952 = vset.pattern.permute.xlu0 0
    %953 = vperm.xlu0 %952, %v387
    %v954 = vpop.permute.xlu0 %953
    %957 = vset.pattern.permute.xlu0 0
    %958 = vperm.xlu0 %957, %v388
    %v959 = vpop.permute.xlu0 %958
    %962 = vset.pattern.permute.xlu0 0
    %963 = vperm.xlu0 %962, %v389
    %v964 = vpop.permute.xlu0 %963
    %967 = vset.pattern.permute.xlu0 0
    %968 = vperm.xlu0 %967, %v390
    %v969 = vpop.permute.xlu0 %968
    %972 = vset.pattern.permute.xlu0 0
    %973 = vperm.xlu0 %972, %v391
    %v974 = vpop.permute.xlu0 %973
    %977 = vset.pattern.permute.xlu0 0
    %978 = vperm.xlu0 %977, %v392
    %v979 = vpop.permute.xlu0 %978
    %982 = vset.pattern.permute.xlu0 0
    %983 = vperm.xlu0 %982, %v393
    %v984 = vpop.permute.xlu0 %983
    %987 = vset.pattern.permute.xlu0 0
    %988 = vperm.xlu0 %987, %v394
    %v989 = vpop.permute.xlu0 %988
    %992 = vset.pattern.permute.xlu0 0
    %993 = vperm.xlu0 %992, %v395
    %v994 = vpop.permute.xlu0 %993
    %997 = vset.pattern.permute.xlu0 0
    %998 = vperm.xlu0 %997, %v396
    %v999 = vpop.permute.xlu0 %998
    %1002 = vset.pattern.permute.xlu0 0
    %1003 = vperm.xlu0 %1002, %v397
    %v1004 = vpop.permute.xlu0 %1003
    %1007 = vset.pattern.permute.xlu0 0
    %1008 = vperm.xlu0 %1007, %v398
    %v1009 = vpop.permute.xlu0 %1008
    %1012 = vset.pattern.permute.xlu0 0
    %1013 = vperm.xlu0 %1012, %v399
    %v1014 = vpop.permute.xlu0 %1013
    %1017 = vset.pattern.permute.xlu0 0
    %1018 = vperm.xlu0 %1017, %v400
    %v1019 = vpop.permute.xlu0 %1018
    %1022 = vset.pattern.permute.xlu0 0
    %1023 = vperm.xlu0 %1022, %v401
    %v1024 = vpop.permute.xlu0 %1023
    %1027 = vset.pattern.permute.xlu0 0
    %1028 = vperm.xlu0 %1027, %v402
    %v1029 = vpop.permute.xlu0 %1028
    %1032 = vset.pattern.permute.xlu0 0
    %1033 = vperm.xlu0 %1032, %v403
    %v1034 = vpop.permute.xlu0 %1033
    %1037 = vset.pattern.permute.xlu0 0
    %1038 = vperm.xlu0 %1037, %v404
    %v1039 = vpop.permute.xlu0 %1038
    %1042 = vset.pattern.permute.xlu0 0
    %1043 = vperm.xlu0 %1042, %v405
    %v1044 = vpop.permute.xlu0 %1043
    %1047 = vset.pattern.permute.xlu0 0
    %1048 = vperm.xlu0 %1047, %v406
    %v1049 = vpop.permute.xlu0 %1048
    %1052 = vset.pattern.permute.xlu0 0
    %1053 = vperm.xlu0 %1052, %v407
    %v1054 = vpop.permute.xlu0 %1053
    %1057 = vset.pattern.permute.xlu0 0
    %1058 = vperm.xlu0 %1057, %v408
    %v1059 = vpop.permute.xlu0 %1058
    %1062 = vset.pattern.permute.xlu0 0
    %1063 = vperm.xlu0 %1062, %v409
    %v1064 = vpop.permute.xlu0 %1063
    %1067 = vset.pattern.permute.xlu0 0
    %1068 = vperm.xlu0 %1067, %v410
    %v1069 = vpop.permute.xlu0 %1068
    %1072 = vset.pattern.permute.xlu0 0
    %1073 = vperm.xlu0 %1072, %v411
    %v1074 = vpop.permute.xlu0 %1073
    %1077 = vset.pattern.permute.xlu0 0
    %1078 = vperm.xlu0 %1077, %v412
    %v1079 = vpop.permute.xlu0 %1078
    %1082 = vset.pattern.permute.xlu0 0
    %1083 = vperm.xlu0 %1082, %v413
    %v1084 = vpop.permute.xlu0 %1083
    %1087 = vset.pattern.permute.xlu0 0
    %1088 = vperm.xlu0 %1087, %v414
    %v1089 = vpop.permute.xlu0 %1088
    %1092 = vset.pattern.permute.xlu0 0
    %1093 = vperm.xlu0 %1092, %v415
    %v1094 = vpop.permute.xlu0 %1093
    %1097 = vset.pattern.permute.xlu0 0
    %1098 = vperm.xlu0 %1097, %v416
    %v1099 = vpop.permute.xlu0 %1098
    %1102 = vset.pattern.permute.xlu0 0
    %1103 = vperm.xlu0 %1102, %v417
    %v1104 = vpop.permute.xlu0 %1103
    %1107 = vset.pattern.permute.xlu0 0
    %1108 = vperm.xlu0 %1107, %v418
    %v1109 = vpop.permute.xlu0 %1108
    %1112 = vset.pattern.permute.xlu0 0
    %1113 = vperm.xlu0 %1112, %v419
    %v1114 = vpop.permute.xlu0 %1113
    %1117 = vset.pattern.permute.xlu0 0
    %1118 = vperm.xlu0 %1117, %v420
    %v1119 = vpop.permute.xlu0 %1118
    %1122 = vset.pattern.permute.xlu0 0
    %1123 = vperm.xlu0 %1122, %v421
    %v1124 = vpop.permute.xlu0 %1123
    %1127 = vset.pattern.permute.xlu0 0
    %1128 = vperm.xlu0 %1127, %v422
    %v1129 = vpop.permute.xlu0 %1128
    %1132 = vset.pattern.permute.xlu0 0
    %1133 = vperm.xlu0 %1132, %v423
    %v1134 = vpop.permute.xlu0 %1133
    %1137 = vset.pattern.permute.xlu0 0
    %1138 = vperm.xlu0 %1137, %v424
    %v1139 = vpop.permute.xlu0 %1138
    %1142 = vset.pattern.permute.xlu0 0
    %1143 = vperm.xlu0 %1142, %v425
    %v1144 = vpop.permute.xlu0 %1143
    %1147 = vset.pattern.permute.xlu0 0
    %1148 = vperm.xlu0 %1147, %v426
    %v1149 = vpop.permute.xlu0 %1148
    %1152 = vset.pattern.permute.xlu0 0
    %1153 = vperm.xlu0 %1152, %v427
    %v1154 = vpop.permute.xlu0 %1153
    %1157 = vset.pattern.permute.xlu0 0
    %1158 = vperm.xlu0 %1157, %v428
    %v1159 = vpop.permute.xlu0 %1158
    %1162 = vset.pattern.permute.xlu0 0
    %1163 = vperm.xlu0 %1162, %v429
    %v1164 = vpop.permute.xlu0 %1163
    %1167 = vset.pattern.permute.xlu0 0
    %1168 = vperm.xlu0 %1167, %v430
    %v1169 = vpop.permute.xlu0 %1168
    %1172 = vset.pattern.permute.xlu0 0
    %1173 = vperm.xlu0 %1172, %v431
    %v1174 = vpop.permute.xlu0 %1173
    %1177 = vset.pattern.permute.xlu0 0
    %1178 = vperm.xlu0 %1177, %v432
    %v1179 = vpop.permute.xlu0 %1178
    %1182 = vset.pattern.permute.xlu0 0
    %1183 = vperm.xlu0 %1182, %v433
    %v1184 = vpop.permute.xlu0 %1183
    %1187 = vset.pattern.permute.xlu0 0
    %1188 = vperm.xlu0 %1187, %v434
    %v1189 = vpop.permute.xlu0 %1188
    %1192 = vset.pattern.permute.xlu0 0
    %1193 = vperm.xlu0 %1192, %v435
    %v1194 = vpop.permute.xlu0 %1193
    %1197 = vset.pattern.permute.xlu0 0
    %1198 = vperm.xlu0 %1197, %v436
    %v1199 = vpop.permute.xlu0 %1198
    %1202 = vset.pattern.permute.xlu0 0
    %1203 = vperm.xlu0 %1202, %v437
    %v1204 = vpop.permute.xlu0 %1203
    %1207 = vset.pattern.permute.xlu0 0
    %1208 = vperm.xlu0 %1207, %v438
    %v1209 = vpop.permute.xlu0 %1208
    %1212 = vset.pattern.permute.xlu0 0
    %1213 = vperm.xlu0 %1212, %v439
    %v1214 = vpop.permute.xlu0 %1213
    %1217 = vset.pattern.permute.xlu0 0
    %1218 = vperm.xlu0 %1217, %v440
    %v1219 = vpop.permute.xlu0 %1218
    %1222 = vset.pattern.permute.xlu0 0
    %1223 = vperm.xlu0 %1222, %v441
    %v1224 = vpop.permute.xlu0 %1223
    %1227 = vset.pattern.permute.xlu0 0
    %1228 = vperm.xlu0 %1227, %v442
    %v1229 = vpop.permute.xlu0 %1228
    %1232 = vset.pattern.permute.xlu0 0
    %1233 = vperm.xlu0 %1232, %v443
    %v1234 = vpop.permute.xlu0 %1233
    %1237 = vset.pattern.permute.xlu0 0
    %1238 = vperm.xlu0 %1237, %v444
    %v1239 = vpop.permute.xlu0 %1238
    %1242 = vset.pattern.permute.xlu0 0
    %1243 = vperm.xlu0 %1242, %v445
    %v1244 = vpop.permute.xlu0 %1243
    %1247 = vset.pattern.permute.xlu0 0
    %1248 = vperm.xlu0 %1247, %v446
    %v1249 = vpop.permute.xlu0 %1248
    %1252 = vset.pattern.permute.xlu0 0
    %1253 = vperm.xlu0 %1252, %v447
    %v1254 = vpop.permute.xlu0 %1253
    %1257 = vset.pattern.permute.xlu0 0
    %1258 = vperm.xlu0 %1257, %v448
    %v1259 = vpop.permute.xlu0 %1258
    %1262 = vset.pattern.permute.xlu0 0
    %1263 = vperm.xlu0 %1262, %v449
    %v1264 = vpop.permute.xlu0 %1263
    %1267 = vset.pattern.permute.xlu0 0
    %1268 = vperm.xlu0 %1267, %v450
    %v1269 = vpop.permute.xlu0 %1268
    %1272 = vset.pattern.permute.xlu0 0
    %1273 = vperm.xlu0 %1272, %v451
    %v1274 = vpop.permute.xlu0 %1273
    %1277 = vset.pattern.permute.xlu0 0
    %1278 = vperm.xlu0 %1277, %v452
    %v1279 = vpop.permute.xlu0 %1278
    %1282 = vset.pattern.permute.xlu0 0
    %1283 = vperm.xlu0 %1282, %v453
    %v1284 = vpop.permute.xlu0 %1283
    %1287 = vset.pattern.permute.xlu0 0
    %1288 = vperm.xlu0 %1287, %v454
    %v1289 = vpop.permute.xlu0 %1288
    %1292 = vset.pattern.permute.xlu0 0
    %1293 = vperm.xlu0 %1292, %v455
    %v1294 = vpop.permute.xlu0 %1293
    %1297 = vset.pattern.permute.xlu0 0
    %1298 = vperm.xlu0 %1297, %v456
    %v1299 = vpop.permute.xlu0 %1298
    %1302 = vset.pattern.permute.xlu0 0
    %1303 = vperm.xlu0 %1302, %v457
    %v1304 = vpop.permute.xlu0 %1303
    %1307 = vset.pattern.permute.xlu0 0
    %1308 = vperm.xlu0 %1307, %v458
    %v1309 = vpop.permute.xlu0 %1308
    %1312 = vset.pattern.permute.xlu0 0
    %1313 = vperm.xlu0 %1312, %v459
    %v1314 = vpop.permute.xlu0 %1313
    %1317 = vset.pattern.permute.xlu0 0
    %1318 = vperm.xlu0 %1317, %v460
    %v1319 = vpop.permute.xlu0 %1318
    %1322 = vset.pattern.permute.xlu0 0
    %1323 = vperm.xlu0 %1322, %v461
    %v1324 = vpop.permute.xlu0 %1323
    %1327 = vset.pattern.permute.xlu0 0
    %1328 = vperm.xlu0 %1327, %v462
    %v1329 = vpop.permute.xlu0 %1328
    %1332 = vset.pattern.permute.xlu0 0
    %1333 = vperm.xlu0 %1332, %v463
    %v1334 = vpop.permute.xlu0 %1333
    %1337 = vset.pattern.permute.xlu0 0
    %1338 = vperm.xlu0 %1337, %v464
    %v1339 = vpop.permute.xlu0 %1338
    %1342 = vset.pattern.permute.xlu0 0
    %1343 = vperm.xlu0 %1342, %v465
    %v1344 = vpop.permute.xlu0 %1343
    %1347 = vset.pattern.permute.xlu0 0
    %1348 = vperm.xlu0 %1347, %v466
    %v1349 = vpop.permute.xlu0 %1348
    %1352 = vset.pattern.permute.xlu0 0
    %1353 = vperm.xlu0 %1352, %v467
    %v1354 = vpop.permute.xlu0 %1353
    %1357 = vset.pattern.permute.xlu0 0
    %1358 = vperm.xlu0 %1357, %v468
    %v1359 = vpop.permute.xlu0 %1358
    %1362 = vset.pattern.permute.xlu0 0
    %1363 = vperm.xlu0 %1362, %v469
    %v1364 = vpop.permute.xlu0 %1363
    %1367 = vset.pattern.permute.xlu0 0
    %1368 = vperm.xlu0 %1367, %v470
    %v1369 = vpop.permute.xlu0 %1368
    %1372 = vset.pattern.permute.xlu0 0
    %1373 = vperm.xlu0 %1372, %v471
    %v1374 = vpop.permute.xlu0 %1373
    %1377 = vset.pattern.permute.xlu0 0
    %1378 = vperm.xlu0 %1377, %v472
    %v1379 = vpop.permute.xlu0 %1378
    %1382 = vset.pattern.permute.xlu0 0
    %1383 = vperm.xlu0 %1382, %v473
    %v1384 = vpop.permute.xlu0 %1383
    %1387 = vset.pattern.permute.xlu0 0
    %1388 = vperm.xlu0 %1387, %v474
    %v1389 = vpop.permute.xlu0 %1388
    %1392 = vset.pattern.permute.xlu0 0
    %1393 = vperm.xlu0 %1392, %v475
    %v1394 = vpop.permute.xlu0 %1393
    %1397 = vset.pattern.permute.xlu0 0
    %1398 = vperm.xlu0 %1397, %v476
    %v1399 = vpop.permute.xlu0 %1398
    %1402 = vset.pattern.permute.xlu0 0
    %1403 = vperm.xlu0 %1402, %v477
    %v1404 = vpop.permute.xlu0 %1403
    %1407 = vset.pattern.permute.xlu0 0
    %1408 = vperm.xlu0 %1407, %v478
    %v1409 = vpop.permute.xlu0 %1408
    %1412 = vset.pattern.permute.xlu0 0
    %1413 = vperm.xlu0 %1412, %v479
    %v1414 = vpop.permute.xlu0 %1413
    %1417 = vset.pattern.permute.xlu0 0
    %1418 = vperm.xlu0 %1417, %v480
    %v1419 = vpop.permute.xlu0 %1418
    %1422 = vset.pattern.permute.xlu0 0
    %1423 = vperm.xlu0 %1422, %v481
    %v1424 = vpop.permute.xlu0 %1423
    %1427 = vset.pattern.permute.xlu0 0
    %1428 = vperm.xlu0 %1427, %v482
    %v1429 = vpop.permute.xlu0 %1428
    %1432 = vset.pattern.permute.xlu0 0
    %1433 = vperm.xlu0 %1432, %v483
    %v1434 = vpop.permute.xlu0 %1433
    %1437 = vset.pattern.permute.xlu0 0
    %1438 = vperm.xlu0 %1437, %v484
    %v1439 = vpop.permute.xlu0 %1438
    %1442 = vset.pattern.permute.xlu0 0
    %1443 = vperm.xlu0 %1442, %v485
    %v1444 = vpop.permute.xlu0 %1443
    %1447 = vset.pattern.permute.xlu0 0
    %1448 = vperm.xlu0 %1447, %v486
    %v1449 = vpop.permute.xlu0 %1448
    %1452 = vset.pattern.permute.xlu0 0
    %1453 = vperm.xlu0 %1452, %v487
    %v1454 = vpop.permute.xlu0 %1453
    %1457 = vset.pattern.permute.xlu0 0
    %1458 = vperm.xlu0 %1457, %v488
    %v1459 = vpop.permute.xlu0 %1458
    %1462 = vset.pattern.permute.xlu0 0
    %1463 = vperm.xlu0 %1462, %v489
    %v1464 = vpop.permute.xlu0 %1463
    %1467 = vset.pattern.permute.xlu0 0
    %1468 = vperm.xlu0 %1467, %v490
    %v1469 = vpop.permute.xlu0 %1468
    %1472 = vset.pattern.permute.xlu0 0
    %1473 = vperm.xlu0 %1472, %v491
    %v1474 = vpop.permute.xlu0 %1473
    %1477 = vset.pattern.permute.xlu0 0
    %1478 = vperm.xlu0 %1477, %v492
    %v1479 = vpop.permute.xlu0 %1478
    %1482 = vset.pattern.permute.xlu0 0
    %1483 = vperm.xlu0 %1482, %v493
    %v1484 = vpop.permute.xlu0 %1483
    %1487 = vset.pattern.permute.xlu0 0
    %1488 = vperm.xlu0 %1487, %v494
    %v1489 = vpop.permute.xlu0 %1488
    %1492 = vset.pattern.permute.xlu0 0
    %1493 = vperm.xlu0 %1492, %v495
    %v1494 = vpop.permute.xlu0 %1493
    %1497 = vset.pattern.permute.xlu0 0
    %1498 = vperm.xlu0 %1497, %v496
    %v1499 = vpop.permute.xlu0 %1498
    %1502 = vset.pattern.permute.xlu0 0
    %1503 = vperm.xlu0 %1502, %v497
    %v1504 = vpop.permute.xlu0 %1503
    %1507 = vset.pattern.permute.xlu0 0
    %1508 = vperm.xlu0 %1507, %v498
    %v1509 = vpop.permute.xlu0 %1508
    %1512 = vset.pattern.permute.xlu0 0
    %1513 = vperm.xlu0 %1512, %v499
    %v1514 = vpop.permute.xlu0 %1513
    %1517 = vset.pattern.permute.xlu0 0
    %1518 = vperm.xlu0 %1517, %v500
    %v1519 = vpop.permute.xlu0 %1518
    %1522 = vset.pattern.permute.xlu0 0
    %1523 = vperm.xlu0 %1522, %v501
    %v1524 = vpop.permute.xlu0 %1523
    %1527 = vset.pattern.permute.xlu0 0
    %1528 = vperm.xlu0 %1527, %v502
    %v1529 = vpop.permute.xlu0 %1528
    %1532 = vset.pattern.permute.xlu0 0
    %1533 = vperm.xlu0 %1532, %v503
    %v1534 = vpop.permute.xlu0 %1533
    %1537 = vset.pattern.permute.xlu0 0
    %1538 = vperm.xlu0 %1537, %v504
    %v1539 = vpop.permute.xlu0 %1538
    %1542 = vset.pattern.permute.xlu0 0
    %1543 = vperm.xlu0 %1542, %v505
    %v1544 = vpop.permute.xlu0 %1543
    %1547 = vset.pattern.permute.xlu0 0
    %1548 = vperm.xlu0 %1547, %v506
    %v1549 = vpop.permute.xlu0 %1548
    %1552 = vset.pattern.permute.xlu0 0
    %1553 = vperm.xlu0 %1552, %v507
    %v1554 = vpop.permute.xlu0 %1553
    %1557 = vset.pattern.permute.xlu0 0
    %1558 = vperm.xlu0 %1557, %v508
    %v1559 = vpop.permute.xlu0 %1558
    %1562 = vset.pattern.permute.xlu0 0
    %1563 = vperm.xlu0 %1562, %v509
    %v1564 = vpop.permute.xlu0 %1563
    %1567 = vset.pattern.permute.xlu0 0
    %1568 = vperm.xlu0 %1567, %v510
    %v1569 = vpop.permute.xlu0 %1568
    %1572 = vset.pattern.permute.xlu0 0
    %1573 = vperm.xlu0 %1572, %v511
    %v1574 = vpop.permute.xlu0 %1573
    %1577 = vset.pattern.permute.xlu0 0
    %1578 = vperm.xlu0 %1577, %v512
    %v1579 = vpop.permute.xlu0 %1578
    %1582 = vset.pattern.permute.xlu0 0
    %1583 = vperm.xlu0 %1582, %v513
    %v1584 = vpop.permute.xlu0 %1583
    %1587 = vset.pattern.permute.xlu0 0
    %1588 = vperm.xlu0 %1587, %v514
    %v1589 = vpop.permute.xlu0 %1588
    %1592 = vset.pattern.permute.xlu0 0
    %1593 = vperm.xlu0 %1592, %v515
    %v1594 = vpop.permute.xlu0 %1593
    %1597 = vset.pattern.permute.xlu0 0
    %1598 = vperm.xlu0 %1597, %v516
    %v1599 = vpop.permute.xlu0 %1598
    %1602 = vset.pattern.permute.xlu0 0
    %1603 = vperm.xlu0 %1602, %v517
    %v1604 = vpop.permute.xlu0 %1603
    %1607 = vset.pattern.permute.xlu0 0
    %1608 = vperm.xlu0 %1607, %v518
    %v1609 = vpop.permute.xlu0 %1608
    %1612 = vset.pattern.permute.xlu0 0
    %1613 = vperm.xlu0 %1612, %v519
    %v1614 = vpop.permute.xlu0 %1613
    %1617 = vset.pattern.permute.xlu0 0
    %1618 = vperm.xlu0 %1617, %v520
    %v1619 = vpop.permute.xlu0 %1618
    %1622 = vset.pattern.permute.xlu0 0
    %1623 = vperm.xlu0 %1622, %v521
    %v1624 = vpop.permute.xlu0 %1623
    %1627 = vset.pattern.permute.xlu0 0
    %1628 = vperm.xlu0 %1627, %v522
    %v1629 = vpop.permute.xlu0 %1628
    %1632 = vset.pattern.permute.xlu0 0
    %1633 = vperm.xlu0 %1632, %v523
    %v1634 = vpop.permute.xlu0 %1633
    %1637 = vset.pattern.permute.xlu0 0
    %1638 = vperm.xlu0 %1637, %v524
    %v1639 = vpop.permute.xlu0 %1638
    %1642 = vset.pattern.permute.xlu0 0
    %1643 = vperm.xlu0 %1642, %v525
    %v1644 = vpop.permute.xlu0 %1643
    %1647 = vset.pattern.permute.xlu0 0
    %1648 = vperm.xlu0 %1647, %v526
    %v1649 = vpop.permute.xlu0 %1648
    %1652 = vset.pattern.permute.xlu0 0
    %1653 = vperm.xlu0 %1652, %v527
    %v1654 = vpop.permute.xlu0 %1653
    %1657 = vset.pattern.permute.xlu0 0
    %1658 = vperm.xlu0 %1657, %v528
    %v1659 = vpop.permute.xlu0 %1658
    %1662 = vset.pattern.permute.xlu0 0
    %1663 = vperm.xlu0 %1662, %v529
    %v1664 = vpop.permute.xlu0 %1663
    %1667 = vset.pattern.permute.xlu0 0
    %1668 = vperm.xlu0 %1667, %v530
    %v1669 = vpop.permute.xlu0 %1668
    %1672 = vset.pattern.permute.xlu0 0
    %1673 = vperm.xlu0 %1672, %v531
    %v1674 = vpop.permute.xlu0 %1673
    %1677 = vset.pattern.permute.xlu0 0
    %1678 = vperm.xlu0 %1677, %v532
    %v1679 = vpop.permute.xlu0 %1678
    %1682 = vset.pattern.permute.xlu0 0
    %1683 = vperm.xlu0 %1682, %v533
    %v1684 = vpop.permute.xlu0 %1683
    %1687 = vset.pattern.permute.xlu0 0
    %1688 = vperm.xlu0 %1687, %v534
    %v1689 = vpop.permute.xlu0 %1688
    %1692 = vset.pattern.permute.xlu0 0
    %1693 = vperm.xlu0 %1692, %v535
    %v1694 = vpop.permute.xlu0 %1693
    %1697 = vset.pattern.permute.xlu0 0
    %1698 = vperm.xlu0 %1697, %v536
    %v1699 = vpop.permute.xlu0 %1698
    %1702 = vset.pattern.permute.xlu0 0
    %1703 = vperm.xlu0 %1702, %v537
    %v1704 = vpop.permute.xlu0 %1703
    %1707 = vset.pattern.permute.xlu0 0
    %1708 = vperm.xlu0 %1707, %v538
    %v1709 = vpop.permute.xlu0 %1708
    %1712 = vset.pattern.permute.xlu0 0
    %1713 = vperm.xlu0 %1712, %v539
    %v1714 = vpop.permute.xlu0 %1713
    %1717 = vset.pattern.permute.xlu0 0
    %1718 = vperm.xlu0 %1717, %v540
    %v1719 = vpop.permute.xlu0 %1718
    %1722 = vset.pattern.permute.xlu0 0
    %1723 = vperm.xlu0 %1722, %v541
    %v1724 = vpop.permute.xlu0 %1723
    %1727 = vset.pattern.permute.xlu0 0
    %1728 = vperm.xlu0 %1727, %v542
    %v1729 = vpop.permute.xlu0 %1728
    %1732 = vset.pattern.permute.xlu0 0
    %1733 = vperm.xlu0 %1732, %v543
    %v1734 = vpop.permute.xlu0 %1733
    %1737 = vset.pattern.permute.xlu0 0
    %1738 = vperm.xlu0 %1737, %v544
    %v1739 = vpop.permute.xlu0 %1738
    %1742 = vset.pattern.permute.xlu0 0
    %1743 = vperm.xlu0 %1742, %v545
    %v1744 = vpop.permute.xlu0 %1743
    %1747 = vset.pattern.permute.xlu0 0
    %1748 = vperm.xlu0 %1747, %v546
    %v1749 = vpop.permute.xlu0 %1748
    %1752 = vset.pattern.permute.xlu0 0
    %1753 = vperm.xlu0 %1752, %v547
    %v1754 = vpop.permute.xlu0 %1753
    %1757 = vset.pattern.permute.xlu0 0
    %1758 = vperm.xlu0 %1757, %v548
    %v1759 = vpop.permute.xlu0 %1758
    %1762 = vset.pattern.permute.xlu0 0
    %1763 = vperm.xlu0 %1762, %v549
    %v1764 = vpop.permute.xlu0 %1763
    %1767 = vset.pattern.permute.xlu0 0
    %1768 = vperm.xlu0 %1767, %v550
    %v1769 = vpop.permute.xlu0 %1768
    %1772 = vset.pattern.permute.xlu0 0
    %1773 = vperm.xlu0 %1772, %v551
    %v1774 = vpop.permute.xlu0 %1773
    %1777 = vset.pattern.permute.xlu0 0
    %1778 = vperm.xlu0 %1777, %v552
    %v1779 = vpop.permute.xlu0 %1778
    %1782 = vset.pattern.permute.xlu0 0
    %1783 = vperm.xlu0 %1782, %v553
    %v1784 = vpop.permute.xlu0 %1783
    %1787 = vset.pattern.permute.xlu0 0
    %1788 = vperm.xlu0 %1787, %v554
    %v1789 = vpop.permute.xlu0 %1788
    %1792 = vset.pattern.permute.xlu0 0
    %1793 = vperm.xlu0 %1792, %v555
    %v1794 = vpop.permute.xlu0 %1793
    %1797 = vset.pattern.permute.xlu0 0
    %1798 = vperm.xlu0 %1797, %v556
    %v1799 = vpop.permute.xlu0 %1798
    %1802 = vset.pattern.permute.xlu0 0
    %1803 = vperm.xlu0 %1802, %v557
    %v1804 = vpop.permute.xlu0 %1803
    %1807 = vset.pattern.permute.xlu0 0
    %1808 = vperm.xlu0 %1807, %v558
    %v1809 = vpop.permute.xlu0 %1808
    %1812 = vset.pattern.permute.xlu0 0
    %1813 = vperm.xlu0 %1812, %v559
    %v1814 = vpop.permute.xlu0 %1813
    %1817 = vset.pattern.permute.xlu0 0
    %1818 = vperm.xlu0 %1817, %v560
    %v1819 = vpop.permute.xlu0 %1818
    %1822 = vset.pattern.permute.xlu0 0
    %1823 = vperm.xlu0 %1822, %v561
    %v1824 = vpop.permute.xlu0 %1823
    %1827 = vset.pattern.permute.xlu0 0
    %1828 = vperm.xlu0 %1827, %v562
    %v1829 = vpop.permute.xlu0 %1828
    %1832 = vset.pattern.permute.xlu0 0
    %1833 = vperm.xlu0 %1832, %v563
    %v1834 = vpop.permute.xlu0 %1833
    %1837 = vset.pattern.permute.xlu0 0
    %1838 = vperm.xlu0 %1837, %v564
    %v1839 = vpop.permute.xlu0 %1838
    %1842 = vset.pattern.permute.xlu0 0
    %1843 = vperm.xlu0 %1842, %v565
    %v1844 = vpop.permute.xlu0 %1843
    %1847 = vset.pattern.permute.xlu0 0
    %1848 = vperm.xlu0 %1847, %v566
    %v1849 = vpop.permute.xlu0 %1848
    %1852 = vset.pattern.permute.xlu0 0
    %1853 = vperm.xlu0 %1852, %v567
    %v1854 = vpop.permute.xlu0 %1853
    %1857 = vset.pattern.permute.xlu0 0
    %1858 = vperm.xlu0 %1857, %v568
    %v1859 = vpop.permute.xlu0 %1858
    %1862 = vset.pattern.permute.xlu0 0
    %1863 = vperm.xlu0 %1862, %v569
    %v1864 = vpop.permute.xlu0 %1863
    %1867 = vset.pattern.permute.xlu0 0
    %1868 = vperm.xlu0 %1867, %v570
    %v1869 = vpop.permute.xlu0 %1868
    %1872 = vset.pattern.permute.xlu0 0
    %1873 = vperm.xlu0 %1872, %v571
    %v1874 = vpop.permute.xlu0 %1873
    %1877 = vset.pattern.permute.xlu0 0
    %1878 = vperm.xlu0 %1877, %v572
    %v1879 = vpop.permute.xlu0 %1878
    %1882 = vset.pattern.permute.xlu0 0
    %1883 = vperm.xlu0 %1882, %v573
    %v1884 = vpop.permute.xlu0 %1883
    %1887 = vset.pattern.permute.xlu0 0
    %1888 = vperm.xlu0 %1887, %v574
    %v1889 = vpop.permute.xlu0 %1888
    %1892 = vset.pattern.permute.xlu0 0
    %1893 = vperm.xlu0 %1892, %v575
    %v1894 = vpop.permute.xlu0 %1893
    %1897 = vset.pattern.permute.xlu0 0
    %1898 = vperm.xlu0 %1897, %v576
    %v1899 = vpop.permute.xlu0 %1898
    %1902 = vset.pattern.permute.xlu0 0
    %1903 = vperm.xlu0 %1902, %v577
    %v1904 = vpop.permute.xlu0 %1903
    %1907 = vset.pattern.permute.xlu0 0
    %1908 = vperm.xlu0 %1907, %v578
    %v1909 = vpop.permute.xlu0 %1908
    %1912 = vset.pattern.permute.xlu0 0
    %1913 = vperm.xlu0 %1912, %v579
    %v1914 = vpop.permute.xlu0 %1913
    %1917 = vset.pattern.permute.xlu0 0
    %1918 = vperm.xlu0 %1917, %v580
    %v1919 = vpop.permute.xlu0 %1918
    %1922 = vset.pattern.permute.xlu0 0
    %1923 = vperm.xlu0 %1922, %v581
    %v1924 = vpop.permute.xlu0 %1923
    %1927 = vset.pattern.permute.xlu0 0
    %1928 = vperm.xlu0 %1927, %v582
    %v1929 = vpop.permute.xlu0 %1928
    %1932 = vset.pattern.permute.xlu0 0
    %1933 = vperm.xlu0 %1932, %v583
    %v1934 = vpop.permute.xlu0 %1933
    %1937 = vset.pattern.permute.xlu0 0
    %1938 = vperm.xlu0 %1937, %v584
    %v1939 = vpop.permute.xlu0 %1938
    %1942 = vset.pattern.permute.xlu0 0
    %1943 = vperm.xlu0 %1942, %v585
    %v1944 = vpop.permute.xlu0 %1943
    %1947 = vset.pattern.permute.xlu0 0
    %1948 = vperm.xlu0 %1947, %v586
    %v1949 = vpop.permute.xlu0 %1948
    %1952 = vset.pattern.permute.xlu0 0
    %1953 = vperm.xlu0 %1952, %v587
    %v1954 = vpop.permute.xlu0 %1953
    %1957 = vset.pattern.permute.xlu0 0
    %1958 = vperm.xlu0 %1957, %v588
    %v1959 = vpop.permute.xlu0 %1958
    %1962 = vset.pattern.permute.xlu0 0
    %1963 = vperm.xlu0 %1962, %v589
    %v1964 = vpop.permute.xlu0 %1963
    %1967 = vset.pattern.permute.xlu0 0
    %1968 = vperm.xlu0 %1967, %v590
    %v1969 = vpop.permute.xlu0 %1968
    %1972 = vset.pattern.permute.xlu0 0
    %1973 = vperm.xlu0 %1972, %v591
    %v1974 = vpop.permute.xlu0 %1973
    %1977 = vset.pattern.permute.xlu0 0
    %1978 = vperm.xlu0 %1977, %v592
    %v1979 = vpop.permute.xlu0 %1978
    %1982 = vset.pattern.permute.xlu0 0
    %1983 = vperm.xlu0 %1982, %v593
    %v1984 = vpop.permute.xlu0 %1983
    %1987 = vset.pattern.permute.xlu0 0
    %1988 = vperm.xlu0 %1987, %v594
    %v1989 = vpop.permute.xlu0 %1988
    %1992 = vset.pattern.permute.xlu0 0
    %1993 = vperm.xlu0 %1992, %v595
    %v1994 = vpop.permute.xlu0 %1993
    %1997 = vset.pattern.permute.xlu0 0
    %1998 = vperm.xlu0 %1997, %v596
    %v1999 = vpop.permute.xlu0 %1998
    %2002 = vset.pattern.permute.xlu0 0
    %2003 = vperm.xlu0 %2002, %v597
    %v2004 = vpop.permute.xlu0 %2003
    %2007 = vset.pattern.permute.xlu0 0
    %2008 = vperm.xlu0 %2007, %v598
    %v2009 = vpop.permute.xlu0 %2008
    %2012 = vset.pattern.permute.xlu0 0
    %2013 = vperm.xlu0 %2012, %v599
    %v2014 = vpop.permute.xlu0 %2013
    %2017 = vset.pattern.permute.xlu0 0
    %2018 = vperm.xlu0 %2017, %v600
    %v2019 = vpop.permute.xlu0 %2018
    %2022 = vset.pattern.permute.xlu0 0
    %2023 = vperm.xlu0 %2022, %v601
    %v2024 = vpop.permute.xlu0 %2023
    %2027 = vset.pattern.permute.xlu0 0
    %2028 = vperm.xlu0 %2027, %v602
    %v2029 = vpop.permute.xlu0 %2028
    %2032 = vset.pattern.permute.xlu0 0
    %2033 = vperm.xlu0 %2032, %v603
    %v2034 = vpop.permute.xlu0 %2033
    %2037 = vset.pattern.permute.xlu0 0
    %2038 = vperm.xlu0 %2037, %v604
    %v2039 = vpop.permute.xlu0 %2038
    %2042 = vset.pattern.permute.xlu0 0
    %2043 = vperm.xlu0 %2042, %v605
    %v2044 = vpop.permute.xlu0 %2043
    %v2046 = vmul.f32 %v30, %v609
    %v2047 = vmul.f32 %v31, %v614
    %v2048 = vmul.f32 %v32, %v619
    %v2049 = vmul.f32 %v33, %v624
    %v2050 = vmul.f32 %v34, %v629
    %v2051 = vmul.f32 %v35, %v634
    %v2052 = vmul.f32 %v36, %v639
    %v2053 = vmul.f32 %v37, %v644
    %v2054 = vmul.f32 %v38, %v649
    %v2055 = vmul.f32 %v39, %v654
    %v2056 = vmul.f32 %v40, %v659
    %v2057 = vmul.f32 %v41, %v664
    %v2058 = vmul.f32 %v42, %v669
    %v2059 = vmul.f32 %v43, %v674
    %v2060 = vmul.f32 %v44, %v679
    %v2061 = vmul.f32 %v45, %v684
    %v2062 = vmul.f32 %v46, %v689
    %v2063 = vmul.f32 %v47, %v694
    %v2064 = vmul.f32 %v48, %v699
    %v2065 = vmul.f32 %v49, %v704
    %v2066 = vmul.f32 %v50, %v709
    %v2067 = vmul.f32 %v51, %v714
    %v2068 = vmul.f32 %v52, %v719
    %v2069 = vmul.f32 %v53, %v724
    %v2070 = vmul.f32 %v54, %v729
    %v2071 = vmul.f32 %v55, %v734
    %v2072 = vmul.f32 %v56, %v739
    %v2073 = vmul.f32 %v57, %v744
    %v2074 = vmul.f32 %v58, %v749
    %v2075 = vmul.f32 %v59, %v754
    %v2076 = vmul.f32 %v60, %v759
    %v2077 = vmul.f32 %v61, %v764
    %v2078 = vmul.f32 %v62, %v769
    %v2079 = vmul.f32 %v63, %v774
    %v2080 = vmul.f32 %v64, %v779
    %v2081 = vmul.f32 %v65, %v784
    %v2082 = vmul.f32 %v66, %v789
    %v2083 = vmul.f32 %v67, %v794
    %v2084 = vmul.f32 %v68, %v799
    %v2085 = vmul.f32 %v69, %v804
    %v2086 = vmul.f32 %v70, %v809
    %v2087 = vmul.f32 %v71, %v814
    %v2088 = vmul.f32 %v72, %v819
    %v2089 = vmul.f32 %v73, %v824
    %v2090 = vmul.f32 %v74, %v829
    %v2091 = vmul.f32 %v75, %v834
    %v2092 = vmul.f32 %v76, %v839
    %v2093 = vmul.f32 %v77, %v844
    %v2094 = vmul.f32 %v78, %v849
    %v2095 = vmul.f32 %v79, %v854
    %v2096 = vmul.f32 %v80, %v859
    %v2097 = vmul.f32 %v81, %v864
    %v2098 = vmul.f32 %v82, %v869
    %v2099 = vmul.f32 %v83, %v874
    %v2100 = vmul.f32 %v84, %v879
    %v2101 = vmul.f32 %v85, %v884
    %v2102 = vmul.f32 %v86, %v889
    %v2103 = vmul.f32 %v87, %v894
    %v2104 = vmul.f32 %v88, %v899
    %v2105 = vmul.f32 %v89, %v904
    %v2106 = vmul.f32 %v90, %v909
    %v2107 = vmul.f32 %v91, %v914
    %v2108 = vmul.f32 %v92, %v919
    %v2109 = vmul.f32 %v93, %v924
    %v2110 = vmul.f32 %v94, %v929
    %v2111 = vmul.f32 %v95, %v934
    %v2112 = vmul.f32 %v96, %v939
    %v2113 = vmul.f32 %v97, %v944
    %v2114 = vmul.f32 %v98, %v949
    %v2115 = vmul.f32 %v99, %v954
    %v2116 = vmul.f32 %v100, %v959
    %v2117 = vmul.f32 %v101, %v964
    %v2118 = vmul.f32 %v102, %v969
    %v2119 = vmul.f32 %v103, %v974
    %v2120 = vmul.f32 %v104, %v979
    %v2121 = vmul.f32 %v105, %v984
    %v2122 = vmul.f32 %v106, %v989
    %v2123 = vmul.f32 %v107, %v994
    %v2124 = vmul.f32 %v108, %v999
    %v2125 = vmul.f32 %v109, %v1004
    %v2126 = vmul.f32 %v110, %v1009
    %v2127 = vmul.f32 %v111, %v1014
    %v2128 = vmul.f32 %v112, %v1019
    %v2129 = vmul.f32 %v113, %v1024
    %v2130 = vmul.f32 %v114, %v1029
    %v2131 = vmul.f32 %v115, %v1034
    %v2132 = vmul.f32 %v116, %v1039
    %v2133 = vmul.f32 %v117, %v1044
    %v2134 = vmul.f32 %v118, %v1049
    %v2135 = vmul.f32 %v119, %v1054
    %v2136 = vmul.f32 %v120, %v1059
    %v2137 = vmul.f32 %v121, %v1064
    %v2138 = vmul.f32 %v122, %v1069
    %v2139 = vmul.f32 %v123, %v1074
    %v2140 = vmul.f32 %v124, %v1079
    %v2141 = vmul.f32 %v125, %v1084
    %v2142 = vmul.f32 %v126, %v1089
    %v2143 = vmul.f32 %v127, %v1094
    %v2144 = vmul.f32 %v128, %v1099
    %v2145 = vmul.f32 %v129, %v1104
    %v2146 = vmul.f32 %v130, %v1109
    %v2147 = vmul.f32 %v131, %v1114
    %v2148 = vmul.f32 %v132, %v1119
    %v2149 = vmul.f32 %v133, %v1124
    %v2150 = vmul.f32 %v134, %v1129
    %v2151 = vmul.f32 %v135, %v1134
    %v2152 = vmul.f32 %v136, %v1139
    %v2153 = vmul.f32 %v137, %v1144
    %v2154 = vmul.f32 %v138, %v1149
    %v2155 = vmul.f32 %v139, %v1154
    %v2156 = vmul.f32 %v140, %v1159
    %v2157 = vmul.f32 %v141, %v1164
    %v2158 = vmul.f32 %v142, %v1169
    %v2159 = vmul.f32 %v143, %v1174
    %v2160 = vmul.f32 %v144, %v1179
    %v2161 = vmul.f32 %v145, %v1184
    %v2162 = vmul.f32 %v146, %v1189
    %v2163 = vmul.f32 %v147, %v1194
    %v2164 = vmul.f32 %v148, %v1199
    %v2165 = vmul.f32 %v149, %v1204
    %v2166 = vmul.f32 %v150, %v1209
    %v2167 = vmul.f32 %v151, %v1214
    %v2168 = vmul.f32 %v152, %v1219
    %v2169 = vmul.f32 %v153, %v1224
    %v2170 = vmul.f32 %v154, %v1229
    %v2171 = vmul.f32 %v155, %v1234
    %v2172 = vmul.f32 %v156, %v1239
    %v2173 = vmul.f32 %v157, %v1244
    %v2174 = vmul.f32 %v158, %v1249
    %v2175 = vmul.f32 %v159, %v1254
    %v2176 = vmul.f32 %v160, %v1259
    %v2177 = vmul.f32 %v161, %v1264
    %v2178 = vmul.f32 %v162, %v1269
    %v2179 = vmul.f32 %v163, %v1274
    %v2180 = vmul.f32 %v164, %v1279
    %v2181 = vmul.f32 %v165, %v1284
    %v2182 = vmul.f32 %v166, %v1289
    %v2183 = vmul.f32 %v167, %v1294
    %v2184 = vmul.f32 %v168, %v1299
    %v2185 = vmul.f32 %v169, %v1304
    %v2186 = vmul.f32 %v170, %v1309
    %v2187 = vmul.f32 %v171, %v1314
    %v2188 = vmul.f32 %v172, %v1319
    %v2189 = vmul.f32 %v173, %v1324
    %v2190 = vmul.f32 %v174, %v1329
    %v2191 = vmul.f32 %v175, %v1334
    %v2192 = vmul.f32 %v176, %v1339
    %v2193 = vmul.f32 %v177, %v1344
    %v2194 = vmul.f32 %v178, %v1349
    %v2195 = vmul.f32 %v179, %v1354
    %v2196 = vmul.f32 %v180, %v1359
    %v2197 = vmul.f32 %v181, %v1364
    %v2198 = vmul.f32 %v182, %v1369
    %v2199 = vmul.f32 %v183, %v1374
    %v2200 = vmul.f32 %v184, %v1379
    %v2201 = vmul.f32 %v185, %v1384
    %v2202 = vmul.f32 %v186, %v1389
    %v2203 = vmul.f32 %v187, %v1394
    %v2204 = vmul.f32 %v188, %v1399
    %v2205 = vmul.f32 %v189, %v1404
    %v2206 = vmul.f32 %v190, %v1409
    %v2207 = vmul.f32 %v191, %v1414
    %v2208 = vmul.f32 %v192, %v1419
    %v2209 = vmul.f32 %v193, %v1424
    %v2210 = vmul.f32 %v194, %v1429
    %v2211 = vmul.f32 %v195, %v1434
    %v2212 = vmul.f32 %v196, %v1439
    %v2213 = vmul.f32 %v197, %v1444
    %v2214 = vmul.f32 %v198, %v1449
    %v2215 = vmul.f32 %v199, %v1454
    %v2216 = vmul.f32 %v200, %v1459
    %v2217 = vmul.f32 %v201, %v1464
    %v2218 = vmul.f32 %v202, %v1469
    %v2219 = vmul.f32 %v203, %v1474
    %v2220 = vmul.f32 %v204, %v1479
    %v2221 = vmul.f32 %v205, %v1484
    %v2222 = vmul.f32 %v206, %v1489
    %v2223 = vmul.f32 %v207, %v1494
    %v2224 = vmul.f32 %v208, %v1499
    %v2225 = vmul.f32 %v209, %v1504
    %v2226 = vmul.f32 %v210, %v1509
    %v2227 = vmul.f32 %v211, %v1514
    %v2228 = vmul.f32 %v212, %v1519
    %v2229 = vmul.f32 %v213, %v1524
    %v2230 = vmul.f32 %v214, %v1529
    %v2231 = vmul.f32 %v215, %v1534
    %v2232 = vmul.f32 %v216, %v1539
    %v2233 = vmul.f32 %v217, %v1544
    %v2234 = vmul.f32 %v218, %v1549
    %v2235 = vmul.f32 %v219, %v1554
    %v2236 = vmul.f32 %v220, %v1559
    %v2237 = vmul.f32 %v221, %v1564
    %v2238 = vmul.f32 %v222, %v1569
    %v2239 = vmul.f32 %v223, %v1574
    %v2240 = vmul.f32 %v224, %v1579
    %v2241 = vmul.f32 %v225, %v1584
    %v2242 = vmul.f32 %v226, %v1589
    %v2243 = vmul.f32 %v227, %v1594
    %v2244 = vmul.f32 %v228, %v1599
    %v2245 = vmul.f32 %v229, %v1604
    %v2246 = vmul.f32 %v230, %v1609
    %v2247 = vmul.f32 %v231, %v1614
    %v2248 = vmul.f32 %v232, %v1619
    %v2249 = vmul.f32 %v233, %v1624
    %v2250 = vmul.f32 %v234, %v1629
    %v2251 = vmul.f32 %v235, %v1634
    %v2252 = vmul.f32 %v236, %v1639
    %v2253 = vmul.f32 %v237, %v1644
    %v2254 = vmul.f32 %v238, %v1649
    %v2255 = vmul.f32 %v239, %v1654
    %v2256 = vmul.f32 %v240, %v1659
    %v2257 = vmul.f32 %v241, %v1664
    %v2258 = vmul.f32 %v242, %v1669
    %v2259 = vmul.f32 %v243, %v1674
    %v2260 = vmul.f32 %v244, %v1679
    %v2261 = vmul.f32 %v245, %v1684
    %v2262 = vmul.f32 %v246, %v1689
    %v2263 = vmul.f32 %v247, %v1694
    %v2264 = vmul.f32 %v248, %v1699
    %v2265 = vmul.f32 %v249, %v1704
    %v2266 = vmul.f32 %v250, %v1709
    %v2267 = vmul.f32 %v251, %v1714
    %v2268 = vmul.f32 %v252, %v1719
    %v2269 = vmul.f32 %v253, %v1724
    %v2270 = vmul.f32 %v254, %v1729
    %v2271 = vmul.f32 %v255, %v1734
    %v2272 = vmul.f32 %v256, %v1739
    %v2273 = vmul.f32 %v257, %v1744
    %v2274 = vmul.f32 %v258, %v1749
    %v2275 = vmul.f32 %v259, %v1754
    %v2276 = vmul.f32 %v260, %v1759
    %v2277 = vmul.f32 %v261, %v1764
    %v2278 = vmul.f32 %v262, %v1769
    %v2279 = vmul.f32 %v263, %v1774
    %v2280 = vmul.f32 %v264, %v1779
    %v2281 = vmul.f32 %v265, %v1784
    %v2282 = vmul.f32 %v266, %v1789
    %v2283 = vmul.f32 %v267, %v1794
    %v2284 = vmul.f32 %v268, %v1799
    %v2285 = vmul.f32 %v269, %v1804
    %v2286 = vmul.f32 %v270, %v1809
    %v2287 = vmul.f32 %v271, %v1814
    %v2288 = vmul.f32 %v272, %v1819
    %v2289 = vmul.f32 %v273, %v1824
    %v2290 = vmul.f32 %v274, %v1829
    %v2291 = vmul.f32 %v275, %v1834
    %v2292 = vmul.f32 %v276, %v1839
    %v2293 = vmul.f32 %v277, %v1844
    %v2294 = vmul.f32 %v278, %v1849
    %v2295 = vmul.f32 %v279, %v1854
    %v2296 = vmul.f32 %v280, %v1859
    %v2297 = vmul.f32 %v281, %v1864
    %v2298 = vmul.f32 %v282, %v1869
    %v2299 = vmul.f32 %v283, %v1874
    %v2300 = vmul.f32 %v284, %v1879
    %v2301 = vmul.f32 %v285, %v1884
    %v2302 = vmul.f32 %v286, %v1889
    %v2303 = vmul.f32 %v287, %v1894
    %v2304 = vmul.f32 %v288, %v1899
    %v2305 = vmul.f32 %v289, %v1904
    %v2306 = vmul.f32 %v290, %v1909
    %v2307 = vmul.f32 %v291, %v1914
    %v2308 = vmul.f32 %v292, %v1919
    %v2309 = vmul.f32 %v293, %v1924
    %v2310 = vmul.f32 %v294, %v1929
    %v2311 = vmul.f32 %v295, %v1934
    %v2312 = vmul.f32 %v296, %v1939
    %v2313 = vmul.f32 %v297, %v1944
    %v2314 = vmul.f32 %v298, %v1949
    %v2315 = vmul.f32 %v299, %v1954
    %v2316 = vmul.f32 %v300, %v1959
    %v2317 = vmul.f32 %v301, %v1964
    %v2318 = vmul.f32 %v302, %v1969
    %v2319 = vmul.f32 %v303, %v1974
    %v2320 = vmul.f32 %v304, %v1979
    %v2321 = vmul.f32 %v305, %v1984
    %v2322 = vmul.f32 %v306, %v1989
    %v2323 = vmul.f32 %v307, %v1994
    %v2324 = vmul.f32 %v308, %v1999
    %v2325 = vmul.f32 %v309, %v2004
    %v2326 = vmul.f32 %v310, %v2009
    %v2327 = vmul.f32 %v311, %v2014
    %v2328 = vmul.f32 %v312, %v2019
    %v2329 = vmul.f32 %v313, %v2024
    %v2330 = vmul.f32 %v314, %v2029
    %v2331 = vmul.f32 %v315, %v2034
    %v2332 = vmul.f32 %v316, %v2039
    %v2333 = vmul.f32 %v317, %v2044
    %v2334 = vld [vmem:[#allocation2] sm:$0xff]
    %v2335 = vld [vmem:[#allocation2 + $0x8] sm:$0xff]
    %v2336 = vld [vmem:[#allocation2 + $0x10] sm:$0xff]
    %v2337 = vld [vmem:[#allocation2 + $0x18] sm:$0xff]
    %v2338 = vld [vmem:[#allocation2 + $0x20] sm:$0xff]
    %v2339 = vld [vmem:[#allocation2 + $0x28] sm:$0xff]
    %v2340 = vld [vmem:[#allocation2 + $0x30] sm:$0xff]
    %v2341 = vld [vmem:[#allocation2 + $0x38] sm:$0xff]
    %v2342 = vld [vmem:[#allocation2 + $0x40] sm:$0xff]
    %v2343 = vld [vmem:[#allocation2 + $0x48] sm:$0xff]
    %v2344 = vld [vmem:[#allocation2 + $0x50] sm:$0xff]
    %v2345 = vld [vmem:[#allocation2 + $0x58] sm:$0xff]
    %v2346 = vld [vmem:[#allocation2 + $0x60] sm:$0xff]
    %v2347 = vld [vmem:[#allocation2 + $0x68] sm:$0xff]
    %v2348 = vld [vmem:[#allocation2 + $0x70] sm:$0xff]
    %v2349 = vld [vmem:[#allocation2 + $0x78] sm:$0xff]
    %v2350 = vld [vmem:[#allocation2 + $0x80] sm:$0xff]
    %v2351 = vld [vmem:[#allocation2 + $0x88] sm:$0xff]
    %v2352 = vld [vmem:[#allocation2 + $0x90] sm:$0xff]
    %v2353 = vld [vmem:[#allocation2 + $0x98] sm:$0xff]
    %v2354 = vld [vmem:[#allocation2 + $0xa0] sm:$0xff]
    %v2355 = vld [vmem:[#allocation2 + $0xa8] sm:$0xff]
    %v2356 = vld [vmem:[#allocation2 + $0xb0] sm:$0xff]
    %v2357 = vld [vmem:[#allocation2 + $0xb8] sm:$0xff]
    %v2358 = vld [vmem:[#allocation2 + $0xc0] sm:$0xff]
    %v2359 = vld [vmem:[#allocation2 + $0xc8] sm:$0xff]
    %v2360 = vld [vmem:[#allocation2 + $0xd0] sm:$0xff]
    %v2361 = vld [vmem:[#allocation2 + $0xd8] sm:$0xff]
    %v2362 = vld [vmem:[#allocation2 + $0xe0] sm:$0xff]
    %v2363 = vld [vmem:[#allocation2 + $0xe8] sm:$0xff]
    %v2364 = vld [vmem:[#allocation2 + $0xf0] sm:$0xff]
    %v2365 = vld [vmem:[#allocation2 + $0xf8] sm:$0xff]
    %v2366 = vld [vmem:[#allocation2 + $0x100] sm:$0xff]
    %v2367 = vld [vmem:[#allocation2 + $0x108] sm:$0xff]
    %v2368 = vld [vmem:[#allocation2 + $0x110] sm:$0xff]
    %v2369 = vld [vmem:[#allocation2 + $0x118] sm:$0xff]
    %v2370 = vld [vmem:[#allocation2 + $0x120] sm:$0xff]
    %v2371 = vld [vmem:[#allocation2 + $0x128] sm:$0xff]
    %v2372 = vld [vmem:[#allocation2 + $0x130] sm:$0xff]
    %v2373 = vld [vmem:[#allocation2 + $0x138] sm:$0xff]
    %v2374 = vld [vmem:[#allocation2 + $0x140] sm:$0xff]
    %v2375 = vld [vmem:[#allocation2 + $0x148] sm:$0xff]
    %v2376 = vld [vmem:[#allocation2 + $0x150] sm:$0xff]
    %v2377 = vld [vmem:[#allocation2 + $0x158] sm:$0xff]
    %v2378 = vld [vmem:[#allocation2 + $0x160] sm:$0xff]
    %v2379 = vld [vmem:[#allocation2 + $0x168] sm:$0xff]
    %v2380 = vld [vmem:[#allocation2 + $0x170] sm:$0xff]
    %v2381 = vld [vmem:[#allocation2 + $0x178] sm:$0xff]
    %v2382 = vld [vmem:[#allocation2 + $0x180] sm:$0xff]
    %v2383 = vld [vmem:[#allocation2 + $0x188] sm:$0xff]
    %v2384 = vld [vmem:[#allocation2 + $0x190] sm:$0xff]
    %v2385 = vld [vmem:[#allocation2 + $0x198] sm:$0xff]
    %v2386 = vld [vmem:[#allocation2 + $0x1a0] sm:$0xff]
    %v2387 = vld [vmem:[#allocation2 + $0x1a8] sm:$0xff]
    %v2388 = vld [vmem:[#allocation2 + $0x1b0] sm:$0xff]
    %v2389 = vld [vmem:[#allocation2 + $0x1b8] sm:$0xff]
    %v2390 = vld [vmem:[#allocation2 + $0x1c0] sm:$0xff]
    %v2391 = vld [vmem:[#allocation2 + $0x1c8] sm:$0xff]
    %v2392 = vld [vmem:[#allocation2 + $0x1d0] sm:$0xff]
    %v2393 = vld [vmem:[#allocation2 + $0x1d8] sm:$0xff]
    %v2394 = vld [vmem:[#allocation2 + $0x1e0] sm:$0xff]
    %v2395 = vld [vmem:[#allocation2 + $0x1e8] sm:$0xff]
    %v2396 = vld [vmem:[#allocation2 + $0x1f0] sm:$0xff]
    %v2397 = vld [vmem:[#allocation2 + $0x1f8] sm:$0xff]
    %v2398 = vld [vmem:[#allocation2 + $0x200] sm:$0xff]
    %v2399 = vld [vmem:[#allocation2 + $0x208] sm:$0xff]
    %v2400 = vld [vmem:[#allocation2 + $0x210] sm:$0xff]
    %v2401 = vld [vmem:[#allocation2 + $0x218] sm:$0xff]
    %v2402 = vld [vmem:[#allocation2 + $0x220] sm:$0xff]
    %v2403 = vld [vmem:[#allocation2 + $0x228] sm:$0xff]
    %v2404 = vld [vmem:[#allocation2 + $0x230] sm:$0xff]
    %v2405 = vld [vmem:[#allocation2 + $0x238] sm:$0xff]
    %v2406 = vld [vmem:[#allocation2 + $0x240] sm:$0xff]
    %v2407 = vld [vmem:[#allocation2 + $0x248] sm:$0xff]
    %v2408 = vld [vmem:[#allocation2 + $0x250] sm:$0xff]
    %v2409 = vld [vmem:[#allocation2 + $0x258] sm:$0xff]
    %v2410 = vld [vmem:[#allocation2 + $0x260] sm:$0xff]
    %v2411 = vld [vmem:[#allocation2 + $0x268] sm:$0xff]
    %v2412 = vld [vmem:[#allocation2 + $0x270] sm:$0xff]
    %v2413 = vld [vmem:[#allocation2 + $0x278] sm:$0xff]
    %v2414 = vld [vmem:[#allocation2 + $0x280] sm:$0xff]
    %v2415 = vld [vmem:[#allocation2 + $0x288] sm:$0xff]
    %v2416 = vld [vmem:[#allocation2 + $0x290] sm:$0xff]
    %v2417 = vld [vmem:[#allocation2 + $0x298] sm:$0xff]
    %v2418 = vld [vmem:[#allocation2 + $0x2a0] sm:$0xff]
    %v2419 = vld [vmem:[#allocation2 + $0x2a8] sm:$0xff]
    %v2420 = vld [vmem:[#allocation2 + $0x2b0] sm:$0xff]
    %v2421 = vld [vmem:[#allocation2 + $0x2b8] sm:$0xff]
    %v2422 = vld [vmem:[#allocation2 + $0x2c0] sm:$0xff]
    %v2423 = vld [vmem:[#allocation2 + $0x2c8] sm:$0xff]
    %v2424 = vld [vmem:[#allocation2 + $0x2d0] sm:$0xff]
    %v2425 = vld [vmem:[#allocation2 + $0x2d8] sm:$0xff]
    %v2426 = vld [vmem:[#allocation2 + $0x2e0] sm:$0xff]
    %v2427 = vld [vmem:[#allocation2 + $0x2e8] sm:$0xff]
    %v2428 = vld [vmem:[#allocation2 + $0x2f0] sm:$0xff]
    %v2429 = vld [vmem:[#allocation2 + $0x2f8] sm:$0xff]
    %v2430 = vld [vmem:[#allocation2 + $0x300] sm:$0xff]
    %v2431 = vld [vmem:[#allocation2 + $0x308] sm:$0xff]
    %v2432 = vld [vmem:[#allocation2 + $0x310] sm:$0xff]
    %v2433 = vld [vmem:[#allocation2 + $0x318] sm:$0xff]
    %v2434 = vld [vmem:[#allocation2 + $0x320] sm:$0xff]
    %v2435 = vld [vmem:[#allocation2 + $0x328] sm:$0xff]
    %v2436 = vld [vmem:[#allocation2 + $0x330] sm:$0xff]
    %v2437 = vld [vmem:[#allocation2 + $0x338] sm:$0xff]
    %v2438 = vld [vmem:[#allocation2 + $0x340] sm:$0xff]
    %v2439 = vld [vmem:[#allocation2 + $0x348] sm:$0xff]
    %v2440 = vld [vmem:[#allocation2 + $0x350] sm:$0xff]
    %v2441 = vld [vmem:[#allocation2 + $0x358] sm:$0xff]
    %v2442 = vld [vmem:[#allocation2 + $0x360] sm:$0xff]
    %v2443 = vld [vmem:[#allocation2 + $0x368] sm:$0xff]
    %v2444 = vld [vmem:[#allocation2 + $0x370] sm:$0xff]
    %v2445 = vld [vmem:[#allocation2 + $0x378] sm:$0xff]
    %v2446 = vld [vmem:[#allocation2 + $0x380] sm:$0xff]
    %v2447 = vld [vmem:[#allocation2 + $0x388] sm:$0xff]
    %v2448 = vld [vmem:[#allocation2 + $0x390] sm:$0xff]
    %v2449 = vld [vmem:[#allocation2 + $0x398] sm:$0xff]
    %v2450 = vld [vmem:[#allocation2 + $0x3a0] sm:$0xff]
    %v2451 = vld [vmem:[#allocation2 + $0x3a8] sm:$0xff]
    %v2452 = vld [vmem:[#allocation2 + $0x3b0] sm:$0xff]
    %v2453 = vld [vmem:[#allocation2 + $0x3b8] sm:$0xff]
    %v2454 = vld [vmem:[#allocation2 + $0x3c0] sm:$0xff]
    %v2455 = vld [vmem:[#allocation2 + $0x3c8] sm:$0xff]
    %v2456 = vld [vmem:[#allocation2 + $0x3d0] sm:$0xff]
    %v2457 = vld [vmem:[#allocation2 + $0x3d8] sm:$0xff]
    %v2458 = vld [vmem:[#allocation2 + $0x3e0] sm:$0xff]
    %v2459 = vld [vmem:[#allocation2 + $0x3e8] sm:$0xff]
    %v2460 = vld [vmem:[#allocation2 + $0x3f0] sm:$0xff]
    %v2461 = vld [vmem:[#allocation2 + $0x3f8] sm:$0xff]
    %v2462 = vld [vmem:[#allocation2 + $0x400] sm:$0xff]
    %v2463 = vld [vmem:[#allocation2 + $0x408] sm:$0xff]
    %v2464 = vld [vmem:[#allocation2 + $0x410] sm:$0xff]
    %v2465 = vld [vmem:[#allocation2 + $0x418] sm:$0xff]
    %v2466 = vld [vmem:[#allocation2 + $0x420] sm:$0xff]
    %v2467 = vld [vmem:[#allocation2 + $0x428] sm:$0xff]
    %v2468 = vld [vmem:[#allocation2 + $0x430] sm:$0xff]
    %v2469 = vld [vmem:[#allocation2 + $0x438] sm:$0xff]
    %v2470 = vld [vmem:[#allocation2 + $0x440] sm:$0xff]
    %v2471 = vld [vmem:[#allocation2 + $0x448] sm:$0xff]
    %v2472 = vld [vmem:[#allocation2 + $0x450] sm:$0xff]
    %v2473 = vld [vmem:[#allocation2 + $0x458] sm:$0xff]
    %v2474 = vld [vmem:[#allocation2 + $0x460] sm:$0xff]
    %v2475 = vld [vmem:[#allocation2 + $0x468] sm:$0xff]
    %v2476 = vld [vmem:[#allocation2 + $0x470] sm:$0xff]
    %v2477 = vld [vmem:[#allocation2 + $0x478] sm:$0xff]
    %v2478 = vld [vmem:[#allocation2 + $0x480] sm:$0xff]
    %v2479 = vld [vmem:[#allocation2 + $0x488] sm:$0xff]
    %v2480 = vld [vmem:[#allocation2 + $0x490] sm:$0xff]
    %v2481 = vld [vmem:[#allocation2 + $0x498] sm:$0xff]
    %v2482 = vld [vmem:[#allocation2 + $0x4a0] sm:$0xff]
    %v2483 = vld [vmem:[#allocation2 + $0x4a8] sm:$0xff]
    %v2484 = vld [vmem:[#allocation2 + $0x4b0] sm:$0xff]
    %v2485 = vld [vmem:[#allocation2 + $0x4b8] sm:$0xff]
    %v2486 = vld [vmem:[#allocation2 + $0x4c0] sm:$0xff]
    %v2487 = vld [vmem:[#allocation2 + $0x4c8] sm:$0xff]
    %v2488 = vld [vmem:[#allocation2 + $0x4d0] sm:$0xff]
    %v2489 = vld [vmem:[#allocation2 + $0x4d8] sm:$0xff]
    %v2490 = vld [vmem:[#allocation2 + $0x4e0] sm:$0xff]
    %v2491 = vld [vmem:[#allocation2 + $0x4e8] sm:$0xff]
    %v2492 = vld [vmem:[#allocation2 + $0x4f0] sm:$0xff]
    %v2493 = vld [vmem:[#allocation2 + $0x4f8] sm:$0xff]
    %v2494 = vld [vmem:[#allocation2 + $0x500] sm:$0xff]
    %v2495 = vld [vmem:[#allocation2 + $0x508] sm:$0xff]
    %v2496 = vld [vmem:[#allocation2 + $0x510] sm:$0xff]
    %v2497 = vld [vmem:[#allocation2 + $0x518] sm:$0xff]
    %v2498 = vld [vmem:[#allocation2 + $0x520] sm:$0xff]
    %v2499 = vld [vmem:[#allocation2 + $0x528] sm:$0xff]
    %v2500 = vld [vmem:[#allocation2 + $0x530] sm:$0xff]
    %v2501 = vld [vmem:[#allocation2 + $0x538] sm:$0xff]
    %v2502 = vld [vmem:[#allocation2 + $0x540] sm:$0xff]
    %v2503 = vld [vmem:[#allocation2 + $0x548] sm:$0xff]
    %v2504 = vld [vmem:[#allocation2 + $0x550] sm:$0xff]
    %v2505 = vld [vmem:[#allocation2 + $0x558] sm:$0xff]
    %v2506 = vld [vmem:[#allocation2 + $0x560] sm:$0xff]
    %v2507 = vld [vmem:[#allocation2 + $0x568] sm:$0xff]
    %v2508 = vld [vmem:[#allocation2 + $0x570] sm:$0xff]
    %v2509 = vld [vmem:[#allocation2 + $0x578] sm:$0xff]
    %v2510 = vld [vmem:[#allocation2 + $0x580] sm:$0xff]
    %v2511 = vld [vmem:[#allocation2 + $0x588] sm:$0xff]
    %v2512 = vld [vmem:[#allocation2 + $0x590] sm:$0xff]
    %v2513 = vld [vmem:[#allocation2 + $0x598] sm:$0xff]
    %v2514 = vld [vmem:[#allocation2 + $0x5a0] sm:$0xff]
    %v2515 = vld [vmem:[#allocation2 + $0x5a8] sm:$0xff]
    %v2516 = vld [vmem:[#allocation2 + $0x5b0] sm:$0xff]
    %v2517 = vld [vmem:[#allocation2 + $0x5b8] sm:$0xff]
    %v2518 = vld [vmem:[#allocation2 + $0x5c0] sm:$0xff]
    %v2519 = vld [vmem:[#allocation2 + $0x5c8] sm:$0xff]
    %v2520 = vld [vmem:[#allocation2 + $0x5d0] sm:$0xff]
    %v2521 = vld [vmem:[#allocation2 + $0x5d8] sm:$0xff]
    %v2522 = vld [vmem:[#allocation2 + $0x5e0] sm:$0xff]
    %v2523 = vld [vmem:[#allocation2 + $0x5e8] sm:$0xff]
    %v2524 = vld [vmem:[#allocation2 + $0x5f0] sm:$0xff]
    %v2525 = vld [vmem:[#allocation2 + $0x5f8] sm:$0xff]
    %v2526 = vld [vmem:[#allocation2 + $0x600] sm:$0xff]
    %v2527 = vld [vmem:[#allocation2 + $0x608] sm:$0xff]
    %v2528 = vld [vmem:[#allocation2 + $0x610] sm:$0xff]
    %v2529 = vld [vmem:[#allocation2 + $0x618] sm:$0xff]
    %v2530 = vld [vmem:[#allocation2 + $0x620] sm:$0xff]
    %v2531 = vld [vmem:[#allocation2 + $0x628] sm:$0xff]
    %v2532 = vld [vmem:[#allocation2 + $0x630] sm:$0xff]
    %v2533 = vld [vmem:[#allocation2 + $0x638] sm:$0xff]
    %v2534 = vld [vmem:[#allocation2 + $0x640] sm:$0xff]
    %v2535 = vld [vmem:[#allocation2 + $0x648] sm:$0xff]
    %v2536 = vld [vmem:[#allocation2 + $0x650] sm:$0xff]
    %v2537 = vld [vmem:[#allocation2 + $0x658] sm:$0xff]
    %v2538 = vld [vmem:[#allocation2 + $0x660] sm:$0xff]
    %v2539 = vld [vmem:[#allocation2 + $0x668] sm:$0xff]
    %v2540 = vld [vmem:[#allocation2 + $0x670] sm:$0xff]
    %v2541 = vld [vmem:[#allocation2 + $0x678] sm:$0xff]
    %v2542 = vld [vmem:[#allocation2 + $0x680] sm:$0xff]
    %v2543 = vld [vmem:[#allocation2 + $0x688] sm:$0xff]
    %v2544 = vld [vmem:[#allocation2 + $0x690] sm:$0xff]
    %v2545 = vld [vmem:[#allocation2 + $0x698] sm:$0xff]
    %v2546 = vld [vmem:[#allocation2 + $0x6a0] sm:$0xff]
    %v2547 = vld [vmem:[#allocation2 + $0x6a8] sm:$0xff]
    %v2548 = vld [vmem:[#allocation2 + $0x6b0] sm:$0xff]
    %v2549 = vld [vmem:[#allocation2 + $0x6b8] sm:$0xff]
    %v2550 = vld [vmem:[#allocation2 + $0x6c0] sm:$0xff]
    %v2551 = vld [vmem:[#allocation2 + $0x6c8] sm:$0xff]
    %v2552 = vld [vmem:[#allocation2 + $0x6d0] sm:$0xff]
    %v2553 = vld [vmem:[#allocation2 + $0x6d8] sm:$0xff]
    %v2554 = vld [vmem:[#allocation2 + $0x6e0] sm:$0xff]
    %v2555 = vld [vmem:[#allocation2 + $0x6e8] sm:$0xff]
    %v2556 = vld [vmem:[#allocation2 + $0x6f0] sm:$0xff]
    %v2557 = vld [vmem:[#allocation2 + $0x6f8] sm:$0xff]
    %v2558 = vld [vmem:[#allocation2 + $0x700] sm:$0xff]
    %v2559 = vld [vmem:[#allocation2 + $0x708] sm:$0xff]
    %v2560 = vld [vmem:[#allocation2 + $0x710] sm:$0xff]
    %v2561 = vld [vmem:[#allocation2 + $0x718] sm:$0xff]
    %v2562 = vld [vmem:[#allocation2 + $0x720] sm:$0xff]
    %v2563 = vld [vmem:[#allocation2 + $0x728] sm:$0xff]
    %v2564 = vld [vmem:[#allocation2 + $0x730] sm:$0xff]
    %v2565 = vld [vmem:[#allocation2 + $0x738] sm:$0xff]
    %v2566 = vld [vmem:[#allocation2 + $0x740] sm:$0xff]
    %v2567 = vld [vmem:[#allocation2 + $0x748] sm:$0xff]
    %v2568 = vld [vmem:[#allocation2 + $0x750] sm:$0xff]
    %v2569 = vld [vmem:[#allocation2 + $0x758] sm:$0xff]
    %v2570 = vld [vmem:[#allocation2 + $0x760] sm:$0xff]
    %v2571 = vld [vmem:[#allocation2 + $0x768] sm:$0xff]
    %v2572 = vld [vmem:[#allocation2 + $0x770] sm:$0xff]
    %v2573 = vld [vmem:[#allocation2 + $0x778] sm:$0xff]
    %v2574 = vld [vmem:[#allocation2 + $0x780] sm:$0xff]
    %v2575 = vld [vmem:[#allocation2 + $0x788] sm:$0xff]
    %v2576 = vld [vmem:[#allocation2 + $0x790] sm:$0xff]
    %v2577 = vld [vmem:[#allocation2 + $0x798] sm:$0xff]
    %v2578 = vld [vmem:[#allocation2 + $0x7a0] sm:$0xff]
    %v2579 = vld [vmem:[#allocation2 + $0x7a8] sm:$0xff]
    %v2580 = vld [vmem:[#allocation2 + $0x7b0] sm:$0xff]
    %v2581 = vld [vmem:[#allocation2 + $0x7b8] sm:$0xff]
    %v2582 = vld [vmem:[#allocation2 + $0x7c0] sm:$0xff]
    %v2583 = vld [vmem:[#allocation2 + $0x7c8] sm:$0xff]
    %v2584 = vld [vmem:[#allocation2 + $0x7d0] sm:$0xff]
    %v2585 = vld [vmem:[#allocation2 + $0x7d8] sm:$0xff]
    %v2586 = vld [vmem:[#allocation2 + $0x7e0] sm:$0xff]
    %v2587 = vld [vmem:[#allocation2 + $0x7e8] sm:$0xff]
    %v2588 = vld [vmem:[#allocation2 + $0x7f0] sm:$0xff]
    %v2589 = vld [vmem:[#allocation2 + $0x7f8] sm:$0xff]
    %v2590 = vld [vmem:[#allocation2 + $0x800] sm:$0xff]
    %v2591 = vld [vmem:[#allocation2 + $0x808] sm:$0xff]
    %v2592 = vld [vmem:[#allocation2 + $0x810] sm:$0xff]
    %v2593 = vld [vmem:[#allocation2 + $0x818] sm:$0xff]
    %v2594 = vld [vmem:[#allocation2 + $0x820] sm:$0xff]
    %v2595 = vld [vmem:[#allocation2 + $0x828] sm:$0xff]
    %v2596 = vld [vmem:[#allocation2 + $0x830] sm:$0xff]
    %v2597 = vld [vmem:[#allocation2 + $0x838] sm:$0xff]
    %v2598 = vld [vmem:[#allocation2 + $0x840] sm:$0xff]
    %v2599 = vld [vmem:[#allocation2 + $0x848] sm:$0xff]
    %v2600 = vld [vmem:[#allocation2 + $0x850] sm:$0xff]
    %v2601 = vld [vmem:[#allocation2 + $0x858] sm:$0xff]
    %v2602 = vld [vmem:[#allocation2 + $0x860] sm:$0xff]
    %v2603 = vld [vmem:[#allocation2 + $0x868] sm:$0xff]
    %v2604 = vld [vmem:[#allocation2 + $0x870] sm:$0xff]
    %v2605 = vld [vmem:[#allocation2 + $0x878] sm:$0xff]
    %v2606 = vld [vmem:[#allocation2 + $0x880] sm:$0xff]
    %v2607 = vld [vmem:[#allocation2 + $0x888] sm:$0xff]
    %v2608 = vld [vmem:[#allocation2 + $0x890] sm:$0xff]
    %v2609 = vld [vmem:[#allocation2 + $0x898] sm:$0xff]
    %v2610 = vld [vmem:[#allocation2 + $0x8a0] sm:$0xff]
    %v2611 = vld [vmem:[#allocation2 + $0x8a8] sm:$0xff]
    %v2612 = vld [vmem:[#allocation2 + $0x8b0] sm:$0xff]
    %v2613 = vld [vmem:[#allocation2 + $0x8b8] sm:$0xff]
    %v2614 = vld [vmem:[#allocation2 + $0x8c0] sm:$0xff]
    %v2615 = vld [vmem:[#allocation2 + $0x8c8] sm:$0xff]
    %v2616 = vld [vmem:[#allocation2 + $0x8d0] sm:$0xff]
    %v2617 = vld [vmem:[#allocation2 + $0x8d8] sm:$0xff]
    %v2618 = vld [vmem:[#allocation2 + $0x8e0] sm:$0xff]
    %v2619 = vld [vmem:[#allocation2 + $0x8e8] sm:$0xff]
    %v2620 = vld [vmem:[#allocation2 + $0x8f0] sm:$0xff]
    %v2621 = vld [vmem:[#allocation2 + $0x8f8] sm:$0xff]
    %v2622 = vld [vmem:[#allocation2 + $0x900] sm:$0xff]
    %v2623 = vld [vmem:[#allocation2 + $0x908] sm:$0xff]
    %v2624 = vld [vmem:[#allocation2 + $0x910] sm:$0xff]
    %v2625 = vld [vmem:[#allocation2 + $0x918] sm:$0xff]
    %v2626 = vld [vmem:[#allocation2 + $0x920] sm:$0xff]
    %v2627 = vld [vmem:[#allocation2 + $0x928] sm:$0xff]
    %v2628 = vld [vmem:[#allocation2 + $0x930] sm:$0xff]
    %v2629 = vld [vmem:[#allocation2 + $0x938] sm:$0xff]
    %v2630 = vld [vmem:[#allocation2 + $0x940] sm:$0xff]
    %v2631 = vld [vmem:[#allocation2 + $0x948] sm:$0xff]
    %v2632 = vld [vmem:[#allocation2 + $0x950] sm:$0xff]
    %v2633 = vld [vmem:[#allocation2 + $0x958] sm:$0xff]
    %v2634 = vld [vmem:[#allocation2 + $0x960] sm:$0xff]
    %v2635 = vld [vmem:[#allocation2 + $0x968] sm:$0xff]
    %v2636 = vld [vmem:[#allocation2 + $0x970] sm:$0xff]
    %v2637 = vld [vmem:[#allocation2 + $0x978] sm:$0xff]
    %v2638 = vld [vmem:[#allocation2 + $0x980] sm:$0xff]
    %v2639 = vld [vmem:[#allocation2 + $0x988] sm:$0xff]
    %v2640 = vld [vmem:[#allocation2 + $0x990] sm:$0xff]
    %v2641 = vld [vmem:[#allocation2 + $0x998] sm:$0xff]
    %v2642 = vld [vmem:[#allocation2 + $0x9a0] sm:$0xff]
    %v2643 = vld [vmem:[#allocation2 + $0x9a8] sm:$0xff]
    %v2644 = vld [vmem:[#allocation2 + $0x9b0] sm:$0xff]
    %v2645 = vld [vmem:[#allocation2 + $0x9b8] sm:$0xff]
    %v2646 = vld [vmem:[#allocation2 + $0x9c0] sm:$0xff]
    %v2647 = vld [vmem:[#allocation2 + $0x9c8] sm:$0xff]
    %v2648 = vld [vmem:[#allocation2 + $0x9d0] sm:$0xff]
    %v2649 = vld [vmem:[#allocation2 + $0x9d8] sm:$0xff]
    %v2650 = vld [vmem:[#allocation2 + $0x9e0] sm:$0xff]
    %v2651 = vld [vmem:[#allocation2 + $0x9e8] sm:$0xff]
    %v2652 = vld [vmem:[#allocation2 + $0x9f0] sm:$0xff]
    %v2653 = vld [vmem:[#allocation2 + $0x9f8] sm:$0xff]
    %v2654 = vld [vmem:[#allocation2 + $0xa00] sm:$0xff]
    %v2655 = vld [vmem:[#allocation2 + $0xa08] sm:$0xff]
    %v2656 = vld [vmem:[#allocation2 + $0xa10] sm:$0xff]
    %v2657 = vld [vmem:[#allocation2 + $0xa18] sm:$0xff]
    %v2658 = vld [vmem:[#allocation2 + $0xa20] sm:$0xff]
    %v2659 = vld [vmem:[#allocation2 + $0xa28] sm:$0xff]
    %v2660 = vld [vmem:[#allocation2 + $0xa30] sm:$0xff]
    %v2661 = vld [vmem:[#allocation2 + $0xa38] sm:$0xff]
    %v2662 = vld [vmem:[#allocation2 + $0xa40] sm:$0xff]
    %v2663 = vld [vmem:[#allocation2 + $0xa48] sm:$0xff]
    %v2664 = vld [vmem:[#allocation2 + $0xa50] sm:$0xff]
    %v2665 = vld [vmem:[#allocation2 + $0xa58] sm:$0xff]
    %v2666 = vld [vmem:[#allocation2 + $0xa60] sm:$0xff]
    %v2667 = vld [vmem:[#allocation2 + $0xa68] sm:$0xff]
    %v2668 = vld [vmem:[#allocation2 + $0xa70] sm:$0xff]
    %v2669 = vld [vmem:[#allocation2 + $0xa78] sm:$0xff]
    %v2670 = vld [vmem:[#allocation2 + $0xa80] sm:$0xff]
    %v2671 = vld [vmem:[#allocation2 + $0xa88] sm:$0xff]
    %v2672 = vld [vmem:[#allocation2 + $0xa90] sm:$0xff]
    %v2673 = vld [vmem:[#allocation2 + $0xa98] sm:$0xff]
    %v2674 = vld [vmem:[#allocation2 + $0xaa0] sm:$0xff]
    %v2675 = vld [vmem:[#allocation2 + $0xaa8] sm:$0xff]
    %v2676 = vld [vmem:[#allocation2 + $0xab0] sm:$0xff]
    %v2677 = vld [vmem:[#allocation2 + $0xab8] sm:$0xff]
    %v2678 = vld [vmem:[#allocation2 + $0xac0] sm:$0xff]
    %v2679 = vld [vmem:[#allocation2 + $0xac8] sm:$0xff]
    %v2680 = vld [vmem:[#allocation2 + $0xad0] sm:$0xff]
    %v2681 = vld [vmem:[#allocation2 + $0xad8] sm:$0xff]
    %v2682 = vld [vmem:[#allocation2 + $0xae0] sm:$0xff]
    %v2683 = vld [vmem:[#allocation2 + $0xae8] sm:$0xff]
    %v2684 = vld [vmem:[#allocation2 + $0xaf0] sm:$0xff]
    %v2685 = vld [vmem:[#allocation2 + $0xaf8] sm:$0xff]
    %v2686 = vld [vmem:[#allocation2 + $0xb00] sm:$0xff]
    %v2687 = vld [vmem:[#allocation2 + $0xb08] sm:$0xff]
    %v2688 = vld [vmem:[#allocation2 + $0xb10] sm:$0xff]
    %v2689 = vld [vmem:[#allocation2 + $0xb18] sm:$0xff]
    %v2690 = vld [vmem:[#allocation2 + $0xb20] sm:$0xff]
    %v2691 = vld [vmem:[#allocation2 + $0xb28] sm:$0xff]
    %v2692 = vld [vmem:[#allocation2 + $0xb30] sm:$0xff]
    %v2693 = vld [vmem:[#allocation2 + $0xb38] sm:$0xff]
    %v2694 = vld [vmem:[#allocation2 + $0xb40] sm:$0xff]
    %v2695 = vld [vmem:[#allocation2 + $0xb48] sm:$0xff]
    %v2696 = vld [vmem:[#allocation2 + $0xb50] sm:$0xff]
    %v2697 = vld [vmem:[#allocation2 + $0xb58] sm:$0xff]
    %v2698 = vld [vmem:[#allocation2 + $0xb60] sm:$0xff]
    %v2699 = vld [vmem:[#allocation2 + $0xb68] sm:$0xff]
    %v2700 = vld [vmem:[#allocation2 + $0xb70] sm:$0xff]
    %v2701 = vld [vmem:[#allocation2 + $0xb78] sm:$0xff]
    %v2702 = vld [vmem:[#allocation2 + $0xb80] sm:$0xff]
    %v2703 = vld [vmem:[#allocation2 + $0xb88] sm:$0xff]
    %v2704 = vld [vmem:[#allocation2 + $0xb90] sm:$0xff]
    %v2705 = vld [vmem:[#allocation2 + $0xb98] sm:$0xff]
    %v2706 = vld [vmem:[#allocation2 + $0xba0] sm:$0xff]
    %v2707 = vld [vmem:[#allocation2 + $0xba8] sm:$0xff]
    %v2708 = vld [vmem:[#allocation2 + $0xbb0] sm:$0xff]
    %v2709 = vld [vmem:[#allocation2 + $0xbb8] sm:$0xff]
    %v2710 = vld [vmem:[#allocation2 + $0xbc0] sm:$0xff]
    %v2711 = vld [vmem:[#allocation2 + $0xbc8] sm:$0xff]
    %v2712 = vld [vmem:[#allocation2 + $0xbd0] sm:$0xff]
    %v2713 = vld [vmem:[#allocation2 + $0xbd8] sm:$0xff]
    %v2714 = vld [vmem:[#allocation2 + $0xbe0] sm:$0xff]
    %v2715 = vld [vmem:[#allocation2 + $0xbe8] sm:$0xff]
    %v2716 = vld [vmem:[#allocation2 + $0xbf0] sm:$0xff]
    %v2717 = vld [vmem:[#allocation2 + $0xbf8] sm:$0xff]
    %v2718 = vld [vmem:[#allocation2 + $0xc00] sm:$0xff]
    %v2719 = vld [vmem:[#allocation2 + $0xc08] sm:$0xff]
    %v2720 = vld [vmem:[#allocation2 + $0xc10] sm:$0xff]
    %v2721 = vld [vmem:[#allocation2 + $0xc18] sm:$0xff]
    %v2722 = vld [vmem:[#allocation2 + $0xc20] sm:$0xff]
    %v2723 = vld [vmem:[#allocation2 + $0xc28] sm:$0xff]
    %v2724 = vld [vmem:[#allocation2 + $0xc30] sm:$0xff]
    %v2725 = vld [vmem:[#allocation2 + $0xc38] sm:$0xff]
    %v2726 = vld [vmem:[#allocation2 + $0xc40] sm:$0xff]
    %v2727 = vld [vmem:[#allocation2 + $0xc48] sm:$0xff]
    %v2728 = vld [vmem:[#allocation2 + $0xc50] sm:$0xff]
    %v2729 = vld [vmem:[#allocation2 + $0xc58] sm:$0xff]
    %v2730 = vld [vmem:[#allocation2 + $0xc60] sm:$0xff]
    %v2731 = vld [vmem:[#allocation2 + $0xc68] sm:$0xff]
    %v2732 = vld [vmem:[#allocation2 + $0xc70] sm:$0xff]
    %v2733 = vld [vmem:[#allocation2 + $0xc78] sm:$0xff]
    %v2734 = vld [vmem:[#allocation2 + $0xc80] sm:$0xff]
    %v2735 = vld [vmem:[#allocation2 + $0xc88] sm:$0xff]
    %v2736 = vld [vmem:[#allocation2 + $0xc90] sm:$0xff]
    %v2737 = vld [vmem:[#allocation2 + $0xc98] sm:$0xff]
    %v2738 = vld [vmem:[#allocation2 + $0xca0] sm:$0xff]
    %v2739 = vld [vmem:[#allocation2 + $0xca8] sm:$0xff]
    %v2740 = vld [vmem:[#allocation2 + $0xcb0] sm:$0xff]
    %v2741 = vld [vmem:[#allocation2 + $0xcb8] sm:$0xff]
    %v2742 = vld [vmem:[#allocation2 + $0xcc0] sm:$0xff]
    %v2743 = vld [vmem:[#allocation2 + $0xcc8] sm:$0xff]
    %v2744 = vld [vmem:[#allocation2 + $0xcd0] sm:$0xff]
    %v2745 = vld [vmem:[#allocation2 + $0xcd8] sm:$0xff]
    %v2746 = vld [vmem:[#allocation2 + $0xce0] sm:$0xff]
    %v2747 = vld [vmem:[#allocation2 + $0xce8] sm:$0xff]
    %v2748 = vld [vmem:[#allocation2 + $0xcf0] sm:$0xff]
    %v2749 = vld [vmem:[#allocation2 + $0xcf8] sm:$0xff]
    %v2750 = vld [vmem:[#allocation2 + $0xd00] sm:$0xff]
    %v2751 = vld [vmem:[#allocation2 + $0xd08] sm:$0xff]
    %v2752 = vld [vmem:[#allocation2 + $0xd10] sm:$0xff]
    %v2753 = vld [vmem:[#allocation2 + $0xd18] sm:$0xff]
    %v2754 = vld [vmem:[#allocation2 + $0xd20] sm:$0xff]
    %v2755 = vld [vmem:[#allocation2 + $0xd28] sm:$0xff]
    %v2756 = vld [vmem:[#allocation2 + $0xd30] sm:$0xff]
    %v2757 = vld [vmem:[#allocation2 + $0xd38] sm:$0xff]
    %v2758 = vld [vmem:[#allocation2 + $0xd40] sm:$0xff]
    %v2759 = vld [vmem:[#allocation2 + $0xd48] sm:$0xff]
    %v2760 = vld [vmem:[#allocation2 + $0xd50] sm:$0xff]
    %v2761 = vld [vmem:[#allocation2 + $0xd58] sm:$0xff]
    %v2762 = vld [vmem:[#allocation2 + $0xd60] sm:$0xff]
    %v2763 = vld [vmem:[#allocation2 + $0xd68] sm:$0xff]
    %v2764 = vld [vmem:[#allocation2 + $0xd70] sm:$0xff]
    %v2765 = vld [vmem:[#allocation2 + $0xd78] sm:$0xff]
    %v2766 = vld [vmem:[#allocation2 + $0xd80] sm:$0xff]
    %v2767 = vld [vmem:[#allocation2 + $0xd88] sm:$0xff]
    %v2768 = vld [vmem:[#allocation2 + $0xd90] sm:$0xff]
    %v2769 = vld [vmem:[#allocation2 + $0xd98] sm:$0xff]
    %v2770 = vld [vmem:[#allocation2 + $0xda0] sm:$0xff]
    %v2771 = vld [vmem:[#allocation2 + $0xda8] sm:$0xff]
    %v2772 = vld [vmem:[#allocation2 + $0xdb0] sm:$0xff]
    %v2773 = vld [vmem:[#allocation2 + $0xdb8] sm:$0xff]
    %v2774 = vld [vmem:[#allocation2 + $0xdc0] sm:$0xff]
    %v2775 = vld [vmem:[#allocation2 + $0xdc8] sm:$0xff]
    %v2776 = vld [vmem:[#allocation2 + $0xdd0] sm:$0xff]
    %v2777 = vld [vmem:[#allocation2 + $0xdd8] sm:$0xff]
    %v2778 = vld [vmem:[#allocation2 + $0xde0] sm:$0xff]
    %v2779 = vld [vmem:[#allocation2 + $0xde8] sm:$0xff]
    %v2780 = vld [vmem:[#allocation2 + $0xdf0] sm:$0xff]
    %v2781 = vld [vmem:[#allocation2 + $0xdf8] sm:$0xff]
    %v2782 = vld [vmem:[#allocation2 + $0xe00] sm:$0xff]
    %v2783 = vld [vmem:[#allocation2 + $0xe08] sm:$0xff]
    %v2784 = vld [vmem:[#allocation2 + $0xe10] sm:$0xff]
    %v2785 = vld [vmem:[#allocation2 + $0xe18] sm:$0xff]
    %v2786 = vld [vmem:[#allocation2 + $0xe20] sm:$0xff]
    %v2787 = vld [vmem:[#allocation2 + $0xe28] sm:$0xff]
    %v2788 = vld [vmem:[#allocation2 + $0xe30] sm:$0xff]
    %v2789 = vld [vmem:[#allocation2 + $0xe38] sm:$0xff]
    %v2790 = vld [vmem:[#allocation2 + $0xe40] sm:$0xff]
    %v2791 = vld [vmem:[#allocation2 + $0xe48] sm:$0xff]
    %v2792 = vld [vmem:[#allocation2 + $0xe50] sm:$0xff]
    %v2793 = vld [vmem:[#allocation2 + $0xe58] sm:$0xff]
    %v2794 = vld [vmem:[#allocation2 + $0xe60] sm:$0xff]
    %v2795 = vld [vmem:[#allocation2 + $0xe68] sm:$0xff]
    %v2796 = vld [vmem:[#allocation2 + $0xe70] sm:$0xff]
    %v2797 = vld [vmem:[#allocation2 + $0xe78] sm:$0xff]
    %v2798 = vld [vmem:[#allocation2 + $0xe80] sm:$0xff]
    %v2799 = vld [vmem:[#allocation2 + $0xe88] sm:$0xff]
    %v2800 = vld [vmem:[#allocation2 + $0xe90] sm:$0xff]
    %v2801 = vld [vmem:[#allocation2 + $0xe98] sm:$0xff]
    %v2802 = vld [vmem:[#allocation2 + $0xea0] sm:$0xff]
    %v2803 = vld [vmem:[#allocation2 + $0xea8] sm:$0xff]
    %v2804 = vld [vmem:[#allocation2 + $0xeb0] sm:$0xff]
    %v2805 = vld [vmem:[#allocation2 + $0xeb8] sm:$0xff]
    %v2806 = vld [vmem:[#allocation2 + $0xec0] sm:$0xff]
    %v2807 = vld [vmem:[#allocation2 + $0xec8] sm:$0xff]
    %v2808 = vld [vmem:[#allocation2 + $0xed0] sm:$0xff]
    %v2809 = vld [vmem:[#allocation2 + $0xed8] sm:$0xff]
    %v2810 = vld [vmem:[#allocation2 + $0xee0] sm:$0xff]
    %v2811 = vld [vmem:[#allocation2 + $0xee8] sm:$0xff]
    %v2812 = vld [vmem:[#allocation2 + $0xef0] sm:$0xff]
    %v2813 = vld [vmem:[#allocation2 + $0xef8] sm:$0xff]
    %v2814 = vld [vmem:[#allocation2 + $0xf00] sm:$0xff]
    %v2815 = vld [vmem:[#allocation2 + $0xf08] sm:$0xff]
    %v2816 = vld [vmem:[#allocation2 + $0xf10] sm:$0xff]
    %v2817 = vld [vmem:[#allocation2 + $0xf18] sm:$0xff]
    %v2818 = vld [vmem:[#allocation2 + $0xf20] sm:$0xff]
    %v2819 = vld [vmem:[#allocation2 + $0xf28] sm:$0xff]
    %v2820 = vld [vmem:[#allocation2 + $0xf30] sm:$0xff]
    %v2821 = vld [vmem:[#allocation2 + $0xf38] sm:$0xff]
    %v2822 = vld [vmem:[#allocation2 + $0xf40] sm:$0xff]
    %v2823 = vld [vmem:[#allocation2 + $0xf48] sm:$0xff]
    %v2824 = vld [vmem:[#allocation2 + $0xf50] sm:$0xff]
    %v2825 = vld [vmem:[#allocation2 + $0xf58] sm:$0xff]
    %v2826 = vld [vmem:[#allocation2 + $0xf60] sm:$0xff]
    %v2827 = vld [vmem:[#allocation2 + $0xf68] sm:$0xff]
    %v2828 = vld [vmem:[#allocation2 + $0xf70] sm:$0xff]
    %v2829 = vld [vmem:[#allocation2 + $0xf78] sm:$0xff]
    %v2830 = vld [vmem:[#allocation2 + $0xf80] sm:$0xff]
    %v2831 = vld [vmem:[#allocation2 + $0xf88] sm:$0xff]
    %v2832 = vld [vmem:[#allocation2 + $0xf90] sm:$0xff]
    %v2833 = vld [vmem:[#allocation2 + $0xf98] sm:$0xff]
    %v2834 = vld [vmem:[#allocation2 + $0xfa0] sm:$0xff]
    %v2835 = vld [vmem:[#allocation2 + $0xfa8] sm:$0xff]
    %v2836 = vld [vmem:[#allocation2 + $0xfb0] sm:$0xff]
    %v2837 = vld [vmem:[#allocation2 + $0xfb8] sm:$0xff]
    %v2838 = vld [vmem:[#allocation2 + $0xfc0] sm:$0xff]
    %v2839 = vld [vmem:[#allocation2 + $0xfc8] sm:$0xff]
    %v2840 = vld [vmem:[#allocation2 + $0xfd0] sm:$0xff]
    %v2841 = vld [vmem:[#allocation2 + $0xfd8] sm:$0xff]
    %v2842 = vld [vmem:[#allocation2 + $0xfe0] sm:$0xff]
    %v2843 = vld [vmem:[#allocation2 + $0xfe8] sm:$0xff]
    %v2844 = vld [vmem:[#allocation2 + $0xff0] sm:$0xff]
    %v2845 = vld [vmem:[#allocation2 + $0xff8] sm:$0xff]
    %v2846 = vld [vmem:[#allocation2 + $0x1000] sm:$0xff]
    %v2847 = vld [vmem:[#allocation2 + $0x1008] sm:$0xff]
    %v2848 = vld [vmem:[#allocation2 + $0x1010] sm:$0xff]
    %v2849 = vld [vmem:[#allocation2 + $0x1018] sm:$0xff]
    %v2850 = vld [vmem:[#allocation2 + $0x1020] sm:$0xff]
    %v2851 = vld [vmem:[#allocation2 + $0x1028] sm:$0xff]
    %v2852 = vld [vmem:[#allocation2 + $0x1030] sm:$0xff]
    %v2853 = vld [vmem:[#allocation2 + $0x1038] sm:$0xff]
    %v2854 = vld [vmem:[#allocation2 + $0x1040] sm:$0xff]
    %v2855 = vld [vmem:[#allocation2 + $0x1048] sm:$0xff]
    %v2856 = vld [vmem:[#allocation2 + $0x1050] sm:$0xff]
    %v2857 = vld [vmem:[#allocation2 + $0x1058] sm:$0xff]
    %v2858 = vld [vmem:[#allocation2 + $0x1060] sm:$0xff]
    %v2859 = vld [vmem:[#allocation2 + $0x1068] sm:$0xff]
    %v2860 = vld [vmem:[#allocation2 + $0x1070] sm:$0xff]
    %v2861 = vld [vmem:[#allocation2 + $0x1078] sm:$0xff]
    %v2862 = vld [vmem:[#allocation2 + $0x1080] sm:$0xff]
    %v2863 = vld [vmem:[#allocation2 + $0x1088] sm:$0xff]
    %v2864 = vld [vmem:[#allocation2 + $0x1090] sm:$0xff]
    %v2865 = vld [vmem:[#allocation2 + $0x1098] sm:$0xff]
    %v2866 = vld [vmem:[#allocation2 + $0x10a0] sm:$0xff]
    %v2867 = vld [vmem:[#allocation2 + $0x10a8] sm:$0xff]
    %v2868 = vld [vmem:[#allocation2 + $0x10b0] sm:$0xff]
    %v2869 = vld [vmem:[#allocation2 + $0x10b8] sm:$0xff]
    %v2870 = vld [vmem:[#allocation2 + $0x10c0] sm:$0xff]
    %v2871 = vld [vmem:[#allocation2 + $0x10c8] sm:$0xff]
    %v2872 = vld [vmem:[#allocation2 + $0x10d0] sm:$0xff]
    %v2873 = vld [vmem:[#allocation2 + $0x10d8] sm:$0xff]
    %v2874 = vld [vmem:[#allocation2 + $0x10e0] sm:$0xff]
    %v2875 = vld [vmem:[#allocation2 + $0x10e8] sm:$0xff]
    %v2876 = vld [vmem:[#allocation2 + $0x10f0] sm:$0xff]
    %v2877 = vld [vmem:[#allocation2 + $0x10f8] sm:$0xff]
    %v2878 = vld [vmem:[#allocation2 + $0x1100] sm:$0xff]
    %v2879 = vld [vmem:[#allocation2 + $0x1108] sm:$0xff]
    %v2880 = vld [vmem:[#allocation2 + $0x1110] sm:$0xff]
    %v2881 = vld [vmem:[#allocation2 + $0x1118] sm:$0xff]
    %v2882 = vld [vmem:[#allocation2 + $0x1120] sm:$0xff]
    %v2883 = vld [vmem:[#allocation2 + $0x1128] sm:$0xff]
    %v2884 = vld [vmem:[#allocation2 + $0x1130] sm:$0xff]
    %v2885 = vld [vmem:[#allocation2 + $0x1138] sm:$0xff]
    %v2886 = vld [vmem:[#allocation2 + $0x1140] sm:$0xff]
    %v2887 = vld [vmem:[#allocation2 + $0x1148] sm:$0xff]
    %v2888 = vld [vmem:[#allocation2 + $0x1150] sm:$0xff]
    %v2889 = vld [vmem:[#allocation2 + $0x1158] sm:$0xff]
    %v2890 = vld [vmem:[#allocation2 + $0x1160] sm:$0xff]
    %v2891 = vld [vmem:[#allocation2 + $0x1168] sm:$0xff]
    %v2892 = vld [vmem:[#allocation2 + $0x1170] sm:$0xff]
    %v2893 = vld [vmem:[#allocation2 + $0x1178] sm:$0xff]
    %v2894 = vld [vmem:[#allocation2 + $0x1180] sm:$0xff]
    %v2895 = vld [vmem:[#allocation2 + $0x1188] sm:$0xff]
    %v2896 = vld [vmem:[#allocation2 + $0x1190] sm:$0xff]
    %v2897 = vld [vmem:[#allocation2 + $0x1198] sm:$0xff]
    %v2898 = vld [vmem:[#allocation2 + $0x11a0] sm:$0xff]
    %v2899 = vld [vmem:[#allocation2 + $0x11a8] sm:$0xff]
    %v2900 = vld [vmem:[#allocation2 + $0x11b0] sm:$0xff]
    %v2901 = vld [vmem:[#allocation2 + $0x11b8] sm:$0xff]
    %v2902 = vld [vmem:[#allocation2 + $0x11c0] sm:$0xff]
    %v2903 = vld [vmem:[#allocation2 + $0x11c8] sm:$0xff]
    %v2904 = vld [vmem:[#allocation2 + $0x11d0] sm:$0xff]
    %v2905 = vld [vmem:[#allocation2 + $0x11d8] sm:$0xff]
    %v2906 = vld [vmem:[#allocation2 + $0x11e0] sm:$0xff]
    %v2907 = vld [vmem:[#allocation2 + $0x11e8] sm:$0xff]
    %v2908 = vld [vmem:[#allocation2 + $0x11f0] sm:$0xff]
    %v2909 = vld [vmem:[#allocation2 + $0x11f8] sm:$0xff]
    %v2910 = vld [vmem:[#allocation2 + $0x1200] sm:$0xff]
    %v2911 = vld [vmem:[#allocation2 + $0x1208] sm:$0xff]
    %v2912 = vld [vmem:[#allocation2 + $0x1210] sm:$0xff]
    %v2913 = vld [vmem:[#allocation2 + $0x1218] sm:$0xff]
    %v2914 = vld [vmem:[#allocation2 + $0x1220] sm:$0xff]
    %v2915 = vld [vmem:[#allocation2 + $0x1228] sm:$0xff]
    %v2916 = vld [vmem:[#allocation2 + $0x1230] sm:$0xff]
    %v2917 = vld [vmem:[#allocation2 + $0x1238] sm:$0xff]
    %v2918 = vld [vmem:[#allocation2 + $0x1240] sm:$0xff]
    %v2919 = vld [vmem:[#allocation2 + $0x1248] sm:$0xff]
    %v2920 = vld [vmem:[#allocation2 + $0x1250] sm:$0xff]
    %v2921 = vld [vmem:[#allocation2 + $0x1258] sm:$0xff]
    %v2922 = vld [vmem:[#allocation2 + $0x1260] sm:$0xff]
    %v2923 = vld [vmem:[#allocation2 + $0x1268] sm:$0xff]
    %v2924 = vld [vmem:[#allocation2 + $0x1270] sm:$0xff]
    %v2925 = vld [vmem:[#allocation2 + $0x1278] sm:$0xff]
    %v2926 = vld [vmem:[#allocation2 + $0x1280] sm:$0xff]
    %v2927 = vld [vmem:[#allocation2 + $0x1288] sm:$0xff]
    %v2928 = vld [vmem:[#allocation2 + $0x1290] sm:$0xff]
    %v2929 = vld [vmem:[#allocation2 + $0x1298] sm:$0xff]
    %v2930 = vld [vmem:[#allocation2 + $0x12a0] sm:$0xff]
    %v2931 = vld [vmem:[#allocation2 + $0x12a8] sm:$0xff]
    %v2932 = vld [vmem:[#allocation2 + $0x12b0] sm:$0xff]
    %v2933 = vld [vmem:[#allocation2 + $0x12b8] sm:$0xff]
    %v2934 = vld [vmem:[#allocation2 + $0x12c0] sm:$0xff]
    %v2935 = vld [vmem:[#allocation2 + $0x12c8] sm:$0xff]
    %v2936 = vld [vmem:[#allocation2 + $0x12d0] sm:$0xff]
    %v2937 = vld [vmem:[#allocation2 + $0x12d8] sm:$0xff]
    %v2938 = vld [vmem:[#allocation2 + $0x12e0] sm:$0xff]
    %v2939 = vld [vmem:[#allocation2 + $0x12e8] sm:$0xff]
    %v2940 = vld [vmem:[#allocation2 + $0x12f0] sm:$0xff]
    %v2941 = vld [vmem:[#allocation2 + $0x12f8] sm:$0xff]
    %v2942 = vld [vmem:[#allocation2 + $0x1300] sm:$0xff]
    %v2943 = vld [vmem:[#allocation2 + $0x1308] sm:$0xff]
    %v2944 = vld [vmem:[#allocation2 + $0x1310] sm:$0xff]
    %v2945 = vld [vmem:[#allocation2 + $0x1318] sm:$0xff]
    %v2946 = vld [vmem:[#allocation2 + $0x1320] sm:$0xff]
    %v2947 = vld [vmem:[#allocation2 + $0x1328] sm:$0xff]
    %v2948 = vld [vmem:[#allocation2 + $0x1330] sm:$0xff]
    %v2949 = vld [vmem:[#allocation2 + $0x1338] sm:$0xff]
    %v2950 = vld [vmem:[#allocation2 + $0x1340] sm:$0xff]
    %v2951 = vld [vmem:[#allocation2 + $0x1348] sm:$0xff]
    %v2952 = vld [vmem:[#allocation2 + $0x1350] sm:$0xff]
    %v2953 = vld [vmem:[#allocation2 + $0x1358] sm:$0xff]
    %v2954 = vld [vmem:[#allocation2 + $0x1360] sm:$0xff]
    %v2955 = vld [vmem:[#allocation2 + $0x1368] sm:$0xff]
    %v2956 = vld [vmem:[#allocation2 + $0x1370] sm:$0xff]
    %v2957 = vld [vmem:[#allocation2 + $0x1378] sm:$0xff]
    %v2958 = vld [vmem:[#allocation2 + $0x1380] sm:$0xff]
    %v2959 = vld [vmem:[#allocation2 + $0x1388] sm:$0xff]
    %v2960 = vld [vmem:[#allocation2 + $0x1390] sm:$0xff]
    %v2961 = vld [vmem:[#allocation2 + $0x1398] sm:$0xff]
    %v2962 = vld [vmem:[#allocation2 + $0x13a0] sm:$0xff]
    %v2963 = vld [vmem:[#allocation2 + $0x13a8] sm:$0xff]
    %v2964 = vld [vmem:[#allocation2 + $0x13b0] sm:$0xff]
    %v2965 = vld [vmem:[#allocation2 + $0x13b8] sm:$0xff]
    %v2966 = vld [vmem:[#allocation2 + $0x13c0] sm:$0xff]
    %v2967 = vld [vmem:[#allocation2 + $0x13c8] sm:$0xff]
    %v2968 = vld [vmem:[#allocation2 + $0x13d0] sm:$0xff]
    %v2969 = vld [vmem:[#allocation2 + $0x13d8] sm:$0xff]
    %v2970 = vld [vmem:[#allocation2 + $0x13e0] sm:$0xff]
    %v2971 = vld [vmem:[#allocation2 + $0x13e8] sm:$0xff]
    %v2972 = vld [vmem:[#allocation2 + $0x13f0] sm:$0xff]
    %v2973 = vld [vmem:[#allocation2 + $0x13f8] sm:$0xff]
    %v2974 = vld [vmem:[#allocation2 + $0x1400] sm:$0xff]
    %v2975 = vld [vmem:[#allocation2 + $0x1408] sm:$0xff]
    %v2976 = vld [vmem:[#allocation2 + $0x1410] sm:$0xff]
    %v2977 = vld [vmem:[#allocation2 + $0x1418] sm:$0xff]
    %v2978 = vld [vmem:[#allocation2 + $0x1420] sm:$0xff]
    %v2979 = vld [vmem:[#allocation2 + $0x1428] sm:$0xff]
    %v2980 = vld [vmem:[#allocation2 + $0x1430] sm:$0xff]
    %v2981 = vld [vmem:[#allocation2 + $0x1438] sm:$0xff]
    %v2982 = vld [vmem:[#allocation2 + $0x1440] sm:$0xff]
    %v2983 = vld [vmem:[#allocation2 + $0x1448] sm:$0xff]
    %v2984 = vld [vmem:[#allocation2 + $0x1450] sm:$0xff]
    %v2985 = vld [vmem:[#allocation2 + $0x1458] sm:$0xff]
    %v2986 = vld [vmem:[#allocation2 + $0x1460] sm:$0xff]
    %v2987 = vld [vmem:[#allocation2 + $0x1468] sm:$0xff]
    %v2988 = vld [vmem:[#allocation2 + $0x1470] sm:$0xff]
    %v2989 = vld [vmem:[#allocation2 + $0x1478] sm:$0xff]
    %v2990 = vld [vmem:[#allocation2 + $0x1480] sm:$0xff]
    %v2991 = vld [vmem:[#allocation2 + $0x1488] sm:$0xff]
    %v2992 = vld [vmem:[#allocation2 + $0x1490] sm:$0xff]
    %v2993 = vld [vmem:[#allocation2 + $0x1498] sm:$0xff]
    %v2994 = vld [vmem:[#allocation2 + $0x14a0] sm:$0xff]
    %v2995 = vld [vmem:[#allocation2 + $0x14a8] sm:$0xff]
    %v2996 = vld [vmem:[#allocation2 + $0x14b0] sm:$0xff]
    %v2997 = vld [vmem:[#allocation2 + $0x14b8] sm:$0xff]
    %v2998 = vld [vmem:[#allocation2 + $0x14c0] sm:$0xff]
    %v2999 = vld [vmem:[#allocation2 + $0x14c8] sm:$0xff]
    %v3000 = vld [vmem:[#allocation2 + $0x14d0] sm:$0xff]
    %v3001 = vld [vmem:[#allocation2 + $0x14d8] sm:$0xff]
    %v3002 = vld [vmem:[#allocation2 + $0x14e0] sm:$0xff]
    %v3003 = vld [vmem:[#allocation2 + $0x14e8] sm:$0xff]
    %v3004 = vld [vmem:[#allocation2 + $0x14f0] sm:$0xff]
    %v3005 = vld [vmem:[#allocation2 + $0x14f8] sm:$0xff]
    %v3006 = vld [vmem:[#allocation2 + $0x1500] sm:$0xff]
    %v3007 = vld [vmem:[#allocation2 + $0x1508] sm:$0xff]
    %v3008 = vld [vmem:[#allocation2 + $0x1510] sm:$0xff]
    %v3009 = vld [vmem:[#allocation2 + $0x1518] sm:$0xff]
    %v3010 = vld [vmem:[#allocation2 + $0x1520] sm:$0xff]
    %v3011 = vld [vmem:[#allocation2 + $0x1528] sm:$0xff]
    %v3012 = vld [vmem:[#allocation2 + $0x1530] sm:$0xff]
    %v3013 = vld [vmem:[#allocation2 + $0x1538] sm:$0xff]
    %v3014 = vld [vmem:[#allocation2 + $0x1540] sm:$0xff]
    %v3015 = vld [vmem:[#allocation2 + $0x1548] sm:$0xff]
    %v3016 = vld [vmem:[#allocation2 + $0x1550] sm:$0xff]
    %v3017 = vld [vmem:[#allocation2 + $0x1558] sm:$0xff]
    %v3018 = vld [vmem:[#allocation2 + $0x1560] sm:$0xff]
    %v3019 = vld [vmem:[#allocation2 + $0x1568] sm:$0xff]
    %v3020 = vld [vmem:[#allocation2 + $0x1570] sm:$0xff]
    %v3021 = vld [vmem:[#allocation2 + $0x1578] sm:$0xff]
    %v3022 = vld [vmem:[#allocation2 + $0x1580] sm:$0xff]
    %v3023 = vld [vmem:[#allocation2 + $0x1588] sm:$0xff]
    %v3024 = vld [vmem:[#allocation2 + $0x1590] sm:$0xff]
    %v3025 = vld [vmem:[#allocation2 + $0x1598] sm:$0xff]
    %v3026 = vld [vmem:[#allocation2 + $0x15a0] sm:$0xff]
    %v3027 = vld [vmem:[#allocation2 + $0x15a8] sm:$0xff]
    %v3028 = vld [vmem:[#allocation2 + $0x15b0] sm:$0xff]
    %v3029 = vld [vmem:[#allocation2 + $0x15b8] sm:$0xff]
    %v3030 = vld [vmem:[#allocation2 + $0x15c0] sm:$0xff]
    %v3031 = vld [vmem:[#allocation2 + $0x15c8] sm:$0xff]
    %v3032 = vld [vmem:[#allocation2 + $0x15d0] sm:$0xff]
    %v3033 = vld [vmem:[#allocation2 + $0x15d8] sm:$0xff]
    %v3034 = vld [vmem:[#allocation2 + $0x15e0] sm:$0xff]
    %v3035 = vld [vmem:[#allocation2 + $0x15e8] sm:$0xff]
    %v3036 = vld [vmem:[#allocation2 + $0x15f0] sm:$0xff]
    %v3037 = vld [vmem:[#allocation2 + $0x15f8] sm:$0xff]
    %v3038 = vld [vmem:[#allocation2 + $0x1600] sm:$0xff]
    %v3039 = vld [vmem:[#allocation2 + $0x1608] sm:$0xff]
    %v3040 = vld [vmem:[#allocation2 + $0x1610] sm:$0xff]
    %v3041 = vld [vmem:[#allocation2 + $0x1618] sm:$0xff]
    %v3042 = vld [vmem:[#allocation2 + $0x1620] sm:$0xff]
    %v3043 = vld [vmem:[#allocation2 + $0x1628] sm:$0xff]
    %v3044 = vld [vmem:[#allocation2 + $0x1630] sm:$0xff]
    %v3045 = vld [vmem:[#allocation2 + $0x1638] sm:$0xff]
    %v3046 = vld [vmem:[#allocation2 + $0x1640] sm:$0xff]
    %v3047 = vld [vmem:[#allocation2 + $0x1648] sm:$0xff]
    %v3048 = vld [vmem:[#allocation2 + $0x1650] sm:$0xff]
    %v3049 = vld [vmem:[#allocation2 + $0x1658] sm:$0xff]
    %v3050 = vld [vmem:[#allocation2 + $0x1660] sm:$0xff]
    %v3051 = vld [vmem:[#allocation2 + $0x1668] sm:$0xff]
    %v3052 = vld [vmem:[#allocation2 + $0x1670] sm:$0xff]
    %v3053 = vld [vmem:[#allocation2 + $0x1678] sm:$0xff]
    %v3054 = vld [vmem:[#allocation2 + $0x1680] sm:$0xff]
    %v3055 = vld [vmem:[#allocation2 + $0x1688] sm:$0xff]
    %v3056 = vld [vmem:[#allocation2 + $0x1690] sm:$0xff]
    %v3057 = vld [vmem:[#allocation2 + $0x1698] sm:$0xff]
    %v3058 = vld [vmem:[#allocation2 + $0x16a0] sm:$0xff]
    %v3059 = vld [vmem:[#allocation2 + $0x16a8] sm:$0xff]
    %v3060 = vld [vmem:[#allocation2 + $0x16b0] sm:$0xff]
    %v3061 = vld [vmem:[#allocation2 + $0x16b8] sm:$0xff]
    %v3062 = vld [vmem:[#allocation2 + $0x16c0] sm:$0xff]
    %v3063 = vld [vmem:[#allocation2 + $0x16c8] sm:$0xff]
    %v3064 = vld [vmem:[#allocation2 + $0x16d0] sm:$0xff]
    %v3065 = vld [vmem:[#allocation2 + $0x16d8] sm:$0xff]
    %v3066 = vld [vmem:[#allocation2 + $0x16e0] sm:$0xff]
    %v3067 = vld [vmem:[#allocation2 + $0x16e8] sm:$0xff]
    %v3068 = vld [vmem:[#allocation2 + $0x16f0] sm:$0xff]
    %v3069 = vld [vmem:[#allocation2 + $0x16f8] sm:$0xff]
    %v3070 = vld [vmem:[#allocation2 + $0x1700] sm:$0xff]
    %v3071 = vld [vmem:[#allocation2 + $0x1708] sm:$0xff]
    %v3072 = vld [vmem:[#allocation2 + $0x1710] sm:$0xff]
    %v3073 = vld [vmem:[#allocation2 + $0x1718] sm:$0xff]
    %v3074 = vld [vmem:[#allocation2 + $0x1720] sm:$0xff]
    %v3075 = vld [vmem:[#allocation2 + $0x1728] sm:$0xff]
    %v3076 = vld [vmem:[#allocation2 + $0x1730] sm:$0xff]
    %v3077 = vld [vmem:[#allocation2 + $0x1738] sm:$0xff]
    %v3078 = vld [vmem:[#allocation2 + $0x1740] sm:$0xff]
    %v3079 = vld [vmem:[#allocation2 + $0x1748] sm:$0xff]
    %v3080 = vld [vmem:[#allocation2 + $0x1750] sm:$0xff]
    %v3081 = vld [vmem:[#allocation2 + $0x1758] sm:$0xff]
    %v3082 = vld [vmem:[#allocation2 + $0x1760] sm:$0xff]
    %v3083 = vld [vmem:[#allocation2 + $0x1768] sm:$0xff]
    %v3084 = vld [vmem:[#allocation2 + $0x1770] sm:$0xff]
    %v3085 = vld [vmem:[#allocation2 + $0x1778] sm:$0xff]
    %v3086 = vld [vmem:[#allocation2 + $0x1780] sm:$0xff]
    %v3087 = vld [vmem:[#allocation2 + $0x1788] sm:$0xff]
    %v3088 = vld [vmem:[#allocation2 + $0x1790] sm:$0xff]
    %v3089 = vld [vmem:[#allocation2 + $0x1798] sm:$0xff]
    %v3090 = vld [vmem:[#allocation2 + $0x17a0] sm:$0xff]
    %v3091 = vld [vmem:[#allocation2 + $0x17a8] sm:$0xff]
    %v3092 = vld [vmem:[#allocation2 + $0x17b0] sm:$0xff]
    %v3093 = vld [vmem:[#allocation2 + $0x17b8] sm:$0xff]
    %v3094 = vld [vmem:[#allocation2 + $0x17c0] sm:$0xff]
    %v3095 = vld [vmem:[#allocation2 + $0x17c8] sm:$0xff]
    %v3096 = vld [vmem:[#allocation2 + $0x17d0] sm:$0xff]
    %v3097 = vld [vmem:[#allocation2 + $0x17d8] sm:$0xff]
    %v3098 = vld [vmem:[#allocation2 + $0x17e0] sm:$0xff]
    %v3099 = vld [vmem:[#allocation2 + $0x17e8] sm:$0xff]
    %v3100 = vld [vmem:[#allocation2 + $0x17f0] sm:$0xff]
    %v3101 = vld [vmem:[#allocation2 + $0x17f8] sm:$0xff]
    %v3102 = vld [vmem:[#allocation2 + $0x1800] sm:$0xff]
    %v3103 = vld [vmem:[#allocation2 + $0x1808] sm:$0xff]
    %v3104 = vld [vmem:[#allocation2 + $0x1810] sm:$0xff]
    %v3105 = vld [vmem:[#allocation2 + $0x1818] sm:$0xff]
    %v3106 = vld [vmem:[#allocation2 + $0x1820] sm:$0xff]
    %v3107 = vld [vmem:[#allocation2 + $0x1828] sm:$0xff]
    %v3108 = vld [vmem:[#allocation2 + $0x1830] sm:$0xff]
    %v3109 = vld [vmem:[#allocation2 + $0x1838] sm:$0xff]
    %v3110 = vld [vmem:[#allocation2 + $0x1840] sm:$0xff]
    %v3111 = vld [vmem:[#allocation2 + $0x1848] sm:$0xff]
    %v3112 = vld [vmem:[#allocation2 + $0x1850] sm:$0xff]
    %v3113 = vld [vmem:[#allocation2 + $0x1858] sm:$0xff]
    %v3114 = vld [vmem:[#allocation2 + $0x1860] sm:$0xff]
    %v3115 = vld [vmem:[#allocation2 + $0x1868] sm:$0xff]
    %v3116 = vld [vmem:[#allocation2 + $0x1870] sm:$0xff]
    %v3117 = vld [vmem:[#allocation2 + $0x1878] sm:$0xff]
    %v3118 = vld [vmem:[#allocation2 + $0x1880] sm:$0xff]
    %v3119 = vld [vmem:[#allocation2 + $0x1888] sm:$0xff]
    %v3120 = vld [vmem:[#allocation2 + $0x1890] sm:$0xff]
    %v3121 = vld [vmem:[#allocation2 + $0x1898] sm:$0xff]
    %v3122 = vld [vmem:[#allocation2 + $0x18a0] sm:$0xff]
    %v3123 = vld [vmem:[#allocation2 + $0x18a8] sm:$0xff]
    %v3124 = vld [vmem:[#allocation2 + $0x18b0] sm:$0xff]
    %v3125 = vld [vmem:[#allocation2 + $0x18b8] sm:$0xff]
    %v3126 = vld [vmem:[#allocation2 + $0x18c0] sm:$0xff]
    %v3127 = vld [vmem:[#allocation2 + $0x18c8] sm:$0xff]
    %v3128 = vld [vmem:[#allocation2 + $0x18d0] sm:$0xff]
    %v3129 = vld [vmem:[#allocation2 + $0x18d8] sm:$0xff]
    %v3130 = vld [vmem:[#allocation2 + $0x18e0] sm:$0xff]
    %v3131 = vld [vmem:[#allocation2 + $0x18e8] sm:$0xff]
    %v3132 = vld [vmem:[#allocation2 + $0x18f0] sm:$0xff]
    %v3133 = vld [vmem:[#allocation2 + $0x18f8] sm:$0xff]
    %v3134 = vld [vmem:[#allocation2 + $0x1900] sm:$0xff]
    %v3135 = vld [vmem:[#allocation2 + $0x1908] sm:$0xff]
    %v3136 = vld [vmem:[#allocation2 + $0x1910] sm:$0xff]
    %v3137 = vld [vmem:[#allocation2 + $0x1918] sm:$0xff]
    %v3138 = vld [vmem:[#allocation2 + $0x1920] sm:$0xff]
    %v3139 = vld [vmem:[#allocation2 + $0x1928] sm:$0xff]
    %v3140 = vld [vmem:[#allocation2 + $0x1930] sm:$0xff]
    %v3141 = vld [vmem:[#allocation2 + $0x1938] sm:$0xff]
    %v3142 = vld [vmem:[#allocation2 + $0x1940] sm:$0xff]
    %v3143 = vld [vmem:[#allocation2 + $0x1948] sm:$0xff]
    %v3144 = vld [vmem:[#allocation2 + $0x1950] sm:$0xff]
    %v3145 = vld [vmem:[#allocation2 + $0x1958] sm:$0xff]
    %v3146 = vld [vmem:[#allocation2 + $0x1960] sm:$0xff]
    %v3147 = vld [vmem:[#allocation2 + $0x1968] sm:$0xff]
    %v3148 = vld [vmem:[#allocation2 + $0x1970] sm:$0xff]
    %v3149 = vld [vmem:[#allocation2 + $0x1978] sm:$0xff]
    %v3150 = vld [vmem:[#allocation2 + $0x1980] sm:$0xff]
    %v3151 = vld [vmem:[#allocation2 + $0x1988] sm:$0xff]
    %v3152 = vld [vmem:[#allocation2 + $0x1990] sm:$0xff]
    %v3153 = vld [vmem:[#allocation2 + $0x1998] sm:$0xff]
    %v3154 = vld [vmem:[#allocation2 + $0x19a0] sm:$0xff]
    %v3155 = vld [vmem:[#allocation2 + $0x19a8] sm:$0xff]
    %v3156 = vld [vmem:[#allocation2 + $0x19b0] sm:$0xff]
    %v3157 = vld [vmem:[#allocation2 + $0x19b8] sm:$0xff]
    %v3158 = vld [vmem:[#allocation2 + $0x19c0] sm:$0xff]
    %v3159 = vld [vmem:[#allocation2 + $0x19c8] sm:$0xff]
    %v3160 = vld [vmem:[#allocation2 + $0x19d0] sm:$0xff]
    %v3161 = vld [vmem:[#allocation2 + $0x19d8] sm:$0xff]
    %v3162 = vld [vmem:[#allocation2 + $0x19e0] sm:$0xff]
    %v3163 = vld [vmem:[#allocation2 + $0x19e8] sm:$0xff]
    %v3164 = vld [vmem:[#allocation2 + $0x19f0] sm:$0xff]
    %v3165 = vld [vmem:[#allocation2 + $0x19f8] sm:$0xff]
    %v3166 = vld [vmem:[#allocation2 + $0x1a00] sm:$0xff]
    %v3167 = vld [vmem:[#allocation2 + $0x1a08] sm:$0xff]
    %v3168 = vld [vmem:[#allocation2 + $0x1a10] sm:$0xff]
    %v3169 = vld [vmem:[#allocation2 + $0x1a18] sm:$0xff]
    %v3170 = vld [vmem:[#allocation2 + $0x1a20] sm:$0xff]
    %v3171 = vld [vmem:[#allocation2 + $0x1a28] sm:$0xff]
    %v3172 = vld [vmem:[#allocation2 + $0x1a30] sm:$0xff]
    %v3173 = vld [vmem:[#allocation2 + $0x1a38] sm:$0xff]
    %v3174 = vld [vmem:[#allocation2 + $0x1a40] sm:$0xff]
    %v3175 = vld [vmem:[#allocation2 + $0x1a48] sm:$0xff]
    %v3176 = vld [vmem:[#allocation2 + $0x1a50] sm:$0xff]
    %v3177 = vld [vmem:[#allocation2 + $0x1a58] sm:$0xff]
    %v3178 = vld [vmem:[#allocation2 + $0x1a60] sm:$0xff]
    %v3179 = vld [vmem:[#allocation2 + $0x1a68] sm:$0xff]
    %v3180 = vld [vmem:[#allocation2 + $0x1a70] sm:$0xff]
    %v3181 = vld [vmem:[#allocation2 + $0x1a78] sm:$0xff]
    %v3182 = vld [vmem:[#allocation2 + $0x1a80] sm:$0xff]
    %v3183 = vld [vmem:[#allocation2 + $0x1a88] sm:$0xff]
    %v3184 = vld [vmem:[#allocation2 + $0x1a90] sm:$0xff]
    %v3185 = vld [vmem:[#allocation2 + $0x1a98] sm:$0xff]
    %v3186 = vld [vmem:[#allocation2 + $0x1aa0] sm:$0xff]
    %v3187 = vld [vmem:[#allocation2 + $0x1aa8] sm:$0xff]
    %v3188 = vld [vmem:[#allocation2 + $0x1ab0] sm:$0xff]
    %v3189 = vld [vmem:[#allocation2 + $0x1ab8] sm:$0xff]
    %v3190 = vld [vmem:[#allocation2 + $0x1ac0] sm:$0xff]
    %v3191 = vld [vmem:[#allocation2 + $0x1ac8] sm:$0xff]
    %v3192 = vld [vmem:[#allocation2 + $0x1ad0] sm:$0xff]
    %v3193 = vld [vmem:[#allocation2 + $0x1ad8] sm:$0xff]
    %v3194 = vld [vmem:[#allocation2 + $0x1ae0] sm:$0xff]
    %v3195 = vld [vmem:[#allocation2 + $0x1ae8] sm:$0xff]
    %v3196 = vld [vmem:[#allocation2 + $0x1af0] sm:$0xff]
    %v3197 = vld [vmem:[#allocation2 + $0x1af8] sm:$0xff]
    %3198 = vmatpush.msra.mxu0 %v2061
    %3199 = vmatpush.msra.mxu0 %v2060
    %3200 = vmatpush.msra.mxu0 %v2059
    %3201 = vmatpush.msra.mxu0 %v2058
    %3202 = vmatpush.msra.mxu0 %v2057
    %3203 = vmatpush.msra.mxu0 %v2056
    %3204 = vmatpush.msra.mxu0 %v2055
    %3205 = vmatpush.msra.mxu0 %v2054
    %3206 = vmatpush.msra.mxu0 %v2053
    %3207 = vmatpush.msra.mxu0 %v2052
    %3208 = vmatpush.msra.mxu0 %v2051
    %3209 = vmatpush.msra.mxu0 %v2050
    %3210 = vmatpush.msra.mxu0 %v2049
    %3211 = vmatpush.msra.mxu0 %v2048
    %3212 = vmatpush.msra.mxu0 %v2047
    %3213 = vmatpush.msra.mxu0 %v2046
    %3214 = vmatmul.f32.gmra.mxu0 %v2334
    %v3215 = vpop.f32.mrf.mxu0
    %v3216 = vadd.f32 0.0, %v3215
    %3217 = vmatmul.f32.gmra.mxu0 %v2352
    %v3218 = vpop.f32.mrf.mxu0
    %v3219 = vadd.f32 0.0, %v3218
    %3220 = vmatmul.f32.gmra.mxu0 %v2370
    %v3221 = vpop.f32.mrf.mxu0
    %v3222 = vadd.f32 0.0, %v3221
    %3223 = vmatmul.f32.gmra.mxu0 %v2388
    %v3224 = vpop.f32.mrf.mxu0
    %v3225 = vadd.f32 0.0, %v3224
    %3226 = vmatmul.f32.gmra.mxu0 %v2406
    %v3227 = vpop.f32.mrf.mxu0
    %v3228 = vadd.f32 0.0, %v3227
    %3229 = vmatmul.f32.gmra.mxu0 %v2424
    %v3230 = vpop.f32.mrf.mxu0
    %v3231 = vadd.f32 0.0, %v3230
    %3232 = vmatmul.f32.gmra.mxu0 %v2442
    %v3233 = vpop.f32.mrf.mxu0
    %v3234 = vadd.f32 0.0, %v3233
    %3235 = vmatmul.f32.gmra.mxu0 %v2460
    %v3236 = vpop.f32.mrf.mxu0
    %v3237 = vadd.f32 0.0, %v3236
    %3238 = vmatmul.f32.gmra.mxu0 %v2478
    %v3239 = vpop.f32.mrf.mxu0
    %v3240 = vadd.f32 0.0, %v3239
    %3241 = vmatmul.f32.gmra.mxu0 %v2496
    %v3242 = vpop.f32.mrf.mxu0
    %v3243 = vadd.f32 0.0, %v3242
    %3244 = vmatmul.f32.gmra.mxu0 %v2514
    %v3245 = vpop.f32.mrf.mxu0
    %v3246 = vadd.f32 0.0, %v3245
    %3247 = vmatmul.f32.gmra.mxu0 %v2532
    %v3248 = vpop.f32.mrf.mxu0
    %v3249 = vadd.f32 0.0, %v3248
    %3250 = vmatmul.f32.gmra.mxu0 %v2550
    %v3251 = vpop.f32.mrf.mxu0
    %v3252 = vadd.f32 0.0, %v3251
    %3253 = vmatmul.f32.gmra.mxu0 %v2568
    %v3254 = vpop.f32.mrf.mxu0
    %v3255 = vadd.f32 0.0, %v3254
    %3256 = vmatmul.f32.gmra.mxu0 %v2586
    %v3257 = vpop.f32.mrf.mxu0
    %v3258 = vadd.f32 0.0, %v3257
    %3259 = vmatmul.f32.gmra.mxu0 %v2604
    %v3260 = vpop.f32.mrf.mxu0
    %v3261 = vadd.f32 0.0, %v3260
    %3262 = vmatmul.f32.gmra.mxu0 %v2622
    %v3263 = vpop.f32.mrf.mxu0
    %v3264 = vadd.f32 0.0, %v3263
    %3265 = vmatmul.f32.gmra.mxu0 %v2640
    %v3266 = vpop.f32.mrf.mxu0
    %v3267 = vadd.f32 0.0, %v3266
    %3268 = vmatmul.f32.gmra.mxu0 %v2658
    %v3269 = vpop.f32.mrf.mxu0
    %v3270 = vadd.f32 0.0, %v3269
    %3271 = vmatmul.f32.gmra.mxu0 %v2676
    %v3272 = vpop.f32.mrf.mxu0
    %v3273 = vadd.f32 0.0, %v3272
    %3274 = vmatmul.f32.gmra.mxu0 %v2694
    %v3275 = vpop.f32.mrf.mxu0
    %v3276 = vadd.f32 0.0, %v3275
    %3277 = vmatmul.f32.gmra.mxu0 %v2712
    %v3278 = vpop.f32.mrf.mxu0
    %v3279 = vadd.f32 0.0, %v3278
    %3280 = vmatmul.f32.gmra.mxu0 %v2730
    %v3281 = vpop.f32.mrf.mxu0
    %v3282 = vadd.f32 0.0, %v3281
    %3283 = vmatmul.f32.gmra.mxu0 %v2748
    %v3284 = vpop.f32.mrf.mxu0
    %v3285 = vadd.f32 0.0, %v3284
    %3286 = vmatmul.f32.gmra.mxu0 %v2766
    %v3287 = vpop.f32.mrf.mxu0
    %v3288 = vadd.f32 0.0, %v3287
    %3289 = vmatmul.f32.gmra.mxu0 %v2784
    %v3290 = vpop.f32.mrf.mxu0
    %v3291 = vadd.f32 0.0, %v3290
    %3292 = vmatmul.f32.gmra.mxu0 %v2802
    %v3293 = vpop.f32.mrf.mxu0
    %v3294 = vadd.f32 0.0, %v3293
    %3295 = vmatmul.f32.gmra.mxu0 %v2820
    %v3296 = vpop.f32.mrf.mxu0
    %v3297 = vadd.f32 0.0, %v3296
    %3298 = vmatmul.f32.gmra.mxu0 %v2838
    %v3299 = vpop.f32.mrf.mxu0
    %v3300 = vadd.f32 0.0, %v3299
    %3301 = vmatmul.f32.gmra.mxu0 %v2856
    %v3302 = vpop.f32.mrf.mxu0
    %v3303 = vadd.f32 0.0, %v3302
    %3304 = vmatmul.f32.gmra.mxu0 %v2874
    %v3305 = vpop.f32.mrf.mxu0
    %v3306 = vadd.f32 0.0, %v3305
    %3307 = vmatmul.f32.gmra.mxu0 %v2892
    %v3308 = vpop.f32.mrf.mxu0
    %v3309 = vadd.f32 0.0, %v3308
    %3310 = vmatmul.f32.gmra.mxu0 %v2910
    %v3311 = vpop.f32.mrf.mxu0
    %v3312 = vadd.f32 0.0, %v3311
    %3313 = vmatmul.f32.gmra.mxu0 %v2928
    %v3314 = vpop.f32.mrf.mxu0
    %v3315 = vadd.f32 0.0, %v3314
    %3316 = vmatmul.f32.gmra.mxu0 %v2946
    %v3317 = vpop.f32.mrf.mxu0
    %v3318 = vadd.f32 0.0, %v3317
    %3319 = vmatmul.f32.gmra.mxu0 %v2964
    %v3320 = vpop.f32.mrf.mxu0
    %v3321 = vadd.f32 0.0, %v3320
    %3322 = vmatmul.f32.gmra.mxu0 %v2982
    %v3323 = vpop.f32.mrf.mxu0
    %v3324 = vadd.f32 0.0, %v3323
    %3325 = vmatmul.f32.gmra.mxu0 %v3000
    %v3326 = vpop.f32.mrf.mxu0
    %v3327 = vadd.f32 0.0, %v3326
    %3328 = vmatmul.f32.gmra.mxu0 %v3018
    %v3329 = vpop.f32.mrf.mxu0
    %v3330 = vadd.f32 0.0, %v3329
    %3331 = vmatmul.f32.gmra.mxu0 %v3036
    %v3332 = vpop.f32.mrf.mxu0
    %v3333 = vadd.f32 0.0, %v3332
    %3334 = vmatmul.f32.gmra.mxu0 %v3054
    %v3335 = vpop.f32.mrf.mxu0
    %v3336 = vadd.f32 0.0, %v3335
    %3337 = vmatmul.f32.gmra.mxu0 %v3072
    %v3338 = vpop.f32.mrf.mxu0
    %v3339 = vadd.f32 0.0, %v3338
    %3340 = vmatmul.f32.gmra.mxu0 %v3090
    %v3341 = vpop.f32.mrf.mxu0
    %v3342 = vadd.f32 0.0, %v3341
    %3343 = vmatmul.f32.gmra.mxu0 %v3108
    %v3344 = vpop.f32.mrf.mxu0
    %v3345 = vadd.f32 0.0, %v3344
    %3346 = vmatmul.f32.gmra.mxu0 %v3126
    %v3347 = vpop.f32.mrf.mxu0
    %v3348 = vadd.f32 0.0, %v3347
    %3349 = vmatmul.f32.gmra.mxu0 %v3144
    %v3350 = vpop.f32.mrf.mxu0
    %v3351 = vadd.f32 0.0, %v3350
    %3352 = vmatmul.f32.gmra.mxu0 %v3162
    %v3353 = vpop.f32.mrf.mxu0
    %v3354 = vadd.f32 0.0, %v3353
    %3355 = vmatmul.f32.gmra.mxu0 %v3180
    %v3356 = vpop.f32.mrf.mxu0
    %v3357 = vadd.f32 0.0, %v3356
    %3358 = vdwg.mxu0
    %3359 = vmatpush.msra.mxu0 %v2077
    %3360 = vmatpush.msra.mxu0 %v2076
    %3361 = vmatpush.msra.mxu0 %v2075
    %3362 = vmatpush.msra.mxu0 %v2074
    %3363 = vmatpush.msra.mxu0 %v2073
    %3364 = vmatpush.msra.mxu0 %v2072
    %3365 = vmatpush.msra.mxu0 %v2071
    %3366 = vmatpush.msra.mxu0 %v2070
    %3367 = vmatpush.msra.mxu0 %v2069
    %3368 = vmatpush.msra.mxu0 %v2068
    %3369 = vmatpush.msra.mxu0 %v2067
    %3370 = vmatpush.msra.mxu0 %v2066
    %3371 = vmatpush.msra.mxu0 %v2065
    %3372 = vmatpush.msra.mxu0 %v2064
    %3373 = vmatpush.msra.mxu0 %v2063
    %3374 = vmatpush.msra.mxu0 %v2062
    %3375 = vmatmul.f32.gmra.mxu0 %v2335
    %v3376 = vpop.f32.mrf.mxu0
    %v3377 = vadd.f32 %v3216, %v3376
    %3378 = vmatmul.f32.gmra.mxu0 %v2353
    %v3379 = vpop.f32.mrf.mxu0
    %v3380 = vadd.f32 %v3219, %v3379
    %3381 = vmatmul.f32.gmra.mxu0 %v2371
    %v3382 = vpop.f32.mrf.mxu0
    %v3383 = vadd.f32 %v3222, %v3382
    %3384 = vmatmul.f32.gmra.mxu0 %v2389
    %v3385 = vpop.f32.mrf.mxu0
    %v3386 = vadd.f32 %v3225, %v3385
    %3387 = vmatmul.f32.gmra.mxu0 %v2407
    %v3388 = vpop.f32.mrf.mxu0
    %v3389 = vadd.f32 %v3228, %v3388
    %3390 = vmatmul.f32.gmra.mxu0 %v2425
    %v3391 = vpop.f32.mrf.mxu0
    %v3392 = vadd.f32 %v3231, %v3391
    %3393 = vmatmul.f32.gmra.mxu0 %v2443
    %v3394 = vpop.f32.mrf.mxu0
    %v3395 = vadd.f32 %v3234, %v3394
    %3396 = vmatmul.f32.gmra.mxu0 %v2461
    %v3397 = vpop.f32.mrf.mxu0
    %v3398 = vadd.f32 %v3237, %v3397
    %3399 = vmatmul.f32.gmra.mxu0 %v2479
    %v3400 = vpop.f32.mrf.mxu0
    %v3401 = vadd.f32 %v3240, %v3400
    %3402 = vmatmul.f32.gmra.mxu0 %v2497
    %v3403 = vpop.f32.mrf.mxu0
    %v3404 = vadd.f32 %v3243, %v3403
    %3405 = vmatmul.f32.gmra.mxu0 %v2515
    %v3406 = vpop.f32.mrf.mxu0
    %v3407 = vadd.f32 %v3246, %v3406
    %3408 = vmatmul.f32.gmra.mxu0 %v2533
    %v3409 = vpop.f32.mrf.mxu0
    %v3410 = vadd.f32 %v3249, %v3409
    %3411 = vmatmul.f32.gmra.mxu0 %v2551
    %v3412 = vpop.f32.mrf.mxu0
    %v3413 = vadd.f32 %v3252, %v3412
    %3414 = vmatmul.f32.gmra.mxu0 %v2569
    %v3415 = vpop.f32.mrf.mxu0
    %v3416 = vadd.f32 %v3255, %v3415
    %3417 = vmatmul.f32.gmra.mxu0 %v2587
    %v3418 = vpop.f32.mrf.mxu0
    %v3419 = vadd.f32 %v3258, %v3418
    %3420 = vmatmul.f32.gmra.mxu0 %v2605
    %v3421 = vpop.f32.mrf.mxu0
    %v3422 = vadd.f32 %v3261, %v3421
    %3423 = vmatmul.f32.gmra.mxu0 %v2623
    %v3424 = vpop.f32.mrf.mxu0
    %v3425 = vadd.f32 %v3264, %v3424
    %3426 = vmatmul.f32.gmra.mxu0 %v2641
    %v3427 = vpop.f32.mrf.mxu0
    %v3428 = vadd.f32 %v3267, %v3427
    %3429 = vmatmul.f32.gmra.mxu0 %v2659
    %v3430 = vpop.f32.mrf.mxu0
    %v3431 = vadd.f32 %v3270, %v3430
    %3432 = vmatmul.f32.gmra.mxu0 %v2677
    %v3433 = vpop.f32.mrf.mxu0
    %v3434 = vadd.f32 %v3273, %v3433
    %3435 = vmatmul.f32.gmra.mxu0 %v2695
    %v3436 = vpop.f32.mrf.mxu0
    %v3437 = vadd.f32 %v3276, %v3436
    %3438 = vmatmul.f32.gmra.mxu0 %v2713
    %v3439 = vpop.f32.mrf.mxu0
    %v3440 = vadd.f32 %v3279, %v3439
    %3441 = vmatmul.f32.gmra.mxu0 %v2731
    %v3442 = vpop.f32.mrf.mxu0
    %v3443 = vadd.f32 %v3282, %v3442
    %3444 = vmatmul.f32.gmra.mxu0 %v2749
    %v3445 = vpop.f32.mrf.mxu0
    %v3446 = vadd.f32 %v3285, %v3445
    %3447 = vmatmul.f32.gmra.mxu0 %v2767
    %v3448 = vpop.f32.mrf.mxu0
    %v3449 = vadd.f32 %v3288, %v3448
    %3450 = vmatmul.f32.gmra.mxu0 %v2785
    %v3451 = vpop.f32.mrf.mxu0
    %v3452 = vadd.f32 %v3291, %v3451
    %3453 = vmatmul.f32.gmra.mxu0 %v2803
    %v3454 = vpop.f32.mrf.mxu0
    %v3455 = vadd.f32 %v3294, %v3454
    %3456 = vmatmul.f32.gmra.mxu0 %v2821
    %v3457 = vpop.f32.mrf.mxu0
    %v3458 = vadd.f32 %v3297, %v3457
    %3459 = vmatmul.f32.gmra.mxu0 %v2839
    %v3460 = vpop.f32.mrf.mxu0
    %v3461 = vadd.f32 %v3300, %v3460
    %3462 = vmatmul.f32.gmra.mxu0 %v2857
    %v3463 = vpop.f32.mrf.mxu0
    %v3464 = vadd.f32 %v3303, %v3463
    %3465 = vmatmul.f32.gmra.mxu0 %v2875
    %v3466 = vpop.f32.mrf.mxu0
    %v3467 = vadd.f32 %v3306, %v3466
    %3468 = vmatmul.f32.gmra.mxu0 %v2893
    %v3469 = vpop.f32.mrf.mxu0
    %v3470 = vadd.f32 %v3309, %v3469
    %3471 = vmatmul.f32.gmra.mxu0 %v2911
    %v3472 = vpop.f32.mrf.mxu0
    %v3473 = vadd.f32 %v3312, %v3472
    %3474 = vmatmul.f32.gmra.mxu0 %v2929
    %v3475 = vpop.f32.mrf.mxu0
    %v3476 = vadd.f32 %v3315, %v3475
    %3477 = vmatmul.f32.gmra.mxu0 %v2947
    %v3478 = vpop.f32.mrf.mxu0
    %v3479 = vadd.f32 %v3318, %v3478
    %3480 = vmatmul.f32.gmra.mxu0 %v2965
    %v3481 = vpop.f32.mrf.mxu0
    %v3482 = vadd.f32 %v3321, %v3481
    %3483 = vmatmul.f32.gmra.mxu0 %v2983
    %v3484 = vpop.f32.mrf.mxu0
    %v3485 = vadd.f32 %v3324, %v3484
    %3486 = vmatmul.f32.gmra.mxu0 %v3001
    %v3487 = vpop.f32.mrf.mxu0
    %v3488 = vadd.f32 %v3327, %v3487
    %3489 = vmatmul.f32.gmra.mxu0 %v3019
    %v3490 = vpop.f32.mrf.mxu0
    %v3491 = vadd.f32 %v3330, %v3490
    %3492 = vmatmul.f32.gmra.mxu0 %v3037
    %v3493 = vpop.f32.mrf.mxu0
    %v3494 = vadd.f32 %v3333, %v3493
    %3495 = vmatmul.f32.gmra.mxu0 %v3055
    %v3496 = vpop.f32.mrf.mxu0
    %v3497 = vadd.f32 %v3336, %v3496
    %3498 = vmatmul.f32.gmra.mxu0 %v3073
    %v3499 = vpop.f32.mrf.mxu0
    %v3500 = vadd.f32 %v3339, %v3499
    %3501 = vmatmul.f32.gmra.mxu0 %v3091
    %v3502 = vpop.f32.mrf.mxu0
    %v3503 = vadd.f32 %v3342, %v3502
    %3504 = vmatmul.f32.gmra.mxu0 %v3109
    %v3505 = vpop.f32.mrf.mxu0
    %v3506 = vadd.f32 %v3345, %v3505
    %3507 = vmatmul.f32.gmra.mxu0 %v3127
    %v3508 = vpop.f32.mrf.mxu0
    %v3509 = vadd.f32 %v3348, %v3508
    %3510 = vmatmul.f32.gmra.mxu0 %v3145
    %v3511 = vpop.f32.mrf.mxu0
    %v3512 = vadd.f32 %v3351, %v3511
    %3513 = vmatmul.f32.gmra.mxu0 %v3163
    %v3514 = vpop.f32.mrf.mxu0
    %v3515 = vadd.f32 %v3354, %v3514
    %3516 = vmatmul.f32.gmra.mxu0 %v3181
    %v3517 = vpop.f32.mrf.mxu0
    %v3518 = vadd.f32 %v3357, %v3517
    %3519 = vdwg.mxu0
    %3520 = vmatpush.msra.mxu0 %v2093
    %3521 = vmatpush.msra.mxu0 %v2092
    %3522 = vmatpush.msra.mxu0 %v2091
    %3523 = vmatpush.msra.mxu0 %v2090
    %3524 = vmatpush.msra.mxu0 %v2089
    %3525 = vmatpush.msra.mxu0 %v2088
    %3526 = vmatpush.msra.mxu0 %v2087
    %3527 = vmatpush.msra.mxu0 %v2086
    %3528 = vmatpush.msra.mxu0 %v2085
    %3529 = vmatpush.msra.mxu0 %v2084
    %3530 = vmatpush.msra.mxu0 %v2083
    %3531 = vmatpush.msra.mxu0 %v2082
    %3532 = vmatpush.msra.mxu0 %v2081
    %3533 = vmatpush.msra.mxu0 %v2080
    %3534 = vmatpush.msra.mxu0 %v2079
    %3535 = vmatpush.msra.mxu0 %v2078
    %3536 = vmatmul.f32.gmra.mxu0 %v2336
    %v3537 = vpop.f32.mrf.mxu0
    %v3538 = vadd.f32 %v3377, %v3537
    %3539 = vmatmul.f32.gmra.mxu0 %v2354
    %v3540 = vpop.f32.mrf.mxu0
    %v3541 = vadd.f32 %v3380, %v3540
    %3542 = vmatmul.f32.gmra.mxu0 %v2372
    %v3543 = vpop.f32.mrf.mxu0
    %v3544 = vadd.f32 %v3383, %v3543
    %3545 = vmatmul.f32.gmra.mxu0 %v2390
    %v3546 = vpop.f32.mrf.mxu0
    %v3547 = vadd.f32 %v3386, %v3546
    %3548 = vmatmul.f32.gmra.mxu0 %v2408
    %v3549 = vpop.f32.mrf.mxu0
    %v3550 = vadd.f32 %v3389, %v3549
    %3551 = vmatmul.f32.gmra.mxu0 %v2426
    %v3552 = vpop.f32.mrf.mxu0
    %v3553 = vadd.f32 %v3392, %v3552
    %3554 = vmatmul.f32.gmra.mxu0 %v2444
    %v3555 = vpop.f32.mrf.mxu0
    %v3556 = vadd.f32 %v3395, %v3555
    %3557 = vmatmul.f32.gmra.mxu0 %v2462
    %v3558 = vpop.f32.mrf.mxu0
    %v3559 = vadd.f32 %v3398, %v3558
    %3560 = vmatmul.f32.gmra.mxu0 %v2480
    %v3561 = vpop.f32.mrf.mxu0
    %v3562 = vadd.f32 %v3401, %v3561
    %3563 = vmatmul.f32.gmra.mxu0 %v2498
    %v3564 = vpop.f32.mrf.mxu0
    %v3565 = vadd.f32 %v3404, %v3564
    %3566 = vmatmul.f32.gmra.mxu0 %v2516
    %v3567 = vpop.f32.mrf.mxu0
    %v3568 = vadd.f32 %v3407, %v3567
    %3569 = vmatmul.f32.gmra.mxu0 %v2534
    %v3570 = vpop.f32.mrf.mxu0
    %v3571 = vadd.f32 %v3410, %v3570
    %3572 = vmatmul.f32.gmra.mxu0 %v2552
    %v3573 = vpop.f32.mrf.mxu0
    %v3574 = vadd.f32 %v3413, %v3573
    %3575 = vmatmul.f32.gmra.mxu0 %v2570
    %v3576 = vpop.f32.mrf.mxu0
    %v3577 = vadd.f32 %v3416, %v3576
    %3578 = vmatmul.f32.gmra.mxu0 %v2588
    %v3579 = vpop.f32.mrf.mxu0
    %v3580 = vadd.f32 %v3419, %v3579
    %3581 = vmatmul.f32.gmra.mxu0 %v2606
    %v3582 = vpop.f32.mrf.mxu0
    %v3583 = vadd.f32 %v3422, %v3582
    %3584 = vmatmul.f32.gmra.mxu0 %v2624
    %v3585 = vpop.f32.mrf.mxu0
    %v3586 = vadd.f32 %v3425, %v3585
    %3587 = vmatmul.f32.gmra.mxu0 %v2642
    %v3588 = vpop.f32.mrf.mxu0
    %v3589 = vadd.f32 %v3428, %v3588
    %3590 = vmatmul.f32.gmra.mxu0 %v2660
    %v3591 = vpop.f32.mrf.mxu0
    %v3592 = vadd.f32 %v3431, %v3591
    %3593 = vmatmul.f32.gmra.mxu0 %v2678
    %v3594 = vpop.f32.mrf.mxu0
    %v3595 = vadd.f32 %v3434, %v3594
    %3596 = vmatmul.f32.gmra.mxu0 %v2696
    %v3597 = vpop.f32.mrf.mxu0
    %v3598 = vadd.f32 %v3437, %v3597
    %3599 = vmatmul.f32.gmra.mxu0 %v2714
    %v3600 = vpop.f32.mrf.mxu0
    %v3601 = vadd.f32 %v3440, %v3600
    %3602 = vmatmul.f32.gmra.mxu0 %v2732
    %v3603 = vpop.f32.mrf.mxu0
    %v3604 = vadd.f32 %v3443, %v3603
    %3605 = vmatmul.f32.gmra.mxu0 %v2750
    %v3606 = vpop.f32.mrf.mxu0
    %v3607 = vadd.f32 %v3446, %v3606
    %3608 = vmatmul.f32.gmra.mxu0 %v2768
    %v3609 = vpop.f32.mrf.mxu0
    %v3610 = vadd.f32 %v3449, %v3609
    %3611 = vmatmul.f32.gmra.mxu0 %v2786
    %v3612 = vpop.f32.mrf.mxu0
    %v3613 = vadd.f32 %v3452, %v3612
    %3614 = vmatmul.f32.gmra.mxu0 %v2804
    %v3615 = vpop.f32.mrf.mxu0
    %v3616 = vadd.f32 %v3455, %v3615
    %3617 = vmatmul.f32.gmra.mxu0 %v2822
    %v3618 = vpop.f32.mrf.mxu0
    %v3619 = vadd.f32 %v3458, %v3618
    %3620 = vmatmul.f32.gmra.mxu0 %v2840
    %v3621 = vpop.f32.mrf.mxu0
    %v3622 = vadd.f32 %v3461, %v3621
    %3623 = vmatmul.f32.gmra.mxu0 %v2858
    %v3624 = vpop.f32.mrf.mxu0
    %v3625 = vadd.f32 %v3464, %v3624
    %3626 = vmatmul.f32.gmra.mxu0 %v2876
    %v3627 = vpop.f32.mrf.mxu0
    %v3628 = vadd.f32 %v3467, %v3627
    %3629 = vmatmul.f32.gmra.mxu0 %v2894
    %v3630 = vpop.f32.mrf.mxu0
    %v3631 = vadd.f32 %v3470, %v3630
    %3632 = vmatmul.f32.gmra.mxu0 %v2912
    %v3633 = vpop.f32.mrf.mxu0
    %v3634 = vadd.f32 %v3473, %v3633
    %3635 = vmatmul.f32.gmra.mxu0 %v2930
    %v3636 = vpop.f32.mrf.mxu0
    %v3637 = vadd.f32 %v3476, %v3636
    %3638 = vmatmul.f32.gmra.mxu0 %v2948
    %v3639 = vpop.f32.mrf.mxu0
    %v3640 = vadd.f32 %v3479, %v3639
    %3641 = vmatmul.f32.gmra.mxu0 %v2966
    %v3642 = vpop.f32.mrf.mxu0
    %v3643 = vadd.f32 %v3482, %v3642
    %3644 = vmatmul.f32.gmra.mxu0 %v2984
    %v3645 = vpop.f32.mrf.mxu0
    %v3646 = vadd.f32 %v3485, %v3645
    %3647 = vmatmul.f32.gmra.mxu0 %v3002
    %v3648 = vpop.f32.mrf.mxu0
    %v3649 = vadd.f32 %v3488, %v3648
    %3650 = vmatmul.f32.gmra.mxu0 %v3020
    %v3651 = vpop.f32.mrf.mxu0
    %v3652 = vadd.f32 %v3491, %v3651
    %3653 = vmatmul.f32.gmra.mxu0 %v3038
    %v3654 = vpop.f32.mrf.mxu0
    %v3655 = vadd.f32 %v3494, %v3654
    %3656 = vmatmul.f32.gmra.mxu0 %v3056
    %v3657 = vpop.f32.mrf.mxu0
    %v3658 = vadd.f32 %v3497, %v3657
    %3659 = vmatmul.f32.gmra.mxu0 %v3074
    %v3660 = vpop.f32.mrf.mxu0
    %v3661 = vadd.f32 %v3500, %v3660
    %3662 = vmatmul.f32.gmra.mxu0 %v3092
    %v3663 = vpop.f32.mrf.mxu0
    %v3664 = vadd.f32 %v3503, %v3663
    %3665 = vmatmul.f32.gmra.mxu0 %v3110
    %v3666 = vpop.f32.mrf.mxu0
    %v3667 = vadd.f32 %v3506, %v3666
    %3668 = vmatmul.f32.gmra.mxu0 %v3128
    %v3669 = vpop.f32.mrf.mxu0
    %v3670 = vadd.f32 %v3509, %v3669
    %3671 = vmatmul.f32.gmra.mxu0 %v3146
    %v3672 = vpop.f32.mrf.mxu0
    %v3673 = vadd.f32 %v3512, %v3672
    %3674 = vmatmul.f32.gmra.mxu0 %v3164
    %v3675 = vpop.f32.mrf.mxu0
    %v3676 = vadd.f32 %v3515, %v3675
    %3677 = vmatmul.f32.gmra.mxu0 %v3182
    %v3678 = vpop.f32.mrf.mxu0
    %v3679 = vadd.f32 %v3518, %v3678
    %3680 = vdwg.mxu0
    %3681 = vmatpush.msra.mxu0 %v2109
    %3682 = vmatpush.msra.mxu0 %v2108
    %3683 = vmatpush.msra.mxu0 %v2107
    %3684 = vmatpush.msra.mxu0 %v2106
    %3685 = vmatpush.msra.mxu0 %v2105
    %3686 = vmatpush.msra.mxu0 %v2104
    %3687 = vmatpush.msra.mxu0 %v2103
    %3688 = vmatpush.msra.mxu0 %v2102
    %3689 = vmatpush.msra.mxu0 %v2101
    %3690 = vmatpush.msra.mxu0 %v2100
    %3691 = vmatpush.msra.mxu0 %v2099
    %3692 = vmatpush.msra.mxu0 %v2098
    %3693 = vmatpush.msra.mxu0 %v2097
    %3694 = vmatpush.msra.mxu0 %v2096
    %3695 = vmatpush.msra.mxu0 %v2095
    %3696 = vmatpush.msra.mxu0 %v2094
    %3697 = vmatmul.f32.gmra.mxu0 %v2337
    %v3698 = vpop.f32.mrf.mxu0
    %v3699 = vadd.f32 %v3538, %v3698
    %3700 = vmatmul.f32.gmra.mxu0 %v2355
    %v3701 = vpop.f32.mrf.mxu0
    %v3702 = vadd.f32 %v3541, %v3701
    %3703 = vmatmul.f32.gmra.mxu0 %v2373
    %v3704 = vpop.f32.mrf.mxu0
    %v3705 = vadd.f32 %v3544, %v3704
    %3706 = vmatmul.f32.gmra.mxu0 %v2391
    %v3707 = vpop.f32.mrf.mxu0
    %v3708 = vadd.f32 %v3547, %v3707
    %3709 = vmatmul.f32.gmra.mxu0 %v2409
    %v3710 = vpop.f32.mrf.mxu0
    %v3711 = vadd.f32 %v3550, %v3710
    %3712 = vmatmul.f32.gmra.mxu0 %v2427
    %v3713 = vpop.f32.mrf.mxu0
    %v3714 = vadd.f32 %v3553, %v3713
    %3715 = vmatmul.f32.gmra.mxu0 %v2445
    %v3716 = vpop.f32.mrf.mxu0
    %v3717 = vadd.f32 %v3556, %v3716
    %3718 = vmatmul.f32.gmra.mxu0 %v2463
    %v3719 = vpop.f32.mrf.mxu0
    %v3720 = vadd.f32 %v3559, %v3719
    %3721 = vmatmul.f32.gmra.mxu0 %v2481
    %v3722 = vpop.f32.mrf.mxu0
    %v3723 = vadd.f32 %v3562, %v3722
    %3724 = vmatmul.f32.gmra.mxu0 %v2499
    %v3725 = vpop.f32.mrf.mxu0
    %v3726 = vadd.f32 %v3565, %v3725
    %3727 = vmatmul.f32.gmra.mxu0 %v2517
    %v3728 = vpop.f32.mrf.mxu0
    %v3729 = vadd.f32 %v3568, %v3728
    %3730 = vmatmul.f32.gmra.mxu0 %v2535
    %v3731 = vpop.f32.mrf.mxu0
    %v3732 = vadd.f32 %v3571, %v3731
    %3733 = vmatmul.f32.gmra.mxu0 %v2553
    %v3734 = vpop.f32.mrf.mxu0
    %v3735 = vadd.f32 %v3574, %v3734
    %3736 = vmatmul.f32.gmra.mxu0 %v2571
    %v3737 = vpop.f32.mrf.mxu0
    %v3738 = vadd.f32 %v3577, %v3737
    %3739 = vmatmul.f32.gmra.mxu0 %v2589
    %v3740 = vpop.f32.mrf.mxu0
    %v3741 = vadd.f32 %v3580, %v3740
    %3742 = vmatmul.f32.gmra.mxu0 %v2607
    %v3743 = vpop.f32.mrf.mxu0
    %v3744 = vadd.f32 %v3583, %v3743
    %3745 = vmatmul.f32.gmra.mxu0 %v2625
    %v3746 = vpop.f32.mrf.mxu0
    %v3747 = vadd.f32 %v3586, %v3746
    %3748 = vmatmul.f32.gmra.mxu0 %v2643
    %v3749 = vpop.f32.mrf.mxu0
    %v3750 = vadd.f32 %v3589, %v3749
    %3751 = vmatmul.f32.gmra.mxu0 %v2661
    %v3752 = vpop.f32.mrf.mxu0
    %v3753 = vadd.f32 %v3592, %v3752
    %3754 = vmatmul.f32.gmra.mxu0 %v2679
    %v3755 = vpop.f32.mrf.mxu0
    %v3756 = vadd.f32 %v3595, %v3755
    %3757 = vmatmul.f32.gmra.mxu0 %v2697
    %v3758 = vpop.f32.mrf.mxu0
    %v3759 = vadd.f32 %v3598, %v3758
    %3760 = vmatmul.f32.gmra.mxu0 %v2715
    %v3761 = vpop.f32.mrf.mxu0
    %v3762 = vadd.f32 %v3601, %v3761
    %3763 = vmatmul.f32.gmra.mxu0 %v2733
    %v3764 = vpop.f32.mrf.mxu0
    %v3765 = vadd.f32 %v3604, %v3764
    %3766 = vmatmul.f32.gmra.mxu0 %v2751
    %v3767 = vpop.f32.mrf.mxu0
    %v3768 = vadd.f32 %v3607, %v3767
    %3769 = vmatmul.f32.gmra.mxu0 %v2769
    %v3770 = vpop.f32.mrf.mxu0
    %v3771 = vadd.f32 %v3610, %v3770
    %3772 = vmatmul.f32.gmra.mxu0 %v2787
    %v3773 = vpop.f32.mrf.mxu0
    %v3774 = vadd.f32 %v3613, %v3773
    %3775 = vmatmul.f32.gmra.mxu0 %v2805
    %v3776 = vpop.f32.mrf.mxu0
    %v3777 = vadd.f32 %v3616, %v3776
    %3778 = vmatmul.f32.gmra.mxu0 %v2823
    %v3779 = vpop.f32.mrf.mxu0
    %v3780 = vadd.f32 %v3619, %v3779
    %3781 = vmatmul.f32.gmra.mxu0 %v2841
    %v3782 = vpop.f32.mrf.mxu0
    %v3783 = vadd.f32 %v3622, %v3782
    %3784 = vmatmul.f32.gmra.mxu0 %v2859
    %v3785 = vpop.f32.mrf.mxu0
    %v3786 = vadd.f32 %v3625, %v3785
    %3787 = vmatmul.f32.gmra.mxu0 %v2877
    %v3788 = vpop.f32.mrf.mxu0
    %v3789 = vadd.f32 %v3628, %v3788
    %3790 = vmatmul.f32.gmra.mxu0 %v2895
    %v3791 = vpop.f32.mrf.mxu0
    %v3792 = vadd.f32 %v3631, %v3791
    %3793 = vmatmul.f32.gmra.mxu0 %v2913
    %v3794 = vpop.f32.mrf.mxu0
    %v3795 = vadd.f32 %v3634, %v3794
    %3796 = vmatmul.f32.gmra.mxu0 %v2931
    %v3797 = vpop.f32.mrf.mxu0
    %v3798 = vadd.f32 %v3637, %v3797
    %3799 = vmatmul.f32.gmra.mxu0 %v2949
    %v3800 = vpop.f32.mrf.mxu0
    %v3801 = vadd.f32 %v3640, %v3800
    %3802 = vmatmul.f32.gmra.mxu0 %v2967
    %v3803 = vpop.f32.mrf.mxu0
    %v3804 = vadd.f32 %v3643, %v3803
    %3805 = vmatmul.f32.gmra.mxu0 %v2985
    %v3806 = vpop.f32.mrf.mxu0
    %v3807 = vadd.f32 %v3646, %v3806
    %3808 = vmatmul.f32.gmra.mxu0 %v3003
    %v3809 = vpop.f32.mrf.mxu0
    %v3810 = vadd.f32 %v3649, %v3809
    %3811 = vmatmul.f32.gmra.mxu0 %v3021
    %v3812 = vpop.f32.mrf.mxu0
    %v3813 = vadd.f32 %v3652, %v3812
    %3814 = vmatmul.f32.gmra.mxu0 %v3039
    %v3815 = vpop.f32.mrf.mxu0
    %v3816 = vadd.f32 %v3655, %v3815
    %3817 = vmatmul.f32.gmra.mxu0 %v3057
    %v3818 = vpop.f32.mrf.mxu0
    %v3819 = vadd.f32 %v3658, %v3818
    %3820 = vmatmul.f32.gmra.mxu0 %v3075
    %v3821 = vpop.f32.mrf.mxu0
    %v3822 = vadd.f32 %v3661, %v3821
    %3823 = vmatmul.f32.gmra.mxu0 %v3093
    %v3824 = vpop.f32.mrf.mxu0
    %v3825 = vadd.f32 %v3664, %v3824
    %3826 = vmatmul.f32.gmra.mxu0 %v3111
    %v3827 = vpop.f32.mrf.mxu0
    %v3828 = vadd.f32 %v3667, %v3827
    %3829 = vmatmul.f32.gmra.mxu0 %v3129
    %v3830 = vpop.f32.mrf.mxu0
    %v3831 = vadd.f32 %v3670, %v3830
    %3832 = vmatmul.f32.gmra.mxu0 %v3147
    %v3833 = vpop.f32.mrf.mxu0
    %v3834 = vadd.f32 %v3673, %v3833
    %3835 = vmatmul.f32.gmra.mxu0 %v3165
    %v3836 = vpop.f32.mrf.mxu0
    %v3837 = vadd.f32 %v3676, %v3836
    %3838 = vmatmul.f32.gmra.mxu0 %v3183
    %v3839 = vpop.f32.mrf.mxu0
    %v3840 = vadd.f32 %v3679, %v3839
    %3841 = vdwg.mxu0
    %3842 = vmatpush.msra.mxu0 %v2125
    %3843 = vmatpush.msra.mxu0 %v2124
    %3844 = vmatpush.msra.mxu0 %v2123
    %3845 = vmatpush.msra.mxu0 %v2122
    %3846 = vmatpush.msra.mxu0 %v2121
    %3847 = vmatpush.msra.mxu0 %v2120
    %3848 = vmatpush.msra.mxu0 %v2119
    %3849 = vmatpush.msra.mxu0 %v2118
    %3850 = vmatpush.msra.mxu0 %v2117
    %3851 = vmatpush.msra.mxu0 %v2116
    %3852 = vmatpush.msra.mxu0 %v2115
    %3853 = vmatpush.msra.mxu0 %v2114
    %3854 = vmatpush.msra.mxu0 %v2113
    %3855 = vmatpush.msra.mxu0 %v2112
    %3856 = vmatpush.msra.mxu0 %v2111
    %3857 = vmatpush.msra.mxu0 %v2110
    %3858 = vmatmul.f32.gmra.mxu0 %v2338
    %v3859 = vpop.f32.mrf.mxu0
    %v3860 = vadd.f32 %v3699, %v3859
    %3861 = vmatmul.f32.gmra.mxu0 %v2356
    %v3862 = vpop.f32.mrf.mxu0
    %v3863 = vadd.f32 %v3702, %v3862
    %3864 = vmatmul.f32.gmra.mxu0 %v2374
    %v3865 = vpop.f32.mrf.mxu0
    %v3866 = vadd.f32 %v3705, %v3865
    %3867 = vmatmul.f32.gmra.mxu0 %v2392
    %v3868 = vpop.f32.mrf.mxu0
    %v3869 = vadd.f32 %v3708, %v3868
    %3870 = vmatmul.f32.gmra.mxu0 %v2410
    %v3871 = vpop.f32.mrf.mxu0
    %v3872 = vadd.f32 %v3711, %v3871
    %3873 = vmatmul.f32.gmra.mxu0 %v2428
    %v3874 = vpop.f32.mrf.mxu0
    %v3875 = vadd.f32 %v3714, %v3874
    %3876 = vmatmul.f32.gmra.mxu0 %v2446
    %v3877 = vpop.f32.mrf.mxu0
    %v3878 = vadd.f32 %v3717, %v3877
    %3879 = vmatmul.f32.gmra.mxu0 %v2464
    %v3880 = vpop.f32.mrf.mxu0
    %v3881 = vadd.f32 %v3720, %v3880
    %3882 = vmatmul.f32.gmra.mxu0 %v2482
    %v3883 = vpop.f32.mrf.mxu0
    %v3884 = vadd.f32 %v3723, %v3883
    %3885 = vmatmul.f32.gmra.mxu0 %v2500
    %v3886 = vpop.f32.mrf.mxu0
    %v3887 = vadd.f32 %v3726, %v3886
    %3888 = vmatmul.f32.gmra.mxu0 %v2518
    %v3889 = vpop.f32.mrf.mxu0
    %v3890 = vadd.f32 %v3729, %v3889
    %3891 = vmatmul.f32.gmra.mxu0 %v2536
    %v3892 = vpop.f32.mrf.mxu0
    %v3893 = vadd.f32 %v3732, %v3892
    %3894 = vmatmul.f32.gmra.mxu0 %v2554
    %v3895 = vpop.f32.mrf.mxu0
    %v3896 = vadd.f32 %v3735, %v3895
    %3897 = vmatmul.f32.gmra.mxu0 %v2572
    %v3898 = vpop.f32.mrf.mxu0
    %v3899 = vadd.f32 %v3738, %v3898
    %3900 = vmatmul.f32.gmra.mxu0 %v2590
    %v3901 = vpop.f32.mrf.mxu0
    %v3902 = vadd.f32 %v3741, %v3901
    %3903 = vmatmul.f32.gmra.mxu0 %v2608
    %v3904 = vpop.f32.mrf.mxu0
    %v3905 = vadd.f32 %v3744, %v3904
    %3906 = vmatmul.f32.gmra.mxu0 %v2626
    %v3907 = vpop.f32.mrf.mxu0
    %v3908 = vadd.f32 %v3747, %v3907
    %3909 = vmatmul.f32.gmra.mxu0 %v2644
    %v3910 = vpop.f32.mrf.mxu0
    %v3911 = vadd.f32 %v3750, %v3910
    %3912 = vmatmul.f32.gmra.mxu0 %v2662
    %v3913 = vpop.f32.mrf.mxu0
    %v3914 = vadd.f32 %v3753, %v3913
    %3915 = vmatmul.f32.gmra.mxu0 %v2680
    %v3916 = vpop.f32.mrf.mxu0
    %v3917 = vadd.f32 %v3756, %v3916
    %3918 = vmatmul.f32.gmra.mxu0 %v2698
    %v3919 = vpop.f32.mrf.mxu0
    %v3920 = vadd.f32 %v3759, %v3919
    %3921 = vmatmul.f32.gmra.mxu0 %v2716
    %v3922 = vpop.f32.mrf.mxu0
    %v3923 = vadd.f32 %v3762, %v3922
    %3924 = vmatmul.f32.gmra.mxu0 %v2734
    %v3925 = vpop.f32.mrf.mxu0
    %v3926 = vadd.f32 %v3765, %v3925
    %3927 = vmatmul.f32.gmra.mxu0 %v2752
    %v3928 = vpop.f32.mrf.mxu0
    %v3929 = vadd.f32 %v3768, %v3928
    %3930 = vmatmul.f32.gmra.mxu0 %v2770
    %v3931 = vpop.f32.mrf.mxu0
    %v3932 = vadd.f32 %v3771, %v3931
    %3933 = vmatmul.f32.gmra.mxu0 %v2788
    %v3934 = vpop.f32.mrf.mxu0
    %v3935 = vadd.f32 %v3774, %v3934
    %3936 = vmatmul.f32.gmra.mxu0 %v2806
    %v3937 = vpop.f32.mrf.mxu0
    %v3938 = vadd.f32 %v3777, %v3937
    %3939 = vmatmul.f32.gmra.mxu0 %v2824
    %v3940 = vpop.f32.mrf.mxu0
    %v3941 = vadd.f32 %v3780, %v3940
    %3942 = vmatmul.f32.gmra.mxu0 %v2842
    %v3943 = vpop.f32.mrf.mxu0
    %v3944 = vadd.f32 %v3783, %v3943
    %3945 = vmatmul.f32.gmra.mxu0 %v2860
    %v3946 = vpop.f32.mrf.mxu0
    %v3947 = vadd.f32 %v3786, %v3946
    %3948 = vmatmul.f32.gmra.mxu0 %v2878
    %v3949 = vpop.f32.mrf.mxu0
    %v3950 = vadd.f32 %v3789, %v3949
    %3951 = vmatmul.f32.gmra.mxu0 %v2896
    %v3952 = vpop.f32.mrf.mxu0
    %v3953 = vadd.f32 %v3792, %v3952
    %3954 = vmatmul.f32.gmra.mxu0 %v2914
    %v3955 = vpop.f32.mrf.mxu0
    %v3956 = vadd.f32 %v3795, %v3955
    %3957 = vmatmul.f32.gmra.mxu0 %v2932
    %v3958 = vpop.f32.mrf.mxu0
    %v3959 = vadd.f32 %v3798, %v3958
    %3960 = vmatmul.f32.gmra.mxu0 %v2950
    %v3961 = vpop.f32.mrf.mxu0
    %v3962 = vadd.f32 %v3801, %v3961
    %3963 = vmatmul.f32.gmra.mxu0 %v2968
    %v3964 = vpop.f32.mrf.mxu0
    %v3965 = vadd.f32 %v3804, %v3964
    %3966 = vmatmul.f32.gmra.mxu0 %v2986
    %v3967 = vpop.f32.mrf.mxu0
    %v3968 = vadd.f32 %v3807, %v3967
    %3969 = vmatmul.f32.gmra.mxu0 %v3004
    %v3970 = vpop.f32.mrf.mxu0
    %v3971 = vadd.f32 %v3810, %v3970
    %3972 = vmatmul.f32.gmra.mxu0 %v3022
    %v3973 = vpop.f32.mrf.mxu0
    %v3974 = vadd.f32 %v3813, %v3973
    %3975 = vmatmul.f32.gmra.mxu0 %v3040
    %v3976 = vpop.f32.mrf.mxu0
    %v3977 = vadd.f32 %v3816, %v3976
    %3978 = vmatmul.f32.gmra.mxu0 %v3058
    %v3979 = vpop.f32.mrf.mxu0
    %v3980 = vadd.f32 %v3819, %v3979
    %3981 = vmatmul.f32.gmra.mxu0 %v3076
    %v3982 = vpop.f32.mrf.mxu0
    %v3983 = vadd.f32 %v3822, %v3982
    %3984 = vmatmul.f32.gmra.mxu0 %v3094
    %v3985 = vpop.f32.mrf.mxu0
    %v3986 = vadd.f32 %v3825, %v3985
    %3987 = vmatmul.f32.gmra.mxu0 %v3112
    %v3988 = vpop.f32.mrf.mxu0
    %v3989 = vadd.f32 %v3828, %v3988
    %3990 = vmatmul.f32.gmra.mxu0 %v3130
    %v3991 = vpop.f32.mrf.mxu0
    %v3992 = vadd.f32 %v3831, %v3991
    %3993 = vmatmul.f32.gmra.mxu0 %v3148
    %v3994 = vpop.f32.mrf.mxu0
    %v3995 = vadd.f32 %v3834, %v3994
    %3996 = vmatmul.f32.gmra.mxu0 %v3166
    %v3997 = vpop.f32.mrf.mxu0
    %v3998 = vadd.f32 %v3837, %v3997
    %3999 = vmatmul.f32.gmra.mxu0 %v3184
    %v4000 = vpop.f32.mrf.mxu0
    %v4001 = vadd.f32 %v3840, %v4000
    %4002 = vdwg.mxu0
    %4003 = vmatpush.msra.mxu0 %v2141
    %4004 = vmatpush.msra.mxu0 %v2140
    %4005 = vmatpush.msra.mxu0 %v2139
    %4006 = vmatpush.msra.mxu0 %v2138
    %4007 = vmatpush.msra.mxu0 %v2137
    %4008 = vmatpush.msra.mxu0 %v2136
    %4009 = vmatpush.msra.mxu0 %v2135
    %4010 = vmatpush.msra.mxu0 %v2134
    %4011 = vmatpush.msra.mxu0 %v2133
    %4012 = vmatpush.msra.mxu0 %v2132
    %4013 = vmatpush.msra.mxu0 %v2131
    %4014 = vmatpush.msra.mxu0 %v2130
    %4015 = vmatpush.msra.mxu0 %v2129
    %4016 = vmatpush.msra.mxu0 %v2128
    %4017 = vmatpush.msra.mxu0 %v2127
    %4018 = vmatpush.msra.mxu0 %v2126
    %4019 = vmatmul.f32.gmra.mxu0 %v2339
    %v4020 = vpop.f32.mrf.mxu0
    %v4021 = vadd.f32 %v3860, %v4020
    %4022 = vmatmul.f32.gmra.mxu0 %v2357
    %v4023 = vpop.f32.mrf.mxu0
    %v4024 = vadd.f32 %v3863, %v4023
    %4025 = vmatmul.f32.gmra.mxu0 %v2375
    %v4026 = vpop.f32.mrf.mxu0
    %v4027 = vadd.f32 %v3866, %v4026
    %4028 = vmatmul.f32.gmra.mxu0 %v2393
    %v4029 = vpop.f32.mrf.mxu0
    %v4030 = vadd.f32 %v3869, %v4029
    %4031 = vmatmul.f32.gmra.mxu0 %v2411
    %v4032 = vpop.f32.mrf.mxu0
    %v4033 = vadd.f32 %v3872, %v4032
    %4034 = vmatmul.f32.gmra.mxu0 %v2429
    %v4035 = vpop.f32.mrf.mxu0
    %v4036 = vadd.f32 %v3875, %v4035
    %4037 = vmatmul.f32.gmra.mxu0 %v2447
    %v4038 = vpop.f32.mrf.mxu0
    %v4039 = vadd.f32 %v3878, %v4038
    %4040 = vmatmul.f32.gmra.mxu0 %v2465
    %v4041 = vpop.f32.mrf.mxu0
    %v4042 = vadd.f32 %v3881, %v4041
    %4043 = vmatmul.f32.gmra.mxu0 %v2483
    %v4044 = vpop.f32.mrf.mxu0
    %v4045 = vadd.f32 %v3884, %v4044
    %4046 = vmatmul.f32.gmra.mxu0 %v2501
    %v4047 = vpop.f32.mrf.mxu0
    %v4048 = vadd.f32 %v3887, %v4047
    %4049 = vmatmul.f32.gmra.mxu0 %v2519
    %v4050 = vpop.f32.mrf.mxu0
    %v4051 = vadd.f32 %v3890, %v4050
    %4052 = vmatmul.f32.gmra.mxu0 %v2537
    %v4053 = vpop.f32.mrf.mxu0
    %v4054 = vadd.f32 %v3893, %v4053
    %4055 = vmatmul.f32.gmra.mxu0 %v2555
    %v4056 = vpop.f32.mrf.mxu0
    %v4057 = vadd.f32 %v3896, %v4056
    %4058 = vmatmul.f32.gmra.mxu0 %v2573
    %v4059 = vpop.f32.mrf.mxu0
    %v4060 = vadd.f32 %v3899, %v4059
    %4061 = vmatmul.f32.gmra.mxu0 %v2591
    %v4062 = vpop.f32.mrf.mxu0
    %v4063 = vadd.f32 %v3902, %v4062
    %4064 = vmatmul.f32.gmra.mxu0 %v2609
    %v4065 = vpop.f32.mrf.mxu0
    %v4066 = vadd.f32 %v3905, %v4065
    %4067 = vmatmul.f32.gmra.mxu0 %v2627
    %v4068 = vpop.f32.mrf.mxu0
    %v4069 = vadd.f32 %v3908, %v4068
    %4070 = vmatmul.f32.gmra.mxu0 %v2645
    %v4071 = vpop.f32.mrf.mxu0
    %v4072 = vadd.f32 %v3911, %v4071
    %4073 = vmatmul.f32.gmra.mxu0 %v2663
    %v4074 = vpop.f32.mrf.mxu0
    %v4075 = vadd.f32 %v3914, %v4074
    %4076 = vmatmul.f32.gmra.mxu0 %v2681
    %v4077 = vpop.f32.mrf.mxu0
    %v4078 = vadd.f32 %v3917, %v4077
    %4079 = vmatmul.f32.gmra.mxu0 %v2699
    %v4080 = vpop.f32.mrf.mxu0
    %v4081 = vadd.f32 %v3920, %v4080
    %4082 = vmatmul.f32.gmra.mxu0 %v2717
    %v4083 = vpop.f32.mrf.mxu0
    %v4084 = vadd.f32 %v3923, %v4083
    %4085 = vmatmul.f32.gmra.mxu0 %v2735
    %v4086 = vpop.f32.mrf.mxu0
    %v4087 = vadd.f32 %v3926, %v4086
    %4088 = vmatmul.f32.gmra.mxu0 %v2753
    %v4089 = vpop.f32.mrf.mxu0
    %v4090 = vadd.f32 %v3929, %v4089
    %4091 = vmatmul.f32.gmra.mxu0 %v2771
    %v4092 = vpop.f32.mrf.mxu0
    %v4093 = vadd.f32 %v3932, %v4092
    %4094 = vmatmul.f32.gmra.mxu0 %v2789
    %v4095 = vpop.f32.mrf.mxu0
    %v4096 = vadd.f32 %v3935, %v4095
    %4097 = vmatmul.f32.gmra.mxu0 %v2807
    %v4098 = vpop.f32.mrf.mxu0
    %v4099 = vadd.f32 %v3938, %v4098
    %4100 = vmatmul.f32.gmra.mxu0 %v2825
    %v4101 = vpop.f32.mrf.mxu0
    %v4102 = vadd.f32 %v3941, %v4101
    %4103 = vmatmul.f32.gmra.mxu0 %v2843
    %v4104 = vpop.f32.mrf.mxu0
    %v4105 = vadd.f32 %v3944, %v4104
    %4106 = vmatmul.f32.gmra.mxu0 %v2861
    %v4107 = vpop.f32.mrf.mxu0
    %v4108 = vadd.f32 %v3947, %v4107
    %4109 = vmatmul.f32.gmra.mxu0 %v2879
    %v4110 = vpop.f32.mrf.mxu0
    %v4111 = vadd.f32 %v3950, %v4110
    %4112 = vmatmul.f32.gmra.mxu0 %v2897
    %v4113 = vpop.f32.mrf.mxu0
    %v4114 = vadd.f32 %v3953, %v4113
    %4115 = vmatmul.f32.gmra.mxu0 %v2915
    %v4116 = vpop.f32.mrf.mxu0
    %v4117 = vadd.f32 %v3956, %v4116
    %4118 = vmatmul.f32.gmra.mxu0 %v2933
    %v4119 = vpop.f32.mrf.mxu0
    %v4120 = vadd.f32 %v3959, %v4119
    %4121 = vmatmul.f32.gmra.mxu0 %v2951
    %v4122 = vpop.f32.mrf.mxu0
    %v4123 = vadd.f32 %v3962, %v4122
    %4124 = vmatmul.f32.gmra.mxu0 %v2969
    %v4125 = vpop.f32.mrf.mxu0
    %v4126 = vadd.f32 %v3965, %v4125
    %4127 = vmatmul.f32.gmra.mxu0 %v2987
    %v4128 = vpop.f32.mrf.mxu0
    %v4129 = vadd.f32 %v3968, %v4128
    %4130 = vmatmul.f32.gmra.mxu0 %v3005
    %v4131 = vpop.f32.mrf.mxu0
    %v4132 = vadd.f32 %v3971, %v4131
    %4133 = vmatmul.f32.gmra.mxu0 %v3023
    %v4134 = vpop.f32.mrf.mxu0
    %v4135 = vadd.f32 %v3974, %v4134
    %4136 = vmatmul.f32.gmra.mxu0 %v3041
    %v4137 = vpop.f32.mrf.mxu0
    %v4138 = vadd.f32 %v3977, %v4137
    %4139 = vmatmul.f32.gmra.mxu0 %v3059
    %v4140 = vpop.f32.mrf.mxu0
    %v4141 = vadd.f32 %v3980, %v4140
    %4142 = vmatmul.f32.gmra.mxu0 %v3077
    %v4143 = vpop.f32.mrf.mxu0
    %v4144 = vadd.f32 %v3983, %v4143
    %4145 = vmatmul.f32.gmra.mxu0 %v3095
    %v4146 = vpop.f32.mrf.mxu0
    %v4147 = vadd.f32 %v3986, %v4146
    %4148 = vmatmul.f32.gmra.mxu0 %v3113
    %v4149 = vpop.f32.mrf.mxu0
    %v4150 = vadd.f32 %v3989, %v4149
    %4151 = vmatmul.f32.gmra.mxu0 %v3131
    %v4152 = vpop.f32.mrf.mxu0
    %v4153 = vadd.f32 %v3992, %v4152
    %4154 = vmatmul.f32.gmra.mxu0 %v3149
    %v4155 = vpop.f32.mrf.mxu0
    %v4156 = vadd.f32 %v3995, %v4155
    %4157 = vmatmul.f32.gmra.mxu0 %v3167
    %v4158 = vpop.f32.mrf.mxu0
    %v4159 = vadd.f32 %v3998, %v4158
    %4160 = vmatmul.f32.gmra.mxu0 %v3185
    %v4161 = vpop.f32.mrf.mxu0
    %v4162 = vadd.f32 %v4001, %v4161
    %4163 = vdwg.mxu0
    %4164 = vmatpush.msra.mxu0 %v2157
    %4165 = vmatpush.msra.mxu0 %v2156
    %4166 = vmatpush.msra.mxu0 %v2155
    %4167 = vmatpush.msra.mxu0 %v2154
    %4168 = vmatpush.msra.mxu0 %v2153
    %4169 = vmatpush.msra.mxu0 %v2152
    %4170 = vmatpush.msra.mxu0 %v2151
    %4171 = vmatpush.msra.mxu0 %v2150
    %4172 = vmatpush.msra.mxu0 %v2149
    %4173 = vmatpush.msra.mxu0 %v2148
    %4174 = vmatpush.msra.mxu0 %v2147
    %4175 = vmatpush.msra.mxu0 %v2146
    %4176 = vmatpush.msra.mxu0 %v2145
    %4177 = vmatpush.msra.mxu0 %v2144
    %4178 = vmatpush.msra.mxu0 %v2143
    %4179 = vmatpush.msra.mxu0 %v2142
    %4180 = vmatmul.f32.gmra.mxu0 %v2340
    %v4181 = vpop.f32.mrf.mxu0
    %v4182 = vadd.f32 %v4021, %v4181
    %4183 = vmatmul.f32.gmra.mxu0 %v2358
    %v4184 = vpop.f32.mrf.mxu0
    %v4185 = vadd.f32 %v4024, %v4184
    %4186 = vmatmul.f32.gmra.mxu0 %v2376
    %v4187 = vpop.f32.mrf.mxu0
    %v4188 = vadd.f32 %v4027, %v4187
    %4189 = vmatmul.f32.gmra.mxu0 %v2394
    %v4190 = vpop.f32.mrf.mxu0
    %v4191 = vadd.f32 %v4030, %v4190
    %4192 = vmatmul.f32.gmra.mxu0 %v2412
    %v4193 = vpop.f32.mrf.mxu0
    %v4194 = vadd.f32 %v4033, %v4193
    %4195 = vmatmul.f32.gmra.mxu0 %v2430
    %v4196 = vpop.f32.mrf.mxu0
    %v4197 = vadd.f32 %v4036, %v4196
    %4198 = vmatmul.f32.gmra.mxu0 %v2448
    %v4199 = vpop.f32.mrf.mxu0
    %v4200 = vadd.f32 %v4039, %v4199
    %4201 = vmatmul.f32.gmra.mxu0 %v2466
    %v4202 = vpop.f32.mrf.mxu0
    %v4203 = vadd.f32 %v4042, %v4202
    %4204 = vmatmul.f32.gmra.mxu0 %v2484
    %v4205 = vpop.f32.mrf.mxu0
    %v4206 = vadd.f32 %v4045, %v4205
    %4207 = vmatmul.f32.gmra.mxu0 %v2502
    %v4208 = vpop.f32.mrf.mxu0
    %v4209 = vadd.f32 %v4048, %v4208
    %4210 = vmatmul.f32.gmra.mxu0 %v2520
    %v4211 = vpop.f32.mrf.mxu0
    %v4212 = vadd.f32 %v4051, %v4211
    %4213 = vmatmul.f32.gmra.mxu0 %v2538
    %v4214 = vpop.f32.mrf.mxu0
    %v4215 = vadd.f32 %v4054, %v4214
    %4216 = vmatmul.f32.gmra.mxu0 %v2556
    %v4217 = vpop.f32.mrf.mxu0
    %v4218 = vadd.f32 %v4057, %v4217
    %4219 = vmatmul.f32.gmra.mxu0 %v2574
    %v4220 = vpop.f32.mrf.mxu0
    %v4221 = vadd.f32 %v4060, %v4220
    %4222 = vmatmul.f32.gmra.mxu0 %v2592
    %v4223 = vpop.f32.mrf.mxu0
    %v4224 = vadd.f32 %v4063, %v4223
    %4225 = vmatmul.f32.gmra.mxu0 %v2610
    %v4226 = vpop.f32.mrf.mxu0
    %v4227 = vadd.f32 %v4066, %v4226
    %4228 = vmatmul.f32.gmra.mxu0 %v2628
    %v4229 = vpop.f32.mrf.mxu0
    %v4230 = vadd.f32 %v4069, %v4229
    %4231 = vmatmul.f32.gmra.mxu0 %v2646
    %v4232 = vpop.f32.mrf.mxu0
    %v4233 = vadd.f32 %v4072, %v4232
    %4234 = vmatmul.f32.gmra.mxu0 %v2664
    %v4235 = vpop.f32.mrf.mxu0
    %v4236 = vadd.f32 %v4075, %v4235
    %4237 = vmatmul.f32.gmra.mxu0 %v2682
    %v4238 = vpop.f32.mrf.mxu0
    %v4239 = vadd.f32 %v4078, %v4238
    %4240 = vmatmul.f32.gmra.mxu0 %v2700
    %v4241 = vpop.f32.mrf.mxu0
    %v4242 = vadd.f32 %v4081, %v4241
    %4243 = vmatmul.f32.gmra.mxu0 %v2718
    %v4244 = vpop.f32.mrf.mxu0
    %v4245 = vadd.f32 %v4084, %v4244
    %4246 = vmatmul.f32.gmra.mxu0 %v2736
    %v4247 = vpop.f32.mrf.mxu0
    %v4248 = vadd.f32 %v4087, %v4247
    %4249 = vmatmul.f32.gmra.mxu0 %v2754
    %v4250 = vpop.f32.mrf.mxu0
    %v4251 = vadd.f32 %v4090, %v4250
    %4252 = vmatmul.f32.gmra.mxu0 %v2772
    %v4253 = vpop.f32.mrf.mxu0
    %v4254 = vadd.f32 %v4093, %v4253
    %4255 = vmatmul.f32.gmra.mxu0 %v2790
    %v4256 = vpop.f32.mrf.mxu0
    %v4257 = vadd.f32 %v4096, %v4256
    %4258 = vmatmul.f32.gmra.mxu0 %v2808
    %v4259 = vpop.f32.mrf.mxu0
    %v4260 = vadd.f32 %v4099, %v4259
    %4261 = vmatmul.f32.gmra.mxu0 %v2826
    %v4262 = vpop.f32.mrf.mxu0
    %v4263 = vadd.f32 %v4102, %v4262
    %4264 = vmatmul.f32.gmra.mxu0 %v2844
    %v4265 = vpop.f32.mrf.mxu0
    %v4266 = vadd.f32 %v4105, %v4265
    %4267 = vmatmul.f32.gmra.mxu0 %v2862
    %v4268 = vpop.f32.mrf.mxu0
    %v4269 = vadd.f32 %v4108, %v4268
    %4270 = vmatmul.f32.gmra.mxu0 %v2880
    %v4271 = vpop.f32.mrf.mxu0
    %v4272 = vadd.f32 %v4111, %v4271
    %4273 = vmatmul.f32.gmra.mxu0 %v2898
    %v4274 = vpop.f32.mrf.mxu0
    %v4275 = vadd.f32 %v4114, %v4274
    %4276 = vmatmul.f32.gmra.mxu0 %v2916
    %v4277 = vpop.f32.mrf.mxu0
    %v4278 = vadd.f32 %v4117, %v4277
    %4279 = vmatmul.f32.gmra.mxu0 %v2934
    %v4280 = vpop.f32.mrf.mxu0
    %v4281 = vadd.f32 %v4120, %v4280
    %4282 = vmatmul.f32.gmra.mxu0 %v2952
    %v4283 = vpop.f32.mrf.mxu0
    %v4284 = vadd.f32 %v4123, %v4283
    %4285 = vmatmul.f32.gmra.mxu0 %v2970
    %v4286 = vpop.f32.mrf.mxu0
    %v4287 = vadd.f32 %v4126, %v4286
    %4288 = vmatmul.f32.gmra.mxu0 %v2988
    %v4289 = vpop.f32.mrf.mxu0
    %v4290 = vadd.f32 %v4129, %v4289
    %4291 = vmatmul.f32.gmra.mxu0 %v3006
    %v4292 = vpop.f32.mrf.mxu0
    %v4293 = vadd.f32 %v4132, %v4292
    %4294 = vmatmul.f32.gmra.mxu0 %v3024
    %v4295 = vpop.f32.mrf.mxu0
    %v4296 = vadd.f32 %v4135, %v4295
    %4297 = vmatmul.f32.gmra.mxu0 %v3042
    %v4298 = vpop.f32.mrf.mxu0
    %v4299 = vadd.f32 %v4138, %v4298
    %4300 = vmatmul.f32.gmra.mxu0 %v3060
    %v4301 = vpop.f32.mrf.mxu0
    %v4302 = vadd.f32 %v4141, %v4301
    %4303 = vmatmul.f32.gmra.mxu0 %v3078
    %v4304 = vpop.f32.mrf.mxu0
    %v4305 = vadd.f32 %v4144, %v4304
    %4306 = vmatmul.f32.gmra.mxu0 %v3096
    %v4307 = vpop.f32.mrf.mxu0
    %v4308 = vadd.f32 %v4147, %v4307
    %4309 = vmatmul.f32.gmra.mxu0 %v3114
    %v4310 = vpop.f32.mrf.mxu0
    %v4311 = vadd.f32 %v4150, %v4310
    %4312 = vmatmul.f32.gmra.mxu0 %v3132
    %v4313 = vpop.f32.mrf.mxu0
    %v4314 = vadd.f32 %v4153, %v4313
    %4315 = vmatmul.f32.gmra.mxu0 %v3150
    %v4316 = vpop.f32.mrf.mxu0
    %v4317 = vadd.f32 %v4156, %v4316
    %4318 = vmatmul.f32.gmra.mxu0 %v3168
    %v4319 = vpop.f32.mrf.mxu0
    %v4320 = vadd.f32 %v4159, %v4319
    %4321 = vmatmul.f32.gmra.mxu0 %v3186
    %v4322 = vpop.f32.mrf.mxu0
    %v4323 = vadd.f32 %v4162, %v4322
    %4324 = vdwg.mxu0
    %4325 = vmatpush.msra.mxu0 %v2173
    %4326 = vmatpush.msra.mxu0 %v2172
    %4327 = vmatpush.msra.mxu0 %v2171
    %4328 = vmatpush.msra.mxu0 %v2170
    %4329 = vmatpush.msra.mxu0 %v2169
    %4330 = vmatpush.msra.mxu0 %v2168
    %4331 = vmatpush.msra.mxu0 %v2167
    %4332 = vmatpush.msra.mxu0 %v2166
    %4333 = vmatpush.msra.mxu0 %v2165
    %4334 = vmatpush.msra.mxu0 %v2164
    %4335 = vmatpush.msra.mxu0 %v2163
    %4336 = vmatpush.msra.mxu0 %v2162
    %4337 = vmatpush.msra.mxu0 %v2161
    %4338 = vmatpush.msra.mxu0 %v2160
    %4339 = vmatpush.msra.mxu0 %v2159
    %4340 = vmatpush.msra.mxu0 %v2158
    %4341 = vmatmul.f32.gmra.mxu0 %v2341
    %v4342 = vpop.f32.mrf.mxu0
    %v4343 = vadd.f32 %v4182, %v4342
    %4344 = vmatmul.f32.gmra.mxu0 %v2359
    %v4345 = vpop.f32.mrf.mxu0
    %v4346 = vadd.f32 %v4185, %v4345
    %4347 = vmatmul.f32.gmra.mxu0 %v2377
    %v4348 = vpop.f32.mrf.mxu0
    %v4349 = vadd.f32 %v4188, %v4348
    %4350 = vmatmul.f32.gmra.mxu0 %v2395
    %v4351 = vpop.f32.mrf.mxu0
    %v4352 = vadd.f32 %v4191, %v4351
    %4353 = vmatmul.f32.gmra.mxu0 %v2413
    %v4354 = vpop.f32.mrf.mxu0
    %v4355 = vadd.f32 %v4194, %v4354
    %4356 = vmatmul.f32.gmra.mxu0 %v2431
    %v4357 = vpop.f32.mrf.mxu0
    %v4358 = vadd.f32 %v4197, %v4357
    %4359 = vmatmul.f32.gmra.mxu0 %v2449
    %v4360 = vpop.f32.mrf.mxu0
    %v4361 = vadd.f32 %v4200, %v4360
    %4362 = vmatmul.f32.gmra.mxu0 %v2467
    %v4363 = vpop.f32.mrf.mxu0
    %v4364 = vadd.f32 %v4203, %v4363
    %4365 = vmatmul.f32.gmra.mxu0 %v2485
    %v4366 = vpop.f32.mrf.mxu0
    %v4367 = vadd.f32 %v4206, %v4366
    %4368 = vmatmul.f32.gmra.mxu0 %v2503
    %v4369 = vpop.f32.mrf.mxu0
    %v4370 = vadd.f32 %v4209, %v4369
    %4371 = vmatmul.f32.gmra.mxu0 %v2521
    %v4372 = vpop.f32.mrf.mxu0
    %v4373 = vadd.f32 %v4212, %v4372
    %4374 = vmatmul.f32.gmra.mxu0 %v2539
    %v4375 = vpop.f32.mrf.mxu0
    %v4376 = vadd.f32 %v4215, %v4375
    %4377 = vmatmul.f32.gmra.mxu0 %v2557
    %v4378 = vpop.f32.mrf.mxu0
    %v4379 = vadd.f32 %v4218, %v4378
    %4380 = vmatmul.f32.gmra.mxu0 %v2575
    %v4381 = vpop.f32.mrf.mxu0
    %v4382 = vadd.f32 %v4221, %v4381
    %4383 = vmatmul.f32.gmra.mxu0 %v2593
    %v4384 = vpop.f32.mrf.mxu0
    %v4385 = vadd.f32 %v4224, %v4384
    %4386 = vmatmul.f32.gmra.mxu0 %v2611
    %v4387 = vpop.f32.mrf.mxu0
    %v4388 = vadd.f32 %v4227, %v4387
    %4389 = vmatmul.f32.gmra.mxu0 %v2629
    %v4390 = vpop.f32.mrf.mxu0
    %v4391 = vadd.f32 %v4230, %v4390
    %4392 = vmatmul.f32.gmra.mxu0 %v2647
    %v4393 = vpop.f32.mrf.mxu0
    %v4394 = vadd.f32 %v4233, %v4393
    %4395 = vmatmul.f32.gmra.mxu0 %v2665
    %v4396 = vpop.f32.mrf.mxu0
    %v4397 = vadd.f32 %v4236, %v4396
    %4398 = vmatmul.f32.gmra.mxu0 %v2683
    %v4399 = vpop.f32.mrf.mxu0
    %v4400 = vadd.f32 %v4239, %v4399
    %4401 = vmatmul.f32.gmra.mxu0 %v2701
    %v4402 = vpop.f32.mrf.mxu0
    %v4403 = vadd.f32 %v4242, %v4402
    %4404 = vmatmul.f32.gmra.mxu0 %v2719
    %v4405 = vpop.f32.mrf.mxu0
    %v4406 = vadd.f32 %v4245, %v4405
    %4407 = vmatmul.f32.gmra.mxu0 %v2737
    %v4408 = vpop.f32.mrf.mxu0
    %v4409 = vadd.f32 %v4248, %v4408
    %4410 = vmatmul.f32.gmra.mxu0 %v2755
    %v4411 = vpop.f32.mrf.mxu0
    %v4412 = vadd.f32 %v4251, %v4411
    %4413 = vmatmul.f32.gmra.mxu0 %v2773
    %v4414 = vpop.f32.mrf.mxu0
    %v4415 = vadd.f32 %v4254, %v4414
    %4416 = vmatmul.f32.gmra.mxu0 %v2791
    %v4417 = vpop.f32.mrf.mxu0
    %v4418 = vadd.f32 %v4257, %v4417
    %4419 = vmatmul.f32.gmra.mxu0 %v2809
    %v4420 = vpop.f32.mrf.mxu0
    %v4421 = vadd.f32 %v4260, %v4420
    %4422 = vmatmul.f32.gmra.mxu0 %v2827
    %v4423 = vpop.f32.mrf.mxu0
    %v4424 = vadd.f32 %v4263, %v4423
    %4425 = vmatmul.f32.gmra.mxu0 %v2845
    %v4426 = vpop.f32.mrf.mxu0
    %v4427 = vadd.f32 %v4266, %v4426
    %4428 = vmatmul.f32.gmra.mxu0 %v2863
    %v4429 = vpop.f32.mrf.mxu0
    %v4430 = vadd.f32 %v4269, %v4429
    %4431 = vmatmul.f32.gmra.mxu0 %v2881
    %v4432 = vpop.f32.mrf.mxu0
    %v4433 = vadd.f32 %v4272, %v4432
    %4434 = vmatmul.f32.gmra.mxu0 %v2899
    %v4435 = vpop.f32.mrf.mxu0
    %v4436 = vadd.f32 %v4275, %v4435
    %4437 = vmatmul.f32.gmra.mxu0 %v2917
    %v4438 = vpop.f32.mrf.mxu0
    %v4439 = vadd.f32 %v4278, %v4438
    %4440 = vmatmul.f32.gmra.mxu0 %v2935
    %v4441 = vpop.f32.mrf.mxu0
    %v4442 = vadd.f32 %v4281, %v4441
    %4443 = vmatmul.f32.gmra.mxu0 %v2953
    %v4444 = vpop.f32.mrf.mxu0
    %v4445 = vadd.f32 %v4284, %v4444
    %4446 = vmatmul.f32.gmra.mxu0 %v2971
    %v4447 = vpop.f32.mrf.mxu0
    %v4448 = vadd.f32 %v4287, %v4447
    %4449 = vmatmul.f32.gmra.mxu0 %v2989
    %v4450 = vpop.f32.mrf.mxu0
    %v4451 = vadd.f32 %v4290, %v4450
    %4452 = vmatmul.f32.gmra.mxu0 %v3007
    %v4453 = vpop.f32.mrf.mxu0
    %v4454 = vadd.f32 %v4293, %v4453
    %4455 = vmatmul.f32.gmra.mxu0 %v3025
    %v4456 = vpop.f32.mrf.mxu0
    %v4457 = vadd.f32 %v4296, %v4456
    %4458 = vmatmul.f32.gmra.mxu0 %v3043
    %v4459 = vpop.f32.mrf.mxu0
    %v4460 = vadd.f32 %v4299, %v4459
    %4461 = vmatmul.f32.gmra.mxu0 %v3061
    %v4462 = vpop.f32.mrf.mxu0
    %v4463 = vadd.f32 %v4302, %v4462
    %4464 = vmatmul.f32.gmra.mxu0 %v3079
    %v4465 = vpop.f32.mrf.mxu0
    %v4466 = vadd.f32 %v4305, %v4465
    %4467 = vmatmul.f32.gmra.mxu0 %v3097
    %v4468 = vpop.f32.mrf.mxu0
    %v4469 = vadd.f32 %v4308, %v4468
    %4470 = vmatmul.f32.gmra.mxu0 %v3115
    %v4471 = vpop.f32.mrf.mxu0
    %v4472 = vadd.f32 %v4311, %v4471
    %4473 = vmatmul.f32.gmra.mxu0 %v3133
    %v4474 = vpop.f32.mrf.mxu0
    %v4475 = vadd.f32 %v4314, %v4474
    %4476 = vmatmul.f32.gmra.mxu0 %v3151
    %v4477 = vpop.f32.mrf.mxu0
    %v4478 = vadd.f32 %v4317, %v4477
    %4479 = vmatmul.f32.gmra.mxu0 %v3169
    %v4480 = vpop.f32.mrf.mxu0
    %v4481 = vadd.f32 %v4320, %v4480
    %4482 = vmatmul.f32.gmra.mxu0 %v3187
    %v4483 = vpop.f32.mrf.mxu0
    %v4484 = vadd.f32 %v4323, %v4483
    %4485 = vdwg.mxu0
    %4486 = vmatpush.msra.mxu0 %v2189
    %4487 = vmatpush.msra.mxu0 %v2188
    %4488 = vmatpush.msra.mxu0 %v2187
    %4489 = vmatpush.msra.mxu0 %v2186
    %4490 = vmatpush.msra.mxu0 %v2185
    %4491 = vmatpush.msra.mxu0 %v2184
    %4492 = vmatpush.msra.mxu0 %v2183
    %4493 = vmatpush.msra.mxu0 %v2182
    %4494 = vmatpush.msra.mxu0 %v2181
    %4495 = vmatpush.msra.mxu0 %v2180
    %4496 = vmatpush.msra.mxu0 %v2179
    %4497 = vmatpush.msra.mxu0 %v2178
    %4498 = vmatpush.msra.mxu0 %v2177
    %4499 = vmatpush.msra.mxu0 %v2176
    %4500 = vmatpush.msra.mxu0 %v2175
    %4501 = vmatpush.msra.mxu0 %v2174
    %4502 = vmatmul.f32.gmra.mxu0 %v2342
    %v4503 = vpop.f32.mrf.mxu0
    %v4504 = vadd.f32 %v4343, %v4503
    %4505 = vmatmul.f32.gmra.mxu0 %v2360
    %v4506 = vpop.f32.mrf.mxu0
    %v4507 = vadd.f32 %v4346, %v4506
    %4508 = vmatmul.f32.gmra.mxu0 %v2378
    %v4509 = vpop.f32.mrf.mxu0
    %v4510 = vadd.f32 %v4349, %v4509
    %4511 = vmatmul.f32.gmra.mxu0 %v2396
    %v4512 = vpop.f32.mrf.mxu0
    %v4513 = vadd.f32 %v4352, %v4512
    %4514 = vmatmul.f32.gmra.mxu0 %v2414
    %v4515 = vpop.f32.mrf.mxu0
    %v4516 = vadd.f32 %v4355, %v4515
    %4517 = vmatmul.f32.gmra.mxu0 %v2432
    %v4518 = vpop.f32.mrf.mxu0
    %v4519 = vadd.f32 %v4358, %v4518
    %4520 = vmatmul.f32.gmra.mxu0 %v2450
    %v4521 = vpop.f32.mrf.mxu0
    %v4522 = vadd.f32 %v4361, %v4521
    %4523 = vmatmul.f32.gmra.mxu0 %v2468
    %v4524 = vpop.f32.mrf.mxu0
    %v4525 = vadd.f32 %v4364, %v4524
    %4526 = vmatmul.f32.gmra.mxu0 %v2486
    %v4527 = vpop.f32.mrf.mxu0
    %v4528 = vadd.f32 %v4367, %v4527
    %4529 = vmatmul.f32.gmra.mxu0 %v2504
    %v4530 = vpop.f32.mrf.mxu0
    %v4531 = vadd.f32 %v4370, %v4530
    %4532 = vmatmul.f32.gmra.mxu0 %v2522
    %v4533 = vpop.f32.mrf.mxu0
    %v4534 = vadd.f32 %v4373, %v4533
    %4535 = vmatmul.f32.gmra.mxu0 %v2540
    %v4536 = vpop.f32.mrf.mxu0
    %v4537 = vadd.f32 %v4376, %v4536
    %4538 = vmatmul.f32.gmra.mxu0 %v2558
    %v4539 = vpop.f32.mrf.mxu0
    %v4540 = vadd.f32 %v4379, %v4539
    %4541 = vmatmul.f32.gmra.mxu0 %v2576
    %v4542 = vpop.f32.mrf.mxu0
    %v4543 = vadd.f32 %v4382, %v4542
    %4544 = vmatmul.f32.gmra.mxu0 %v2594
    %v4545 = vpop.f32.mrf.mxu0
    %v4546 = vadd.f32 %v4385, %v4545
    %4547 = vmatmul.f32.gmra.mxu0 %v2612
    %v4548 = vpop.f32.mrf.mxu0
    %v4549 = vadd.f32 %v4388, %v4548
    %4550 = vmatmul.f32.gmra.mxu0 %v2630
    %v4551 = vpop.f32.mrf.mxu0
    %v4552 = vadd.f32 %v4391, %v4551
    %4553 = vmatmul.f32.gmra.mxu0 %v2648
    %v4554 = vpop.f32.mrf.mxu0
    %v4555 = vadd.f32 %v4394, %v4554
    %4556 = vmatmul.f32.gmra.mxu0 %v2666
    %v4557 = vpop.f32.mrf.mxu0
    %v4558 = vadd.f32 %v4397, %v4557
    %4559 = vmatmul.f32.gmra.mxu0 %v2684
    %v4560 = vpop.f32.mrf.mxu0
    %v4561 = vadd.f32 %v4400, %v4560
    %4562 = vmatmul.f32.gmra.mxu0 %v2702
    %v4563 = vpop.f32.mrf.mxu0
    %v4564 = vadd.f32 %v4403, %v4563
    %4565 = vmatmul.f32.gmra.mxu0 %v2720
    %v4566 = vpop.f32.mrf.mxu0
    %v4567 = vadd.f32 %v4406, %v4566
    %4568 = vmatmul.f32.gmra.mxu0 %v2738
    %v4569 = vpop.f32.mrf.mxu0
    %v4570 = vadd.f32 %v4409, %v4569
    %4571 = vmatmul.f32.gmra.mxu0 %v2756
    %v4572 = vpop.f32.mrf.mxu0
    %v4573 = vadd.f32 %v4412, %v4572
    %4574 = vmatmul.f32.gmra.mxu0 %v2774
    %v4575 = vpop.f32.mrf.mxu0
    %v4576 = vadd.f32 %v4415, %v4575
    %4577 = vmatmul.f32.gmra.mxu0 %v2792
    %v4578 = vpop.f32.mrf.mxu0
    %v4579 = vadd.f32 %v4418, %v4578
    %4580 = vmatmul.f32.gmra.mxu0 %v2810
    %v4581 = vpop.f32.mrf.mxu0
    %v4582 = vadd.f32 %v4421, %v4581
    %4583 = vmatmul.f32.gmra.mxu0 %v2828
    %v4584 = vpop.f32.mrf.mxu0
    %v4585 = vadd.f32 %v4424, %v4584
    %4586 = vmatmul.f32.gmra.mxu0 %v2846
    %v4587 = vpop.f32.mrf.mxu0
    %v4588 = vadd.f32 %v4427, %v4587
    %4589 = vmatmul.f32.gmra.mxu0 %v2864
    %v4590 = vpop.f32.mrf.mxu0
    %v4591 = vadd.f32 %v4430, %v4590
    %4592 = vmatmul.f32.gmra.mxu0 %v2882
    %v4593 = vpop.f32.mrf.mxu0
    %v4594 = vadd.f32 %v4433, %v4593
    %4595 = vmatmul.f32.gmra.mxu0 %v2900
    %v4596 = vpop.f32.mrf.mxu0
    %v4597 = vadd.f32 %v4436, %v4596
    %4598 = vmatmul.f32.gmra.mxu0 %v2918
    %v4599 = vpop.f32.mrf.mxu0
    %v4600 = vadd.f32 %v4439, %v4599
    %4601 = vmatmul.f32.gmra.mxu0 %v2936
    %v4602 = vpop.f32.mrf.mxu0
    %v4603 = vadd.f32 %v4442, %v4602
    %4604 = vmatmul.f32.gmra.mxu0 %v2954
    %v4605 = vpop.f32.mrf.mxu0
    %v4606 = vadd.f32 %v4445, %v4605
    %4607 = vmatmul.f32.gmra.mxu0 %v2972
    %v4608 = vpop.f32.mrf.mxu0
    %v4609 = vadd.f32 %v4448, %v4608
    %4610 = vmatmul.f32.gmra.mxu0 %v2990
    %v4611 = vpop.f32.mrf.mxu0
    %v4612 = vadd.f32 %v4451, %v4611
    %4613 = vmatmul.f32.gmra.mxu0 %v3008
    %v4614 = vpop.f32.mrf.mxu0
    %v4615 = vadd.f32 %v4454, %v4614
    %4616 = vmatmul.f32.gmra.mxu0 %v3026
    %v4617 = vpop.f32.mrf.mxu0
    %v4618 = vadd.f32 %v4457, %v4617
    %4619 = vmatmul.f32.gmra.mxu0 %v3044
    %v4620 = vpop.f32.mrf.mxu0
    %v4621 = vadd.f32 %v4460, %v4620
    %4622 = vmatmul.f32.gmra.mxu0 %v3062
    %v4623 = vpop.f32.mrf.mxu0
    %v4624 = vadd.f32 %v4463, %v4623
    %4625 = vmatmul.f32.gmra.mxu0 %v3080
    %v4626 = vpop.f32.mrf.mxu0
    %v4627 = vadd.f32 %v4466, %v4626
    %4628 = vmatmul.f32.gmra.mxu0 %v3098
    %v4629 = vpop.f32.mrf.mxu0
    %v4630 = vadd.f32 %v4469, %v4629
    %4631 = vmatmul.f32.gmra.mxu0 %v3116
    %v4632 = vpop.f32.mrf.mxu0
    %v4633 = vadd.f32 %v4472, %v4632
    %4634 = vmatmul.f32.gmra.mxu0 %v3134
    %v4635 = vpop.f32.mrf.mxu0
    %v4636 = vadd.f32 %v4475, %v4635
    %4637 = vmatmul.f32.gmra.mxu0 %v3152
    %v4638 = vpop.f32.mrf.mxu0
    %v4639 = vadd.f32 %v4478, %v4638
    %4640 = vmatmul.f32.gmra.mxu0 %v3170
    %v4641 = vpop.f32.mrf.mxu0
    %v4642 = vadd.f32 %v4481, %v4641
    %4643 = vmatmul.f32.gmra.mxu0 %v3188
    %v4644 = vpop.f32.mrf.mxu0
    %v4645 = vadd.f32 %v4484, %v4644
    %4646 = vdwg.mxu0
    %4647 = vmatpush.msra.mxu0 %v2205
    %4648 = vmatpush.msra.mxu0 %v2204
    %4649 = vmatpush.msra.mxu0 %v2203
    %4650 = vmatpush.msra.mxu0 %v2202
    %4651 = vmatpush.msra.mxu0 %v2201
    %4652 = vmatpush.msra.mxu0 %v2200
    %4653 = vmatpush.msra.mxu0 %v2199
    %4654 = vmatpush.msra.mxu0 %v2198
    %4655 = vmatpush.msra.mxu0 %v2197
    %4656 = vmatpush.msra.mxu0 %v2196
    %4657 = vmatpush.msra.mxu0 %v2195
    %4658 = vmatpush.msra.mxu0 %v2194
    %4659 = vmatpush.msra.mxu0 %v2193
    %4660 = vmatpush.msra.mxu0 %v2192
    %4661 = vmatpush.msra.mxu0 %v2191
    %4662 = vmatpush.msra.mxu0 %v2190
    %4663 = vmatmul.f32.gmra.mxu0 %v2343
    %v4664 = vpop.f32.mrf.mxu0
    %v4665 = vadd.f32 %v4504, %v4664
    %4666 = vmatmul.f32.gmra.mxu0 %v2361
    %v4667 = vpop.f32.mrf.mxu0
    %v4668 = vadd.f32 %v4507, %v4667
    %4669 = vmatmul.f32.gmra.mxu0 %v2379
    %v4670 = vpop.f32.mrf.mxu0
    %v4671 = vadd.f32 %v4510, %v4670
    %4672 = vmatmul.f32.gmra.mxu0 %v2397
    %v4673 = vpop.f32.mrf.mxu0
    %v4674 = vadd.f32 %v4513, %v4673
    %4675 = vmatmul.f32.gmra.mxu0 %v2415
    %v4676 = vpop.f32.mrf.mxu0
    %v4677 = vadd.f32 %v4516, %v4676
    %4678 = vmatmul.f32.gmra.mxu0 %v2433
    %v4679 = vpop.f32.mrf.mxu0
    %v4680 = vadd.f32 %v4519, %v4679
    %4681 = vmatmul.f32.gmra.mxu0 %v2451
    %v4682 = vpop.f32.mrf.mxu0
    %v4683 = vadd.f32 %v4522, %v4682
    %4684 = vmatmul.f32.gmra.mxu0 %v2469
    %v4685 = vpop.f32.mrf.mxu0
    %v4686 = vadd.f32 %v4525, %v4685
    %4687 = vmatmul.f32.gmra.mxu0 %v2487
    %v4688 = vpop.f32.mrf.mxu0
    %v4689 = vadd.f32 %v4528, %v4688
    %4690 = vmatmul.f32.gmra.mxu0 %v2505
    %v4691 = vpop.f32.mrf.mxu0
    %v4692 = vadd.f32 %v4531, %v4691
    %4693 = vmatmul.f32.gmra.mxu0 %v2523
    %v4694 = vpop.f32.mrf.mxu0
    %v4695 = vadd.f32 %v4534, %v4694
    %4696 = vmatmul.f32.gmra.mxu0 %v2541
    %v4697 = vpop.f32.mrf.mxu0
    %v4698 = vadd.f32 %v4537, %v4697
    %4699 = vmatmul.f32.gmra.mxu0 %v2559
    %v4700 = vpop.f32.mrf.mxu0
    %v4701 = vadd.f32 %v4540, %v4700
    %4702 = vmatmul.f32.gmra.mxu0 %v2577
    %v4703 = vpop.f32.mrf.mxu0
    %v4704 = vadd.f32 %v4543, %v4703
    %4705 = vmatmul.f32.gmra.mxu0 %v2595
    %v4706 = vpop.f32.mrf.mxu0
    %v4707 = vadd.f32 %v4546, %v4706
    %4708 = vmatmul.f32.gmra.mxu0 %v2613
    %v4709 = vpop.f32.mrf.mxu0
    %v4710 = vadd.f32 %v4549, %v4709
    %4711 = vmatmul.f32.gmra.mxu0 %v2631
    %v4712 = vpop.f32.mrf.mxu0
    %v4713 = vadd.f32 %v4552, %v4712
    %4714 = vmatmul.f32.gmra.mxu0 %v2649
    %v4715 = vpop.f32.mrf.mxu0
    %v4716 = vadd.f32 %v4555, %v4715
    %4717 = vmatmul.f32.gmra.mxu0 %v2667
    %v4718 = vpop.f32.mrf.mxu0
    %v4719 = vadd.f32 %v4558, %v4718
    %4720 = vmatmul.f32.gmra.mxu0 %v2685
    %v4721 = vpop.f32.mrf.mxu0
    %v4722 = vadd.f32 %v4561, %v4721
    %4723 = vmatmul.f32.gmra.mxu0 %v2703
    %v4724 = vpop.f32.mrf.mxu0
    %v4725 = vadd.f32 %v4564, %v4724
    %4726 = vmatmul.f32.gmra.mxu0 %v2721
    %v4727 = vpop.f32.mrf.mxu0
    %v4728 = vadd.f32 %v4567, %v4727
    %4729 = vmatmul.f32.gmra.mxu0 %v2739
    %v4730 = vpop.f32.mrf.mxu0
    %v4731 = vadd.f32 %v4570, %v4730
    %4732 = vmatmul.f32.gmra.mxu0 %v2757
    %v4733 = vpop.f32.mrf.mxu0
    %v4734 = vadd.f32 %v4573, %v4733
    %4735 = vmatmul.f32.gmra.mxu0 %v2775
    %v4736 = vpop.f32.mrf.mxu0
    %v4737 = vadd.f32 %v4576, %v4736
    %4738 = vmatmul.f32.gmra.mxu0 %v2793
    %v4739 = vpop.f32.mrf.mxu0
    %v4740 = vadd.f32 %v4579, %v4739
    %4741 = vmatmul.f32.gmra.mxu0 %v2811
    %v4742 = vpop.f32.mrf.mxu0
    %v4743 = vadd.f32 %v4582, %v4742
    %4744 = vmatmul.f32.gmra.mxu0 %v2829
    %v4745 = vpop.f32.mrf.mxu0
    %v4746 = vadd.f32 %v4585, %v4745
    %4747 = vmatmul.f32.gmra.mxu0 %v2847
    %v4748 = vpop.f32.mrf.mxu0
    %v4749 = vadd.f32 %v4588, %v4748
    %4750 = vmatmul.f32.gmra.mxu0 %v2865
    %v4751 = vpop.f32.mrf.mxu0
    %v4752 = vadd.f32 %v4591, %v4751
    %4753 = vmatmul.f32.gmra.mxu0 %v2883
    %v4754 = vpop.f32.mrf.mxu0
    %v4755 = vadd.f32 %v4594, %v4754
    %4756 = vmatmul.f32.gmra.mxu0 %v2901
    %v4757 = vpop.f32.mrf.mxu0
    %v4758 = vadd.f32 %v4597, %v4757
    %4759 = vmatmul.f32.gmra.mxu0 %v2919
    %v4760 = vpop.f32.mrf.mxu0
    %v4761 = vadd.f32 %v4600, %v4760
    %4762 = vmatmul.f32.gmra.mxu0 %v2937
    %v4763 = vpop.f32.mrf.mxu0
    %v4764 = vadd.f32 %v4603, %v4763
    %4765 = vmatmul.f32.gmra.mxu0 %v2955
    %v4766 = vpop.f32.mrf.mxu0
    %v4767 = vadd.f32 %v4606, %v4766
    %4768 = vmatmul.f32.gmra.mxu0 %v2973
    %v4769 = vpop.f32.mrf.mxu0
    %v4770 = vadd.f32 %v4609, %v4769
    %4771 = vmatmul.f32.gmra.mxu0 %v2991
    %v4772 = vpop.f32.mrf.mxu0
    %v4773 = vadd.f32 %v4612, %v4772
    %4774 = vmatmul.f32.gmra.mxu0 %v3009
    %v4775 = vpop.f32.mrf.mxu0
    %v4776 = vadd.f32 %v4615, %v4775
    %4777 = vmatmul.f32.gmra.mxu0 %v3027
    %v4778 = vpop.f32.mrf.mxu0
    %v4779 = vadd.f32 %v4618, %v4778
    %4780 = vmatmul.f32.gmra.mxu0 %v3045
    %v4781 = vpop.f32.mrf.mxu0
    %v4782 = vadd.f32 %v4621, %v4781
    %4783 = vmatmul.f32.gmra.mxu0 %v3063
    %v4784 = vpop.f32.mrf.mxu0
    %v4785 = vadd.f32 %v4624, %v4784
    %4786 = vmatmul.f32.gmra.mxu0 %v3081
    %v4787 = vpop.f32.mrf.mxu0
    %v4788 = vadd.f32 %v4627, %v4787
    %4789 = vmatmul.f32.gmra.mxu0 %v3099
    %v4790 = vpop.f32.mrf.mxu0
    %v4791 = vadd.f32 %v4630, %v4790
    %4792 = vmatmul.f32.gmra.mxu0 %v3117
    %v4793 = vpop.f32.mrf.mxu0
    %v4794 = vadd.f32 %v4633, %v4793
    %4795 = vmatmul.f32.gmra.mxu0 %v3135
    %v4796 = vpop.f32.mrf.mxu0
    %v4797 = vadd.f32 %v4636, %v4796
    %4798 = vmatmul.f32.gmra.mxu0 %v3153
    %v4799 = vpop.f32.mrf.mxu0
    %v4800 = vadd.f32 %v4639, %v4799
    %4801 = vmatmul.f32.gmra.mxu0 %v3171
    %v4802 = vpop.f32.mrf.mxu0
    %v4803 = vadd.f32 %v4642, %v4802
    %4804 = vmatmul.f32.gmra.mxu0 %v3189
    %v4805 = vpop.f32.mrf.mxu0
    %v4806 = vadd.f32 %v4645, %v4805
    %4807 = vdwg.mxu0
    %4808 = vmatpush.msra.mxu0 %v2221
    %4809 = vmatpush.msra.mxu0 %v2220
    %4810 = vmatpush.msra.mxu0 %v2219
    %4811 = vmatpush.msra.mxu0 %v2218
    %4812 = vmatpush.msra.mxu0 %v2217
    %4813 = vmatpush.msra.mxu0 %v2216
    %4814 = vmatpush.msra.mxu0 %v2215
    %4815 = vmatpush.msra.mxu0 %v2214
    %4816 = vmatpush.msra.mxu0 %v2213
    %4817 = vmatpush.msra.mxu0 %v2212
    %4818 = vmatpush.msra.mxu0 %v2211
    %4819 = vmatpush.msra.mxu0 %v2210
    %4820 = vmatpush.msra.mxu0 %v2209
    %4821 = vmatpush.msra.mxu0 %v2208
    %4822 = vmatpush.msra.mxu0 %v2207
    %4823 = vmatpush.msra.mxu0 %v2206
    %4824 = vmatmul.f32.gmra.mxu0 %v2344
    %v4825 = vpop.f32.mrf.mxu0
    %v4826 = vadd.f32 %v4665, %v4825
    %4827 = vmatmul.f32.gmra.mxu0 %v2362
    %v4828 = vpop.f32.mrf.mxu0
    %v4829 = vadd.f32 %v4668, %v4828
    %4830 = vmatmul.f32.gmra.mxu0 %v2380
    %v4831 = vpop.f32.mrf.mxu0
    %v4832 = vadd.f32 %v4671, %v4831
    %4833 = vmatmul.f32.gmra.mxu0 %v2398
    %v4834 = vpop.f32.mrf.mxu0
    %v4835 = vadd.f32 %v4674, %v4834
    %4836 = vmatmul.f32.gmra.mxu0 %v2416
    %v4837 = vpop.f32.mrf.mxu0
    %v4838 = vadd.f32 %v4677, %v4837
    %4839 = vmatmul.f32.gmra.mxu0 %v2434
    %v4840 = vpop.f32.mrf.mxu0
    %v4841 = vadd.f32 %v4680, %v4840
    %4842 = vmatmul.f32.gmra.mxu0 %v2452
    %v4843 = vpop.f32.mrf.mxu0
    %v4844 = vadd.f32 %v4683, %v4843
    %4845 = vmatmul.f32.gmra.mxu0 %v2470
    %v4846 = vpop.f32.mrf.mxu0
    %v4847 = vadd.f32 %v4686, %v4846
    %4848 = vmatmul.f32.gmra.mxu0 %v2488
    %v4849 = vpop.f32.mrf.mxu0
    %v4850 = vadd.f32 %v4689, %v4849
    %4851 = vmatmul.f32.gmra.mxu0 %v2506
    %v4852 = vpop.f32.mrf.mxu0
    %v4853 = vadd.f32 %v4692, %v4852
    %4854 = vmatmul.f32.gmra.mxu0 %v2524
    %v4855 = vpop.f32.mrf.mxu0
    %v4856 = vadd.f32 %v4695, %v4855
    %4857 = vmatmul.f32.gmra.mxu0 %v2542
    %v4858 = vpop.f32.mrf.mxu0
    %v4859 = vadd.f32 %v4698, %v4858
    %4860 = vmatmul.f32.gmra.mxu0 %v2560
    %v4861 = vpop.f32.mrf.mxu0
    %v4862 = vadd.f32 %v4701, %v4861
    %4863 = vmatmul.f32.gmra.mxu0 %v2578
    %v4864 = vpop.f32.mrf.mxu0
    %v4865 = vadd.f32 %v4704, %v4864
    %4866 = vmatmul.f32.gmra.mxu0 %v2596
    %v4867 = vpop.f32.mrf.mxu0
    %v4868 = vadd.f32 %v4707, %v4867
    %4869 = vmatmul.f32.gmra.mxu0 %v2614
    %v4870 = vpop.f32.mrf.mxu0
    %v4871 = vadd.f32 %v4710, %v4870
    %4872 = vmatmul.f32.gmra.mxu0 %v2632
    %v4873 = vpop.f32.mrf.mxu0
    %v4874 = vadd.f32 %v4713, %v4873
    %4875 = vmatmul.f32.gmra.mxu0 %v2650
    %v4876 = vpop.f32.mrf.mxu0
    %v4877 = vadd.f32 %v4716, %v4876
    %4878 = vmatmul.f32.gmra.mxu0 %v2668
    %v4879 = vpop.f32.mrf.mxu0
    %v4880 = vadd.f32 %v4719, %v4879
    %4881 = vmatmul.f32.gmra.mxu0 %v2686
    %v4882 = vpop.f32.mrf.mxu0
    %v4883 = vadd.f32 %v4722, %v4882
    %4884 = vmatmul.f32.gmra.mxu0 %v2704
    %v4885 = vpop.f32.mrf.mxu0
    %v4886 = vadd.f32 %v4725, %v4885
    %4887 = vmatmul.f32.gmra.mxu0 %v2722
    %v4888 = vpop.f32.mrf.mxu0
    %v4889 = vadd.f32 %v4728, %v4888
    %4890 = vmatmul.f32.gmra.mxu0 %v2740
    %v4891 = vpop.f32.mrf.mxu0
    %v4892 = vadd.f32 %v4731, %v4891
    %4893 = vmatmul.f32.gmra.mxu0 %v2758
    %v4894 = vpop.f32.mrf.mxu0
    %v4895 = vadd.f32 %v4734, %v4894
    %4896 = vmatmul.f32.gmra.mxu0 %v2776
    %v4897 = vpop.f32.mrf.mxu0
    %v4898 = vadd.f32 %v4737, %v4897
    %4899 = vmatmul.f32.gmra.mxu0 %v2794
    %v4900 = vpop.f32.mrf.mxu0
    %v4901 = vadd.f32 %v4740, %v4900
    %4902 = vmatmul.f32.gmra.mxu0 %v2812
    %v4903 = vpop.f32.mrf.mxu0
    %v4904 = vadd.f32 %v4743, %v4903
    %4905 = vmatmul.f32.gmra.mxu0 %v2830
    %v4906 = vpop.f32.mrf.mxu0
    %v4907 = vadd.f32 %v4746, %v4906
    %4908 = vmatmul.f32.gmra.mxu0 %v2848
    %v4909 = vpop.f32.mrf.mxu0
    %v4910 = vadd.f32 %v4749, %v4909
    %4911 = vmatmul.f32.gmra.mxu0 %v2866
    %v4912 = vpop.f32.mrf.mxu0
    %v4913 = vadd.f32 %v4752, %v4912
    %4914 = vmatmul.f32.gmra.mxu0 %v2884
    %v4915 = vpop.f32.mrf.mxu0
    %v4916 = vadd.f32 %v4755, %v4915
    %4917 = vmatmul.f32.gmra.mxu0 %v2902
    %v4918 = vpop.f32.mrf.mxu0
    %v4919 = vadd.f32 %v4758, %v4918
    %4920 = vmatmul.f32.gmra.mxu0 %v2920
    %v4921 = vpop.f32.mrf.mxu0
    %v4922 = vadd.f32 %v4761, %v4921
    %4923 = vmatmul.f32.gmra.mxu0 %v2938
    %v4924 = vpop.f32.mrf.mxu0
    %v4925 = vadd.f32 %v4764, %v4924
    %4926 = vmatmul.f32.gmra.mxu0 %v2956
    %v4927 = vpop.f32.mrf.mxu0
    %v4928 = vadd.f32 %v4767, %v4927
    %4929 = vmatmul.f32.gmra.mxu0 %v2974
    %v4930 = vpop.f32.mrf.mxu0
    %v4931 = vadd.f32 %v4770, %v4930
    %4932 = vmatmul.f32.gmra.mxu0 %v2992
    %v4933 = vpop.f32.mrf.mxu0
    %v4934 = vadd.f32 %v4773, %v4933
    %4935 = vmatmul.f32.gmra.mxu0 %v3010
    %v4936 = vpop.f32.mrf.mxu0
    %v4937 = vadd.f32 %v4776, %v4936
    %4938 = vmatmul.f32.gmra.mxu0 %v3028
    %v4939 = vpop.f32.mrf.mxu0
    %v4940 = vadd.f32 %v4779, %v4939
    %4941 = vmatmul.f32.gmra.mxu0 %v3046
    %v4942 = vpop.f32.mrf.mxu0
    %v4943 = vadd.f32 %v4782, %v4942
    %4944 = vmatmul.f32.gmra.mxu0 %v3064
    %v4945 = vpop.f32.mrf.mxu0
    %v4946 = vadd.f32 %v4785, %v4945
    %4947 = vmatmul.f32.gmra.mxu0 %v3082
    %v4948 = vpop.f32.mrf.mxu0
    %v4949 = vadd.f32 %v4788, %v4948
    %4950 = vmatmul.f32.gmra.mxu0 %v3100
    %v4951 = vpop.f32.mrf.mxu0
    %v4952 = vadd.f32 %v4791, %v4951
    %4953 = vmatmul.f32.gmra.mxu0 %v3118
    %v4954 = vpop.f32.mrf.mxu0
    %v4955 = vadd.f32 %v4794, %v4954
    %4956 = vmatmul.f32.gmra.mxu0 %v3136
    %v4957 = vpop.f32.mrf.mxu0
    %v4958 = vadd.f32 %v4797, %v4957
    %4959 = vmatmul.f32.gmra.mxu0 %v3154
    %v4960 = vpop.f32.mrf.mxu0
    %v4961 = vadd.f32 %v4800, %v4960
    %4962 = vmatmul.f32.gmra.mxu0 %v3172
    %v4963 = vpop.f32.mrf.mxu0
    %v4964 = vadd.f32 %v4803, %v4963
    %4965 = vmatmul.f32.gmra.mxu0 %v3190
    %v4966 = vpop.f32.mrf.mxu0
    %v4967 = vadd.f32 %v4806, %v4966
    %4968 = vdwg.mxu0
    %4969 = vmatpush.msra.mxu0 %v2237
    %4970 = vmatpush.msra.mxu0 %v2236
    %4971 = vmatpush.msra.mxu0 %v2235
    %4972 = vmatpush.msra.mxu0 %v2234
    %4973 = vmatpush.msra.mxu0 %v2233
    %4974 = vmatpush.msra.mxu0 %v2232
    %4975 = vmatpush.msra.mxu0 %v2231
    %4976 = vmatpush.msra.mxu0 %v2230
    %4977 = vmatpush.msra.mxu0 %v2229
    %4978 = vmatpush.msra.mxu0 %v2228
    %4979 = vmatpush.msra.mxu0 %v2227
    %4980 = vmatpush.msra.mxu0 %v2226
    %4981 = vmatpush.msra.mxu0 %v2225
    %4982 = vmatpush.msra.mxu0 %v2224
    %4983 = vmatpush.msra.mxu0 %v2223
    %4984 = vmatpush.msra.mxu0 %v2222
    %4985 = vmatmul.f32.gmra.mxu0 %v2345
    %v4986 = vpop.f32.mrf.mxu0
    %v4987 = vadd.f32 %v4826, %v4986
    %4988 = vmatmul.f32.gmra.mxu0 %v2363
    %v4989 = vpop.f32.mrf.mxu0
    %v4990 = vadd.f32 %v4829, %v4989
    %4991 = vmatmul.f32.gmra.mxu0 %v2381
    %v4992 = vpop.f32.mrf.mxu0
    %v4993 = vadd.f32 %v4832, %v4992
    %4994 = vmatmul.f32.gmra.mxu0 %v2399
    %v4995 = vpop.f32.mrf.mxu0
    %v4996 = vadd.f32 %v4835, %v4995
    %4997 = vmatmul.f32.gmra.mxu0 %v2417
    %v4998 = vpop.f32.mrf.mxu0
    %v4999 = vadd.f32 %v4838, %v4998
    %5000 = vmatmul.f32.gmra.mxu0 %v2435
    %v5001 = vpop.f32.mrf.mxu0
    %v5002 = vadd.f32 %v4841, %v5001
    %5003 = vmatmul.f32.gmra.mxu0 %v2453
    %v5004 = vpop.f32.mrf.mxu0
    %v5005 = vadd.f32 %v4844, %v5004
    %5006 = vmatmul.f32.gmra.mxu0 %v2471
    %v5007 = vpop.f32.mrf.mxu0
    %v5008 = vadd.f32 %v4847, %v5007
    %5009 = vmatmul.f32.gmra.mxu0 %v2489
    %v5010 = vpop.f32.mrf.mxu0
    %v5011 = vadd.f32 %v4850, %v5010
    %5012 = vmatmul.f32.gmra.mxu0 %v2507
    %v5013 = vpop.f32.mrf.mxu0
    %v5014 = vadd.f32 %v4853, %v5013
    %5015 = vmatmul.f32.gmra.mxu0 %v2525
    %v5016 = vpop.f32.mrf.mxu0
    %v5017 = vadd.f32 %v4856, %v5016
    %5018 = vmatmul.f32.gmra.mxu0 %v2543
    %v5019 = vpop.f32.mrf.mxu0
    %v5020 = vadd.f32 %v4859, %v5019
    %5021 = vmatmul.f32.gmra.mxu0 %v2561
    %v5022 = vpop.f32.mrf.mxu0
    %v5023 = vadd.f32 %v4862, %v5022
    %5024 = vmatmul.f32.gmra.mxu0 %v2579
    %v5025 = vpop.f32.mrf.mxu0
    %v5026 = vadd.f32 %v4865, %v5025
    %5027 = vmatmul.f32.gmra.mxu0 %v2597
    %v5028 = vpop.f32.mrf.mxu0
    %v5029 = vadd.f32 %v4868, %v5028
    %5030 = vmatmul.f32.gmra.mxu0 %v2615
    %v5031 = vpop.f32.mrf.mxu0
    %v5032 = vadd.f32 %v4871, %v5031
    %5033 = vmatmul.f32.gmra.mxu0 %v2633
    %v5034 = vpop.f32.mrf.mxu0
    %v5035 = vadd.f32 %v4874, %v5034
    %5036 = vmatmul.f32.gmra.mxu0 %v2651
    %v5037 = vpop.f32.mrf.mxu0
    %v5038 = vadd.f32 %v4877, %v5037
    %5039 = vmatmul.f32.gmra.mxu0 %v2669
    %v5040 = vpop.f32.mrf.mxu0
    %v5041 = vadd.f32 %v4880, %v5040
    %5042 = vmatmul.f32.gmra.mxu0 %v2687
    %v5043 = vpop.f32.mrf.mxu0
    %v5044 = vadd.f32 %v4883, %v5043
    %5045 = vmatmul.f32.gmra.mxu0 %v2705
    %v5046 = vpop.f32.mrf.mxu0
    %v5047 = vadd.f32 %v4886, %v5046
    %5048 = vmatmul.f32.gmra.mxu0 %v2723
    %v5049 = vpop.f32.mrf.mxu0
    %v5050 = vadd.f32 %v4889, %v5049
    %5051 = vmatmul.f32.gmra.mxu0 %v2741
    %v5052 = vpop.f32.mrf.mxu0
    %v5053 = vadd.f32 %v4892, %v5052
    %5054 = vmatmul.f32.gmra.mxu0 %v2759
    %v5055 = vpop.f32.mrf.mxu0
    %v5056 = vadd.f32 %v4895, %v5055
    %5057 = vmatmul.f32.gmra.mxu0 %v2777
    %v5058 = vpop.f32.mrf.mxu0
    %v5059 = vadd.f32 %v4898, %v5058
    %5060 = vmatmul.f32.gmra.mxu0 %v2795
    %v5061 = vpop.f32.mrf.mxu0
    %v5062 = vadd.f32 %v4901, %v5061
    %5063 = vmatmul.f32.gmra.mxu0 %v2813
    %v5064 = vpop.f32.mrf.mxu0
    %v5065 = vadd.f32 %v4904, %v5064
    %5066 = vmatmul.f32.gmra.mxu0 %v2831
    %v5067 = vpop.f32.mrf.mxu0
    %v5068 = vadd.f32 %v4907, %v5067
    %5069 = vmatmul.f32.gmra.mxu0 %v2849
    %v5070 = vpop.f32.mrf.mxu0
    %v5071 = vadd.f32 %v4910, %v5070
    %5072 = vmatmul.f32.gmra.mxu0 %v2867
    %v5073 = vpop.f32.mrf.mxu0
    %v5074 = vadd.f32 %v4913, %v5073
    %5075 = vmatmul.f32.gmra.mxu0 %v2885
    %v5076 = vpop.f32.mrf.mxu0
    %v5077 = vadd.f32 %v4916, %v5076
    %5078 = vmatmul.f32.gmra.mxu0 %v2903
    %v5079 = vpop.f32.mrf.mxu0
    %v5080 = vadd.f32 %v4919, %v5079
    %5081 = vmatmul.f32.gmra.mxu0 %v2921
    %v5082 = vpop.f32.mrf.mxu0
    %v5083 = vadd.f32 %v4922, %v5082
    %5084 = vmatmul.f32.gmra.mxu0 %v2939
    %v5085 = vpop.f32.mrf.mxu0
    %v5086 = vadd.f32 %v4925, %v5085
    %5087 = vmatmul.f32.gmra.mxu0 %v2957
    %v5088 = vpop.f32.mrf.mxu0
    %v5089 = vadd.f32 %v4928, %v5088
    %5090 = vmatmul.f32.gmra.mxu0 %v2975
    %v5091 = vpop.f32.mrf.mxu0
    %v5092 = vadd.f32 %v4931, %v5091
    %5093 = vmatmul.f32.gmra.mxu0 %v2993
    %v5094 = vpop.f32.mrf.mxu0
    %v5095 = vadd.f32 %v4934, %v5094
    %5096 = vmatmul.f32.gmra.mxu0 %v3011
    %v5097 = vpop.f32.mrf.mxu0
    %v5098 = vadd.f32 %v4937, %v5097
    %5099 = vmatmul.f32.gmra.mxu0 %v3029
    %v5100 = vpop.f32.mrf.mxu0
    %v5101 = vadd.f32 %v4940, %v5100
    %5102 = vmatmul.f32.gmra.mxu0 %v3047
    %v5103 = vpop.f32.mrf.mxu0
    %v5104 = vadd.f32 %v4943, %v5103
    %5105 = vmatmul.f32.gmra.mxu0 %v3065
    %v5106 = vpop.f32.mrf.mxu0
    %v5107 = vadd.f32 %v4946, %v5106
    %5108 = vmatmul.f32.gmra.mxu0 %v3083
    %v5109 = vpop.f32.mrf.mxu0
    %v5110 = vadd.f32 %v4949, %v5109
    %5111 = vmatmul.f32.gmra.mxu0 %v3101
    %v5112 = vpop.f32.mrf.mxu0
    %v5113 = vadd.f32 %v4952, %v5112
    %5114 = vmatmul.f32.gmra.mxu0 %v3119
    %v5115 = vpop.f32.mrf.mxu0
    %v5116 = vadd.f32 %v4955, %v5115
    %5117 = vmatmul.f32.gmra.mxu0 %v3137
    %v5118 = vpop.f32.mrf.mxu0
    %v5119 = vadd.f32 %v4958, %v5118
    %5120 = vmatmul.f32.gmra.mxu0 %v3155
    %v5121 = vpop.f32.mrf.mxu0
    %v5122 = vadd.f32 %v4961, %v5121
    %5123 = vmatmul.f32.gmra.mxu0 %v3173
    %v5124 = vpop.f32.mrf.mxu0
    %v5125 = vadd.f32 %v4964, %v5124
    %5126 = vmatmul.f32.gmra.mxu0 %v3191
    %v5127 = vpop.f32.mrf.mxu0
    %v5128 = vadd.f32 %v4967, %v5127
    %5129 = vdwg.mxu0
    %5130 = vmatpush.msra.mxu0 %v2253
    %5131 = vmatpush.msra.mxu0 %v2252
    %5132 = vmatpush.msra.mxu0 %v2251
    %5133 = vmatpush.msra.mxu0 %v2250
    %5134 = vmatpush.msra.mxu0 %v2249
    %5135 = vmatpush.msra.mxu0 %v2248
    %5136 = vmatpush.msra.mxu0 %v2247
    %5137 = vmatpush.msra.mxu0 %v2246
    %5138 = vmatpush.msra.mxu0 %v2245
    %5139 = vmatpush.msra.mxu0 %v2244
    %5140 = vmatpush.msra.mxu0 %v2243
    %5141 = vmatpush.msra.mxu0 %v2242
    %5142 = vmatpush.msra.mxu0 %v2241
    %5143 = vmatpush.msra.mxu0 %v2240
    %5144 = vmatpush.msra.mxu0 %v2239
    %5145 = vmatpush.msra.mxu0 %v2238
    %5146 = vmatmul.f32.gmra.mxu0 %v2346
    %v5147 = vpop.f32.mrf.mxu0
    %v5148 = vadd.f32 %v4987, %v5147
    %5149 = vmatmul.f32.gmra.mxu0 %v2364
    %v5150 = vpop.f32.mrf.mxu0
    %v5151 = vadd.f32 %v4990, %v5150
    %5152 = vmatmul.f32.gmra.mxu0 %v2382
    %v5153 = vpop.f32.mrf.mxu0
    %v5154 = vadd.f32 %v4993, %v5153
    %5155 = vmatmul.f32.gmra.mxu0 %v2400
    %v5156 = vpop.f32.mrf.mxu0
    %v5157 = vadd.f32 %v4996, %v5156
    %5158 = vmatmul.f32.gmra.mxu0 %v2418
    %v5159 = vpop.f32.mrf.mxu0
    %v5160 = vadd.f32 %v4999, %v5159
    %5161 = vmatmul.f32.gmra.mxu0 %v2436
    %v5162 = vpop.f32.mrf.mxu0
    %v5163 = vadd.f32 %v5002, %v5162
    %5164 = vmatmul.f32.gmra.mxu0 %v2454
    %v5165 = vpop.f32.mrf.mxu0
    %v5166 = vadd.f32 %v5005, %v5165
    %5167 = vmatmul.f32.gmra.mxu0 %v2472
    %v5168 = vpop.f32.mrf.mxu0
    %v5169 = vadd.f32 %v5008, %v5168
    %5170 = vmatmul.f32.gmra.mxu0 %v2490
    %v5171 = vpop.f32.mrf.mxu0
    %v5172 = vadd.f32 %v5011, %v5171
    %5173 = vmatmul.f32.gmra.mxu0 %v2508
    %v5174 = vpop.f32.mrf.mxu0
    %v5175 = vadd.f32 %v5014, %v5174
    %5176 = vmatmul.f32.gmra.mxu0 %v2526
    %v5177 = vpop.f32.mrf.mxu0
    %v5178 = vadd.f32 %v5017, %v5177
    %5179 = vmatmul.f32.gmra.mxu0 %v2544
    %v5180 = vpop.f32.mrf.mxu0
    %v5181 = vadd.f32 %v5020, %v5180
    %5182 = vmatmul.f32.gmra.mxu0 %v2562
    %v5183 = vpop.f32.mrf.mxu0
    %v5184 = vadd.f32 %v5023, %v5183
    %5185 = vmatmul.f32.gmra.mxu0 %v2580
    %v5186 = vpop.f32.mrf.mxu0
    %v5187 = vadd.f32 %v5026, %v5186
    %5188 = vmatmul.f32.gmra.mxu0 %v2598
    %v5189 = vpop.f32.mrf.mxu0
    %v5190 = vadd.f32 %v5029, %v5189
    %5191 = vmatmul.f32.gmra.mxu0 %v2616
    %v5192 = vpop.f32.mrf.mxu0
    %v5193 = vadd.f32 %v5032, %v5192
    %5194 = vmatmul.f32.gmra.mxu0 %v2634
    %v5195 = vpop.f32.mrf.mxu0
    %v5196 = vadd.f32 %v5035, %v5195
    %5197 = vmatmul.f32.gmra.mxu0 %v2652
    %v5198 = vpop.f32.mrf.mxu0
    %v5199 = vadd.f32 %v5038, %v5198
    %5200 = vmatmul.f32.gmra.mxu0 %v2670
    %v5201 = vpop.f32.mrf.mxu0
    %v5202 = vadd.f32 %v5041, %v5201
    %5203 = vmatmul.f32.gmra.mxu0 %v2688
    %v5204 = vpop.f32.mrf.mxu0
    %v5205 = vadd.f32 %v5044, %v5204
    %5206 = vmatmul.f32.gmra.mxu0 %v2706
    %v5207 = vpop.f32.mrf.mxu0
    %v5208 = vadd.f32 %v5047, %v5207
    %5209 = vmatmul.f32.gmra.mxu0 %v2724
    %v5210 = vpop.f32.mrf.mxu0
    %v5211 = vadd.f32 %v5050, %v5210
    %5212 = vmatmul.f32.gmra.mxu0 %v2742
    %v5213 = vpop.f32.mrf.mxu0
    %v5214 = vadd.f32 %v5053, %v5213
    %5215 = vmatmul.f32.gmra.mxu0 %v2760
    %v5216 = vpop.f32.mrf.mxu0
    %v5217 = vadd.f32 %v5056, %v5216
    %5218 = vmatmul.f32.gmra.mxu0 %v2778
    %v5219 = vpop.f32.mrf.mxu0
    %v5220 = vadd.f32 %v5059, %v5219
    %5221 = vmatmul.f32.gmra.mxu0 %v2796
    %v5222 = vpop.f32.mrf.mxu0
    %v5223 = vadd.f32 %v5062, %v5222
    %5224 = vmatmul.f32.gmra.mxu0 %v2814
    %v5225 = vpop.f32.mrf.mxu0
    %v5226 = vadd.f32 %v5065, %v5225
    %5227 = vmatmul.f32.gmra.mxu0 %v2832
    %v5228 = vpop.f32.mrf.mxu0
    %v5229 = vadd.f32 %v5068, %v5228
    %5230 = vmatmul.f32.gmra.mxu0 %v2850
    %v5231 = vpop.f32.mrf.mxu0
    %v5232 = vadd.f32 %v5071, %v5231
    %5233 = vmatmul.f32.gmra.mxu0 %v2868
    %v5234 = vpop.f32.mrf.mxu0
    %v5235 = vadd.f32 %v5074, %v5234
    %5236 = vmatmul.f32.gmra.mxu0 %v2886
    %v5237 = vpop.f32.mrf.mxu0
    %v5238 = vadd.f32 %v5077, %v5237
    %5239 = vmatmul.f32.gmra.mxu0 %v2904
    %v5240 = vpop.f32.mrf.mxu0
    %v5241 = vadd.f32 %v5080, %v5240
    %5242 = vmatmul.f32.gmra.mxu0 %v2922
    %v5243 = vpop.f32.mrf.mxu0
    %v5244 = vadd.f32 %v5083, %v5243
    %5245 = vmatmul.f32.gmra.mxu0 %v2940
    %v5246 = vpop.f32.mrf.mxu0
    %v5247 = vadd.f32 %v5086, %v5246
    %5248 = vmatmul.f32.gmra.mxu0 %v2958
    %v5249 = vpop.f32.mrf.mxu0
    %v5250 = vadd.f32 %v5089, %v5249
    %5251 = vmatmul.f32.gmra.mxu0 %v2976
    %v5252 = vpop.f32.mrf.mxu0
    %v5253 = vadd.f32 %v5092, %v5252
    %5254 = vmatmul.f32.gmra.mxu0 %v2994
    %v5255 = vpop.f32.mrf.mxu0
    %v5256 = vadd.f32 %v5095, %v5255
    %5257 = vmatmul.f32.gmra.mxu0 %v3012
    %v5258 = vpop.f32.mrf.mxu0
    %v5259 = vadd.f32 %v5098, %v5258
    %5260 = vmatmul.f32.gmra.mxu0 %v3030
    %v5261 = vpop.f32.mrf.mxu0
    %v5262 = vadd.f32 %v5101, %v5261
    %5263 = vmatmul.f32.gmra.mxu0 %v3048
    %v5264 = vpop.f32.mrf.mxu0
    %v5265 = vadd.f32 %v5104, %v5264
    %5266 = vmatmul.f32.gmra.mxu0 %v3066
    %v5267 = vpop.f32.mrf.mxu0
    %v5268 = vadd.f32 %v5107, %v5267
    %5269 = vmatmul.f32.gmra.mxu0 %v3084
    %v5270 = vpop.f32.mrf.mxu0
    %v5271 = vadd.f32 %v5110, %v5270
    %5272 = vmatmul.f32.gmra.mxu0 %v3102
    %v5273 = vpop.f32.mrf.mxu0
    %v5274 = vadd.f32 %v5113, %v5273
    %5275 = vmatmul.f32.gmra.mxu0 %v3120
    %v5276 = vpop.f32.mrf.mxu0
    %v5277 = vadd.f32 %v5116, %v5276
    %5278 = vmatmul.f32.gmra.mxu0 %v3138
    %v5279 = vpop.f32.mrf.mxu0
    %v5280 = vadd.f32 %v5119, %v5279
    %5281 = vmatmul.f32.gmra.mxu0 %v3156
    %v5282 = vpop.f32.mrf.mxu0
    %v5283 = vadd.f32 %v5122, %v5282
    %5284 = vmatmul.f32.gmra.mxu0 %v3174
    %v5285 = vpop.f32.mrf.mxu0
    %v5286 = vadd.f32 %v5125, %v5285
    %5287 = vmatmul.f32.gmra.mxu0 %v3192
    %v5288 = vpop.f32.mrf.mxu0
    %v5289 = vadd.f32 %v5128, %v5288
    %5290 = vdwg.mxu0
    %5291 = vmatpush.msra.mxu0 %v2269
    %5292 = vmatpush.msra.mxu0 %v2268
    %5293 = vmatpush.msra.mxu0 %v2267
    %5294 = vmatpush.msra.mxu0 %v2266
    %5295 = vmatpush.msra.mxu0 %v2265
    %5296 = vmatpush.msra.mxu0 %v2264
    %5297 = vmatpush.msra.mxu0 %v2263
    %5298 = vmatpush.msra.mxu0 %v2262
    %5299 = vmatpush.msra.mxu0 %v2261
    %5300 = vmatpush.msra.mxu0 %v2260
    %5301 = vmatpush.msra.mxu0 %v2259
    %5302 = vmatpush.msra.mxu0 %v2258
    %5303 = vmatpush.msra.mxu0 %v2257
    %5304 = vmatpush.msra.mxu0 %v2256
    %5305 = vmatpush.msra.mxu0 %v2255
    %5306 = vmatpush.msra.mxu0 %v2254
    %5307 = vmatmul.f32.gmra.mxu0 %v2347
    %v5308 = vpop.f32.mrf.mxu0
    %v5309 = vadd.f32 %v5148, %v5308
    %5310 = vmatmul.f32.gmra.mxu0 %v2365
    %v5311 = vpop.f32.mrf.mxu0
    %v5312 = vadd.f32 %v5151, %v5311
    %5313 = vmatmul.f32.gmra.mxu0 %v2383
    %v5314 = vpop.f32.mrf.mxu0
    %v5315 = vadd.f32 %v5154, %v5314
    %5316 = vmatmul.f32.gmra.mxu0 %v2401
    %v5317 = vpop.f32.mrf.mxu0
    %v5318 = vadd.f32 %v5157, %v5317
    %5319 = vmatmul.f32.gmra.mxu0 %v2419
    %v5320 = vpop.f32.mrf.mxu0
    %v5321 = vadd.f32 %v5160, %v5320
    %5322 = vmatmul.f32.gmra.mxu0 %v2437
    %v5323 = vpop.f32.mrf.mxu0
    %v5324 = vadd.f32 %v5163, %v5323
    %5325 = vmatmul.f32.gmra.mxu0 %v2455
    %v5326 = vpop.f32.mrf.mxu0
    %v5327 = vadd.f32 %v5166, %v5326
    %5328 = vmatmul.f32.gmra.mxu0 %v2473
    %v5329 = vpop.f32.mrf.mxu0
    %v5330 = vadd.f32 %v5169, %v5329
    %5331 = vmatmul.f32.gmra.mxu0 %v2491
    %v5332 = vpop.f32.mrf.mxu0
    %v5333 = vadd.f32 %v5172, %v5332
    %5334 = vmatmul.f32.gmra.mxu0 %v2509
    %v5335 = vpop.f32.mrf.mxu0
    %v5336 = vadd.f32 %v5175, %v5335
    %5337 = vmatmul.f32.gmra.mxu0 %v2527
    %v5338 = vpop.f32.mrf.mxu0
    %v5339 = vadd.f32 %v5178, %v5338
    %5340 = vmatmul.f32.gmra.mxu0 %v2545
    %v5341 = vpop.f32.mrf.mxu0
    %v5342 = vadd.f32 %v5181, %v5341
    %5343 = vmatmul.f32.gmra.mxu0 %v2563
    %v5344 = vpop.f32.mrf.mxu0
    %v5345 = vadd.f32 %v5184, %v5344
    %5346 = vmatmul.f32.gmra.mxu0 %v2581
    %v5347 = vpop.f32.mrf.mxu0
    %v5348 = vadd.f32 %v5187, %v5347
    %5349 = vmatmul.f32.gmra.mxu0 %v2599
    %v5350 = vpop.f32.mrf.mxu0
    %v5351 = vadd.f32 %v5190, %v5350
    %5352 = vmatmul.f32.gmra.mxu0 %v2617
    %v5353 = vpop.f32.mrf.mxu0
    %v5354 = vadd.f32 %v5193, %v5353
    %5355 = vmatmul.f32.gmra.mxu0 %v2635
    %v5356 = vpop.f32.mrf.mxu0
    %v5357 = vadd.f32 %v5196, %v5356
    %5358 = vmatmul.f32.gmra.mxu0 %v2653
    %v5359 = vpop.f32.mrf.mxu0
    %v5360 = vadd.f32 %v5199, %v5359
    %5361 = vmatmul.f32.gmra.mxu0 %v2671
    %v5362 = vpop.f32.mrf.mxu0
    %v5363 = vadd.f32 %v5202, %v5362
    %5364 = vmatmul.f32.gmra.mxu0 %v2689
    %v5365 = vpop.f32.mrf.mxu0
    %v5366 = vadd.f32 %v5205, %v5365
    %5367 = vmatmul.f32.gmra.mxu0 %v2707
    %v5368 = vpop.f32.mrf.mxu0
    %v5369 = vadd.f32 %v5208, %v5368
    %5370 = vmatmul.f32.gmra.mxu0 %v2725
    %v5371 = vpop.f32.mrf.mxu0
    %v5372 = vadd.f32 %v5211, %v5371
    %5373 = vmatmul.f32.gmra.mxu0 %v2743
    %v5374 = vpop.f32.mrf.mxu0
    %v5375 = vadd.f32 %v5214, %v5374
    %5376 = vmatmul.f32.gmra.mxu0 %v2761
    %v5377 = vpop.f32.mrf.mxu0
    %v5378 = vadd.f32 %v5217, %v5377
    %5379 = vmatmul.f32.gmra.mxu0 %v2779
    %v5380 = vpop.f32.mrf.mxu0
    %v5381 = vadd.f32 %v5220, %v5380
    %5382 = vmatmul.f32.gmra.mxu0 %v2797
    %v5383 = vpop.f32.mrf.mxu0
    %v5384 = vadd.f32 %v5223, %v5383
    %5385 = vmatmul.f32.gmra.mxu0 %v2815
    %v5386 = vpop.f32.mrf.mxu0
    %v5387 = vadd.f32 %v5226, %v5386
    %5388 = vmatmul.f32.gmra.mxu0 %v2833
    %v5389 = vpop.f32.mrf.mxu0
    %v5390 = vadd.f32 %v5229, %v5389
    %5391 = vmatmul.f32.gmra.mxu0 %v2851
    %v5392 = vpop.f32.mrf.mxu0
    %v5393 = vadd.f32 %v5232, %v5392
    %5394 = vmatmul.f32.gmra.mxu0 %v2869
    %v5395 = vpop.f32.mrf.mxu0
    %v5396 = vadd.f32 %v5235, %v5395
    %5397 = vmatmul.f32.gmra.mxu0 %v2887
    %v5398 = vpop.f32.mrf.mxu0
    %v5399 = vadd.f32 %v5238, %v5398
    %5400 = vmatmul.f32.gmra.mxu0 %v2905
    %v5401 = vpop.f32.mrf.mxu0
    %v5402 = vadd.f32 %v5241, %v5401
    %5403 = vmatmul.f32.gmra.mxu0 %v2923
    %v5404 = vpop.f32.mrf.mxu0
    %v5405 = vadd.f32 %v5244, %v5404
    %5406 = vmatmul.f32.gmra.mxu0 %v2941
    %v5407 = vpop.f32.mrf.mxu0
    %v5408 = vadd.f32 %v5247, %v5407
    %5409 = vmatmul.f32.gmra.mxu0 %v2959
    %v5410 = vpop.f32.mrf.mxu0
    %v5411 = vadd.f32 %v5250, %v5410
    %5412 = vmatmul.f32.gmra.mxu0 %v2977
    %v5413 = vpop.f32.mrf.mxu0
    %v5414 = vadd.f32 %v5253, %v5413
    %5415 = vmatmul.f32.gmra.mxu0 %v2995
    %v5416 = vpop.f32.mrf.mxu0
    %v5417 = vadd.f32 %v5256, %v5416
    %5418 = vmatmul.f32.gmra.mxu0 %v3013
    %v5419 = vpop.f32.mrf.mxu0
    %v5420 = vadd.f32 %v5259, %v5419
    %5421 = vmatmul.f32.gmra.mxu0 %v3031
    %v5422 = vpop.f32.mrf.mxu0
    %v5423 = vadd.f32 %v5262, %v5422
    %5424 = vmatmul.f32.gmra.mxu0 %v3049
    %v5425 = vpop.f32.mrf.mxu0
    %v5426 = vadd.f32 %v5265, %v5425
    %5427 = vmatmul.f32.gmra.mxu0 %v3067
    %v5428 = vpop.f32.mrf.mxu0
    %v5429 = vadd.f32 %v5268, %v5428
    %5430 = vmatmul.f32.gmra.mxu0 %v3085
    %v5431 = vpop.f32.mrf.mxu0
    %v5432 = vadd.f32 %v5271, %v5431
    %5433 = vmatmul.f32.gmra.mxu0 %v3103
    %v5434 = vpop.f32.mrf.mxu0
    %v5435 = vadd.f32 %v5274, %v5434
    %5436 = vmatmul.f32.gmra.mxu0 %v3121
    %v5437 = vpop.f32.mrf.mxu0
    %v5438 = vadd.f32 %v5277, %v5437
    %5439 = vmatmul.f32.gmra.mxu0 %v3139
    %v5440 = vpop.f32.mrf.mxu0
    %v5441 = vadd.f32 %v5280, %v5440
    %5442 = vmatmul.f32.gmra.mxu0 %v3157
    %v5443 = vpop.f32.mrf.mxu0
    %v5444 = vadd.f32 %v5283, %v5443
    %5445 = vmatmul.f32.gmra.mxu0 %v3175
    %v5446 = vpop.f32.mrf.mxu0
    %v5447 = vadd.f32 %v5286, %v5446
    %5448 = vmatmul.f32.gmra.mxu0 %v3193
    %v5449 = vpop.f32.mrf.mxu0
    %v5450 = vadd.f32 %v5289, %v5449
    %5451 = vdwg.mxu0
    %5452 = vmatpush.msra.mxu0 %v2285
    %5453 = vmatpush.msra.mxu0 %v2284
    %5454 = vmatpush.msra.mxu0 %v2283
    %5455 = vmatpush.msra.mxu0 %v2282
    %5456 = vmatpush.msra.mxu0 %v2281
    %5457 = vmatpush.msra.mxu0 %v2280
    %5458 = vmatpush.msra.mxu0 %v2279
    %5459 = vmatpush.msra.mxu0 %v2278
    %5460 = vmatpush.msra.mxu0 %v2277
    %5461 = vmatpush.msra.mxu0 %v2276
    %5462 = vmatpush.msra.mxu0 %v2275
    %5463 = vmatpush.msra.mxu0 %v2274
    %5464 = vmatpush.msra.mxu0 %v2273
    %5465 = vmatpush.msra.mxu0 %v2272
    %5466 = vmatpush.msra.mxu0 %v2271
    %5467 = vmatpush.msra.mxu0 %v2270
    %5468 = vmatmul.f32.gmra.mxu0 %v2348
    %v5469 = vpop.f32.mrf.mxu0
    %v5470 = vadd.f32 %v5309, %v5469
    %5471 = vmatmul.f32.gmra.mxu0 %v2366
    %v5472 = vpop.f32.mrf.mxu0
    %v5473 = vadd.f32 %v5312, %v5472
    %5474 = vmatmul.f32.gmra.mxu0 %v2384
    %v5475 = vpop.f32.mrf.mxu0
    %v5476 = vadd.f32 %v5315, %v5475
    %5477 = vmatmul.f32.gmra.mxu0 %v2402
    %v5478 = vpop.f32.mrf.mxu0
    %v5479 = vadd.f32 %v5318, %v5478
    %5480 = vmatmul.f32.gmra.mxu0 %v2420
    %v5481 = vpop.f32.mrf.mxu0
    %v5482 = vadd.f32 %v5321, %v5481
    %5483 = vmatmul.f32.gmra.mxu0 %v2438
    %v5484 = vpop.f32.mrf.mxu0
    %v5485 = vadd.f32 %v5324, %v5484
    %5486 = vmatmul.f32.gmra.mxu0 %v2456
    %v5487 = vpop.f32.mrf.mxu0
    %v5488 = vadd.f32 %v5327, %v5487
    %5489 = vmatmul.f32.gmra.mxu0 %v2474
    %v5490 = vpop.f32.mrf.mxu0
    %v5491 = vadd.f32 %v5330, %v5490
    %5492 = vmatmul.f32.gmra.mxu0 %v2492
    %v5493 = vpop.f32.mrf.mxu0
    %v5494 = vadd.f32 %v5333, %v5493
    %5495 = vmatmul.f32.gmra.mxu0 %v2510
    %v5496 = vpop.f32.mrf.mxu0
    %v5497 = vadd.f32 %v5336, %v5496
    %5498 = vmatmul.f32.gmra.mxu0 %v2528
    %v5499 = vpop.f32.mrf.mxu0
    %v5500 = vadd.f32 %v5339, %v5499
    %5501 = vmatmul.f32.gmra.mxu0 %v2546
    %v5502 = vpop.f32.mrf.mxu0
    %v5503 = vadd.f32 %v5342, %v5502
    %5504 = vmatmul.f32.gmra.mxu0 %v2564
    %v5505 = vpop.f32.mrf.mxu0
    %v5506 = vadd.f32 %v5345, %v5505
    %5507 = vmatmul.f32.gmra.mxu0 %v2582
    %v5508 = vpop.f32.mrf.mxu0
    %v5509 = vadd.f32 %v5348, %v5508
    %5510 = vmatmul.f32.gmra.mxu0 %v2600
    %v5511 = vpop.f32.mrf.mxu0
    %v5512 = vadd.f32 %v5351, %v5511
    %5513 = vmatmul.f32.gmra.mxu0 %v2618
    %v5514 = vpop.f32.mrf.mxu0
    %v5515 = vadd.f32 %v5354, %v5514
    %5516 = vmatmul.f32.gmra.mxu0 %v2636
    %v5517 = vpop.f32.mrf.mxu0
    %v5518 = vadd.f32 %v5357, %v5517
    %5519 = vmatmul.f32.gmra.mxu0 %v2654
    %v5520 = vpop.f32.mrf.mxu0
    %v5521 = vadd.f32 %v5360, %v5520
    %5522 = vmatmul.f32.gmra.mxu0 %v2672
    %v5523 = vpop.f32.mrf.mxu0
    %v5524 = vadd.f32 %v5363, %v5523
    %5525 = vmatmul.f32.gmra.mxu0 %v2690
    %v5526 = vpop.f32.mrf.mxu0
    %v5527 = vadd.f32 %v5366, %v5526
    %5528 = vmatmul.f32.gmra.mxu0 %v2708
    %v5529 = vpop.f32.mrf.mxu0
    %v5530 = vadd.f32 %v5369, %v5529
    %5531 = vmatmul.f32.gmra.mxu0 %v2726
    %v5532 = vpop.f32.mrf.mxu0
    %v5533 = vadd.f32 %v5372, %v5532
    %5534 = vmatmul.f32.gmra.mxu0 %v2744
    %v5535 = vpop.f32.mrf.mxu0
    %v5536 = vadd.f32 %v5375, %v5535
    %5537 = vmatmul.f32.gmra.mxu0 %v2762
    %v5538 = vpop.f32.mrf.mxu0
    %v5539 = vadd.f32 %v5378, %v5538
    %5540 = vmatmul.f32.gmra.mxu0 %v2780
    %v5541 = vpop.f32.mrf.mxu0
    %v5542 = vadd.f32 %v5381, %v5541
    %5543 = vmatmul.f32.gmra.mxu0 %v2798
    %v5544 = vpop.f32.mrf.mxu0
    %v5545 = vadd.f32 %v5384, %v5544
    %5546 = vmatmul.f32.gmra.mxu0 %v2816
    %v5547 = vpop.f32.mrf.mxu0
    %v5548 = vadd.f32 %v5387, %v5547
    %5549 = vmatmul.f32.gmra.mxu0 %v2834
    %v5550 = vpop.f32.mrf.mxu0
    %v5551 = vadd.f32 %v5390, %v5550
    %5552 = vmatmul.f32.gmra.mxu0 %v2852
    %v5553 = vpop.f32.mrf.mxu0
    %v5554 = vadd.f32 %v5393, %v5553
    %5555 = vmatmul.f32.gmra.mxu0 %v2870
    %v5556 = vpop.f32.mrf.mxu0
    %v5557 = vadd.f32 %v5396, %v5556
    %5558 = vmatmul.f32.gmra.mxu0 %v2888
    %v5559 = vpop.f32.mrf.mxu0
    %v5560 = vadd.f32 %v5399, %v5559
    %5561 = vmatmul.f32.gmra.mxu0 %v2906
    %v5562 = vpop.f32.mrf.mxu0
    %v5563 = vadd.f32 %v5402, %v5562
    %5564 = vmatmul.f32.gmra.mxu0 %v2924
    %v5565 = vpop.f32.mrf.mxu0
    %v5566 = vadd.f32 %v5405, %v5565
    %5567 = vmatmul.f32.gmra.mxu0 %v2942
    %v5568 = vpop.f32.mrf.mxu0
    %v5569 = vadd.f32 %v5408, %v5568
    %5570 = vmatmul.f32.gmra.mxu0 %v2960
    %v5571 = vpop.f32.mrf.mxu0
    %v5572 = vadd.f32 %v5411, %v5571
    %5573 = vmatmul.f32.gmra.mxu0 %v2978
    %v5574 = vpop.f32.mrf.mxu0
    %v5575 = vadd.f32 %v5414, %v5574
    %5576 = vmatmul.f32.gmra.mxu0 %v2996
    %v5577 = vpop.f32.mrf.mxu0
    %v5578 = vadd.f32 %v5417, %v5577
    %5579 = vmatmul.f32.gmra.mxu0 %v3014
    %v5580 = vpop.f32.mrf.mxu0
    %v5581 = vadd.f32 %v5420, %v5580
    %5582 = vmatmul.f32.gmra.mxu0 %v3032
    %v5583 = vpop.f32.mrf.mxu0
    %v5584 = vadd.f32 %v5423, %v5583
    %5585 = vmatmul.f32.gmra.mxu0 %v3050
    %v5586 = vpop.f32.mrf.mxu0
    %v5587 = vadd.f32 %v5426, %v5586
    %5588 = vmatmul.f32.gmra.mxu0 %v3068
    %v5589 = vpop.f32.mrf.mxu0
    %v5590 = vadd.f32 %v5429, %v5589
    %5591 = vmatmul.f32.gmra.mxu0 %v3086
    %v5592 = vpop.f32.mrf.mxu0
    %v5593 = vadd.f32 %v5432, %v5592
    %5594 = vmatmul.f32.gmra.mxu0 %v3104
    %v5595 = vpop.f32.mrf.mxu0
    %v5596 = vadd.f32 %v5435, %v5595
    %5597 = vmatmul.f32.gmra.mxu0 %v3122
    %v5598 = vpop.f32.mrf.mxu0
    %v5599 = vadd.f32 %v5438, %v5598
    %5600 = vmatmul.f32.gmra.mxu0 %v3140
    %v5601 = vpop.f32.mrf.mxu0
    %v5602 = vadd.f32 %v5441, %v5601
    %5603 = vmatmul.f32.gmra.mxu0 %v3158
    %v5604 = vpop.f32.mrf.mxu0
    %v5605 = vadd.f32 %v5444, %v5604
    %5606 = vmatmul.f32.gmra.mxu0 %v3176
    %v5607 = vpop.f32.mrf.mxu0
    %v5608 = vadd.f32 %v5447, %v5607
    %5609 = vmatmul.f32.gmra.mxu0 %v3194
    %v5610 = vpop.f32.mrf.mxu0
    %v5611 = vadd.f32 %v5450, %v5610
    %5612 = vdwg.mxu0
    %5613 = vmatpush.msra.mxu0 %v2301
    %5614 = vmatpush.msra.mxu0 %v2300
    %5615 = vmatpush.msra.mxu0 %v2299
    %5616 = vmatpush.msra.mxu0 %v2298
    %5617 = vmatpush.msra.mxu0 %v2297
    %5618 = vmatpush.msra.mxu0 %v2296
    %5619 = vmatpush.msra.mxu0 %v2295
    %5620 = vmatpush.msra.mxu0 %v2294
    %5621 = vmatpush.msra.mxu0 %v2293
    %5622 = vmatpush.msra.mxu0 %v2292
    %5623 = vmatpush.msra.mxu0 %v2291
    %5624 = vmatpush.msra.mxu0 %v2290
    %5625 = vmatpush.msra.mxu0 %v2289
    %5626 = vmatpush.msra.mxu0 %v2288
    %5627 = vmatpush.msra.mxu0 %v2287
    %5628 = vmatpush.msra.mxu0 %v2286
    %5629 = vmatmul.f32.gmra.mxu0 %v2349
    %v5630 = vpop.f32.mrf.mxu0
    %v5631 = vadd.f32 %v5470, %v5630
    %5632 = vmatmul.f32.gmra.mxu0 %v2367
    %v5633 = vpop.f32.mrf.mxu0
    %v5634 = vadd.f32 %v5473, %v5633
    %5635 = vmatmul.f32.gmra.mxu0 %v2385
    %v5636 = vpop.f32.mrf.mxu0
    %v5637 = vadd.f32 %v5476, %v5636
    %5638 = vmatmul.f32.gmra.mxu0 %v2403
    %v5639 = vpop.f32.mrf.mxu0
    %v5640 = vadd.f32 %v5479, %v5639
    %5641 = vmatmul.f32.gmra.mxu0 %v2421
    %v5642 = vpop.f32.mrf.mxu0
    %v5643 = vadd.f32 %v5482, %v5642
    %5644 = vmatmul.f32.gmra.mxu0 %v2439
    %v5645 = vpop.f32.mrf.mxu0
    %v5646 = vadd.f32 %v5485, %v5645
    %5647 = vmatmul.f32.gmra.mxu0 %v2457
    %v5648 = vpop.f32.mrf.mxu0
    %v5649 = vadd.f32 %v5488, %v5648
    %5650 = vmatmul.f32.gmra.mxu0 %v2475
    %v5651 = vpop.f32.mrf.mxu0
    %v5652 = vadd.f32 %v5491, %v5651
    %5653 = vmatmul.f32.gmra.mxu0 %v2493
    %v5654 = vpop.f32.mrf.mxu0
    %v5655 = vadd.f32 %v5494, %v5654
    %5656 = vmatmul.f32.gmra.mxu0 %v2511
    %v5657 = vpop.f32.mrf.mxu0
    %v5658 = vadd.f32 %v5497, %v5657
    %5659 = vmatmul.f32.gmra.mxu0 %v2529
    %v5660 = vpop.f32.mrf.mxu0
    %v5661 = vadd.f32 %v5500, %v5660
    %5662 = vmatmul.f32.gmra.mxu0 %v2547
    %v5663 = vpop.f32.mrf.mxu0
    %v5664 = vadd.f32 %v5503, %v5663
    %5665 = vmatmul.f32.gmra.mxu0 %v2565
    %v5666 = vpop.f32.mrf.mxu0
    %v5667 = vadd.f32 %v5506, %v5666
    %5668 = vmatmul.f32.gmra.mxu0 %v2583
    %v5669 = vpop.f32.mrf.mxu0
    %v5670 = vadd.f32 %v5509, %v5669
    %5671 = vmatmul.f32.gmra.mxu0 %v2601
    %v5672 = vpop.f32.mrf.mxu0
    %v5673 = vadd.f32 %v5512, %v5672
    %5674 = vmatmul.f32.gmra.mxu0 %v2619
    %v5675 = vpop.f32.mrf.mxu0
    %v5676 = vadd.f32 %v5515, %v5675
    %5677 = vmatmul.f32.gmra.mxu0 %v2637
    %v5678 = vpop.f32.mrf.mxu0
    %v5679 = vadd.f32 %v5518, %v5678
    %5680 = vmatmul.f32.gmra.mxu0 %v2655
    %v5681 = vpop.f32.mrf.mxu0
    %v5682 = vadd.f32 %v5521, %v5681
    %5683 = vmatmul.f32.gmra.mxu0 %v2673
    %v5684 = vpop.f32.mrf.mxu0
    %v5685 = vadd.f32 %v5524, %v5684
    %5686 = vmatmul.f32.gmra.mxu0 %v2691
    %v5687 = vpop.f32.mrf.mxu0
    %v5688 = vadd.f32 %v5527, %v5687
    %5689 = vmatmul.f32.gmra.mxu0 %v2709
    %v5690 = vpop.f32.mrf.mxu0
    %v5691 = vadd.f32 %v5530, %v5690
    %5692 = vmatmul.f32.gmra.mxu0 %v2727
    %v5693 = vpop.f32.mrf.mxu0
    %v5694 = vadd.f32 %v5533, %v5693
    %5695 = vmatmul.f32.gmra.mxu0 %v2745
    %v5696 = vpop.f32.mrf.mxu0
    %v5697 = vadd.f32 %v5536, %v5696
    %5698 = vmatmul.f32.gmra.mxu0 %v2763
    %v5699 = vpop.f32.mrf.mxu0
    %v5700 = vadd.f32 %v5539, %v5699
    %5701 = vmatmul.f32.gmra.mxu0 %v2781
    %v5702 = vpop.f32.mrf.mxu0
    %v5703 = vadd.f32 %v5542, %v5702
    %5704 = vmatmul.f32.gmra.mxu0 %v2799
    %v5705 = vpop.f32.mrf.mxu0
    %v5706 = vadd.f32 %v5545, %v5705
    %5707 = vmatmul.f32.gmra.mxu0 %v2817
    %v5708 = vpop.f32.mrf.mxu0
    %v5709 = vadd.f32 %v5548, %v5708
    %5710 = vmatmul.f32.gmra.mxu0 %v2835
    %v5711 = vpop.f32.mrf.mxu0
    %v5712 = vadd.f32 %v5551, %v5711
    %5713 = vmatmul.f32.gmra.mxu0 %v2853
    %v5714 = vpop.f32.mrf.mxu0
    %v5715 = vadd.f32 %v5554, %v5714
    %5716 = vmatmul.f32.gmra.mxu0 %v2871
    %v5717 = vpop.f32.mrf.mxu0
    %v5718 = vadd.f32 %v5557, %v5717
    %5719 = vmatmul.f32.gmra.mxu0 %v2889
    %v5720 = vpop.f32.mrf.mxu0
    %v5721 = vadd.f32 %v5560, %v5720
    %5722 = vmatmul.f32.gmra.mxu0 %v2907
    %v5723 = vpop.f32.mrf.mxu0
    %v5724 = vadd.f32 %v5563, %v5723
    %5725 = vmatmul.f32.gmra.mxu0 %v2925
    %v5726 = vpop.f32.mrf.mxu0
    %v5727 = vadd.f32 %v5566, %v5726
    %5728 = vmatmul.f32.gmra.mxu0 %v2943
    %v5729 = vpop.f32.mrf.mxu0
    %v5730 = vadd.f32 %v5569, %v5729
    %5731 = vmatmul.f32.gmra.mxu0 %v2961
    %v5732 = vpop.f32.mrf.mxu0
    %v5733 = vadd.f32 %v5572, %v5732
    %5734 = vmatmul.f32.gmra.mxu0 %v2979
    %v5735 = vpop.f32.mrf.mxu0
    %v5736 = vadd.f32 %v5575, %v5735
    %5737 = vmatmul.f32.gmra.mxu0 %v2997
    %v5738 = vpop.f32.mrf.mxu0
    %v5739 = vadd.f32 %v5578, %v5738
    %5740 = vmatmul.f32.gmra.mxu0 %v3015
    %v5741 = vpop.f32.mrf.mxu0
    %v5742 = vadd.f32 %v5581, %v5741
    %5743 = vmatmul.f32.gmra.mxu0 %v3033
    %v5744 = vpop.f32.mrf.mxu0
    %v5745 = vadd.f32 %v5584, %v5744
    %5746 = vmatmul.f32.gmra.mxu0 %v3051
    %v5747 = vpop.f32.mrf.mxu0
    %v5748 = vadd.f32 %v5587, %v5747
    %5749 = vmatmul.f32.gmra.mxu0 %v3069
    %v5750 = vpop.f32.mrf.mxu0
    %v5751 = vadd.f32 %v5590, %v5750
    %5752 = vmatmul.f32.gmra.mxu0 %v3087
    %v5753 = vpop.f32.mrf.mxu0
    %v5754 = vadd.f32 %v5593, %v5753
    %5755 = vmatmul.f32.gmra.mxu0 %v3105
    %v5756 = vpop.f32.mrf.mxu0
    %v5757 = vadd.f32 %v5596, %v5756
    %5758 = vmatmul.f32.gmra.mxu0 %v3123
    %v5759 = vpop.f32.mrf.mxu0
    %v5760 = vadd.f32 %v5599, %v5759
    %5761 = vmatmul.f32.gmra.mxu0 %v3141
    %v5762 = vpop.f32.mrf.mxu0
    %v5763 = vadd.f32 %v5602, %v5762
    %5764 = vmatmul.f32.gmra.mxu0 %v3159
    %v5765 = vpop.f32.mrf.mxu0
    %v5766 = vadd.f32 %v5605, %v5765
    %5767 = vmatmul.f32.gmra.mxu0 %v3177
    %v5768 = vpop.f32.mrf.mxu0
    %v5769 = vadd.f32 %v5608, %v5768
    %5770 = vmatmul.f32.gmra.mxu0 %v3195
    %v5771 = vpop.f32.mrf.mxu0
    %v5772 = vadd.f32 %v5611, %v5771
    %5773 = vdwg.mxu0
    %5774 = vmatpush.msra.mxu0 %v2317
    %5775 = vmatpush.msra.mxu0 %v2316
    %5776 = vmatpush.msra.mxu0 %v2315
    %5777 = vmatpush.msra.mxu0 %v2314
    %5778 = vmatpush.msra.mxu0 %v2313
    %5779 = vmatpush.msra.mxu0 %v2312
    %5780 = vmatpush.msra.mxu0 %v2311
    %5781 = vmatpush.msra.mxu0 %v2310
    %5782 = vmatpush.msra.mxu0 %v2309
    %5783 = vmatpush.msra.mxu0 %v2308
    %5784 = vmatpush.msra.mxu0 %v2307
    %5785 = vmatpush.msra.mxu0 %v2306
    %5786 = vmatpush.msra.mxu0 %v2305
    %5787 = vmatpush.msra.mxu0 %v2304
    %5788 = vmatpush.msra.mxu0 %v2303
    %5789 = vmatpush.msra.mxu0 %v2302
    %5790 = vmatmul.f32.gmra.mxu0 %v2350
    %v5791 = vpop.f32.mrf.mxu0
    %v5792 = vadd.f32 %v5631, %v5791
    %5793 = vmatmul.f32.gmra.mxu0 %v2368
    %v5794 = vpop.f32.mrf.mxu0
    %v5795 = vadd.f32 %v5634, %v5794
    %5796 = vmatmul.f32.gmra.mxu0 %v2386
    %v5797 = vpop.f32.mrf.mxu0
    %v5798 = vadd.f32 %v5637, %v5797
    %5799 = vmatmul.f32.gmra.mxu0 %v2404
    %v5800 = vpop.f32.mrf.mxu0
    %v5801 = vadd.f32 %v5640, %v5800
    %5802 = vmatmul.f32.gmra.mxu0 %v2422
    %v5803 = vpop.f32.mrf.mxu0
    %v5804 = vadd.f32 %v5643, %v5803
    %5805 = vmatmul.f32.gmra.mxu0 %v2440
    %v5806 = vpop.f32.mrf.mxu0
    %v5807 = vadd.f32 %v5646, %v5806
    %5808 = vmatmul.f32.gmra.mxu0 %v2458
    %v5809 = vpop.f32.mrf.mxu0
    %v5810 = vadd.f32 %v5649, %v5809
    %5811 = vmatmul.f32.gmra.mxu0 %v2476
    %v5812 = vpop.f32.mrf.mxu0
    %v5813 = vadd.f32 %v5652, %v5812
    %5814 = vmatmul.f32.gmra.mxu0 %v2494
    %v5815 = vpop.f32.mrf.mxu0
    %v5816 = vadd.f32 %v5655, %v5815
    %5817 = vmatmul.f32.gmra.mxu0 %v2512
    %v5818 = vpop.f32.mrf.mxu0
    %v5819 = vadd.f32 %v5658, %v5818
    %5820 = vmatmul.f32.gmra.mxu0 %v2530
    %v5821 = vpop.f32.mrf.mxu0
    %v5822 = vadd.f32 %v5661, %v5821
    %5823 = vmatmul.f32.gmra.mxu0 %v2548
    %v5824 = vpop.f32.mrf.mxu0
    %v5825 = vadd.f32 %v5664, %v5824
    %5826 = vmatmul.f32.gmra.mxu0 %v2566
    %v5827 = vpop.f32.mrf.mxu0
    %v5828 = vadd.f32 %v5667, %v5827
    %5829 = vmatmul.f32.gmra.mxu0 %v2584
    %v5830 = vpop.f32.mrf.mxu0
    %v5831 = vadd.f32 %v5670, %v5830
    %5832 = vmatmul.f32.gmra.mxu0 %v2602
    %v5833 = vpop.f32.mrf.mxu0
    %v5834 = vadd.f32 %v5673, %v5833
    %5835 = vmatmul.f32.gmra.mxu0 %v2620
    %v5836 = vpop.f32.mrf.mxu0
    %v5837 = vadd.f32 %v5676, %v5836
    %5838 = vmatmul.f32.gmra.mxu0 %v2638
    %v5839 = vpop.f32.mrf.mxu0
    %v5840 = vadd.f32 %v5679, %v5839
    %5841 = vmatmul.f32.gmra.mxu0 %v2656
    %v5842 = vpop.f32.mrf.mxu0
    %v5843 = vadd.f32 %v5682, %v5842
    %5844 = vmatmul.f32.gmra.mxu0 %v2674
    %v5845 = vpop.f32.mrf.mxu0
    %v5846 = vadd.f32 %v5685, %v5845
    %5847 = vmatmul.f32.gmra.mxu0 %v2692
    %v5848 = vpop.f32.mrf.mxu0
    %v5849 = vadd.f32 %v5688, %v5848
    %5850 = vmatmul.f32.gmra.mxu0 %v2710
    %v5851 = vpop.f32.mrf.mxu0
    %v5852 = vadd.f32 %v5691, %v5851
    %5853 = vmatmul.f32.gmra.mxu0 %v2728
    %v5854 = vpop.f32.mrf.mxu0
    %v5855 = vadd.f32 %v5694, %v5854
    %5856 = vmatmul.f32.gmra.mxu0 %v2746
    %v5857 = vpop.f32.mrf.mxu0
    %v5858 = vadd.f32 %v5697, %v5857
    %5859 = vmatmul.f32.gmra.mxu0 %v2764
    %v5860 = vpop.f32.mrf.mxu0
    %v5861 = vadd.f32 %v5700, %v5860
    %5862 = vmatmul.f32.gmra.mxu0 %v2782
    %v5863 = vpop.f32.mrf.mxu0
    %v5864 = vadd.f32 %v5703, %v5863
    %5865 = vmatmul.f32.gmra.mxu0 %v2800
    %v5866 = vpop.f32.mrf.mxu0
    %v5867 = vadd.f32 %v5706, %v5866
    %5868 = vmatmul.f32.gmra.mxu0 %v2818
    %v5869 = vpop.f32.mrf.mxu0
    %v5870 = vadd.f32 %v5709, %v5869
    %5871 = vmatmul.f32.gmra.mxu0 %v2836
    %v5872 = vpop.f32.mrf.mxu0
    %v5873 = vadd.f32 %v5712, %v5872
    %5874 = vmatmul.f32.gmra.mxu0 %v2854
    %v5875 = vpop.f32.mrf.mxu0
    %v5876 = vadd.f32 %v5715, %v5875
    %5877 = vmatmul.f32.gmra.mxu0 %v2872
    %v5878 = vpop.f32.mrf.mxu0
    %v5879 = vadd.f32 %v5718, %v5878
    %5880 = vmatmul.f32.gmra.mxu0 %v2890
    %v5881 = vpop.f32.mrf.mxu0
    %v5882 = vadd.f32 %v5721, %v5881
    %5883 = vmatmul.f32.gmra.mxu0 %v2908
    %v5884 = vpop.f32.mrf.mxu0
    %v5885 = vadd.f32 %v5724, %v5884
    %5886 = vmatmul.f32.gmra.mxu0 %v2926
    %v5887 = vpop.f32.mrf.mxu0
    %v5888 = vadd.f32 %v5727, %v5887
    %5889 = vmatmul.f32.gmra.mxu0 %v2944
    %v5890 = vpop.f32.mrf.mxu0
    %v5891 = vadd.f32 %v5730, %v5890
    %5892 = vmatmul.f32.gmra.mxu0 %v2962
    %v5893 = vpop.f32.mrf.mxu0
    %v5894 = vadd.f32 %v5733, %v5893
    %5895 = vmatmul.f32.gmra.mxu0 %v2980
    %v5896 = vpop.f32.mrf.mxu0
    %v5897 = vadd.f32 %v5736, %v5896
    %5898 = vmatmul.f32.gmra.mxu0 %v2998
    %v5899 = vpop.f32.mrf.mxu0
    %v5900 = vadd.f32 %v5739, %v5899
    %5901 = vmatmul.f32.gmra.mxu0 %v3016
    %v5902 = vpop.f32.mrf.mxu0
    %v5903 = vadd.f32 %v5742, %v5902
    %5904 = vmatmul.f32.gmra.mxu0 %v3034
    %v5905 = vpop.f32.mrf.mxu0
    %v5906 = vadd.f32 %v5745, %v5905
    %5907 = vmatmul.f32.gmra.mxu0 %v3052
    %v5908 = vpop.f32.mrf.mxu0
    %v5909 = vadd.f32 %v5748, %v5908
    %5910 = vmatmul.f32.gmra.mxu0 %v3070
    %v5911 = vpop.f32.mrf.mxu0
    %v5912 = vadd.f32 %v5751, %v5911
    %5913 = vmatmul.f32.gmra.mxu0 %v3088
    %v5914 = vpop.f32.mrf.mxu0
    %v5915 = vadd.f32 %v5754, %v5914
    %5916 = vmatmul.f32.gmra.mxu0 %v3106
    %v5917 = vpop.f32.mrf.mxu0
    %v5918 = vadd.f32 %v5757, %v5917
    %5919 = vmatmul.f32.gmra.mxu0 %v3124
    %v5920 = vpop.f32.mrf.mxu0
    %v5921 = vadd.f32 %v5760, %v5920
    %5922 = vmatmul.f32.gmra.mxu0 %v3142
    %v5923 = vpop.f32.mrf.mxu0
    %v5924 = vadd.f32 %v5763, %v5923
    %5925 = vmatmul.f32.gmra.mxu0 %v3160
    %v5926 = vpop.f32.mrf.mxu0
    %v5927 = vadd.f32 %v5766, %v5926
    %5928 = vmatmul.f32.gmra.mxu0 %v3178
    %v5929 = vpop.f32.mrf.mxu0
    %v5930 = vadd.f32 %v5769, %v5929
    %5931 = vmatmul.f32.gmra.mxu0 %v3196
    %v5932 = vpop.f32.mrf.mxu0
    %v5933 = vadd.f32 %v5772, %v5932
    %5934 = vdwg.mxu0
    %5935 = vmatpush.msra.mxu0 %v2333
    %5936 = vmatpush.msra.mxu0 %v2332
    %5937 = vmatpush.msra.mxu0 %v2331
    %5938 = vmatpush.msra.mxu0 %v2330
    %5939 = vmatpush.msra.mxu0 %v2329
    %5940 = vmatpush.msra.mxu0 %v2328
    %5941 = vmatpush.msra.mxu0 %v2327
    %5942 = vmatpush.msra.mxu0 %v2326
    %5943 = vmatpush.msra.mxu0 %v2325
    %5944 = vmatpush.msra.mxu0 %v2324
    %5945 = vmatpush.msra.mxu0 %v2323
    %5946 = vmatpush.msra.mxu0 %v2322
    %5947 = vmatpush.msra.mxu0 %v2321
    %5948 = vmatpush.msra.mxu0 %v2320
    %5949 = vmatpush.msra.mxu0 %v2319
    %5950 = vmatpush.msra.mxu0 %v2318
    %5951 = vmatmul.f32.gmra.mxu0 %v2351
    %v5952 = vpop.f32.mrf.mxu0
    %v5953 = vadd.f32 %v5792, %v5952
    %5954 = vmatmul.f32.gmra.mxu0 %v2369
    %v5955 = vpop.f32.mrf.mxu0
    %v5956 = vadd.f32 %v5795, %v5955
    %5957 = vmatmul.f32.gmra.mxu0 %v2387
    %v5958 = vpop.f32.mrf.mxu0
    %v5959 = vadd.f32 %v5798, %v5958
    %5960 = vmatmul.f32.gmra.mxu0 %v2405
    %v5961 = vpop.f32.mrf.mxu0
    %v5962 = vadd.f32 %v5801, %v5961
    %5963 = vmatmul.f32.gmra.mxu0 %v2423
    %v5964 = vpop.f32.mrf.mxu0
    %v5965 = vadd.f32 %v5804, %v5964
    %5966 = vmatmul.f32.gmra.mxu0 %v2441
    %v5967 = vpop.f32.mrf.mxu0
    %v5968 = vadd.f32 %v5807, %v5967
    %5969 = vmatmul.f32.gmra.mxu0 %v2459
    %v5970 = vpop.f32.mrf.mxu0
    %v5971 = vadd.f32 %v5810, %v5970
    %5972 = vmatmul.f32.gmra.mxu0 %v2477
    %v5973 = vpop.f32.mrf.mxu0
    %v5974 = vadd.f32 %v5813, %v5973
    %5975 = vmatmul.f32.gmra.mxu0 %v2495
    %v5976 = vpop.f32.mrf.mxu0
    %v5977 = vadd.f32 %v5816, %v5976
    %5978 = vmatmul.f32.gmra.mxu0 %v2513
    %v5979 = vpop.f32.mrf.mxu0
    %v5980 = vadd.f32 %v5819, %v5979
    %5981 = vmatmul.f32.gmra.mxu0 %v2531
    %v5982 = vpop.f32.mrf.mxu0
    %v5983 = vadd.f32 %v5822, %v5982
    %5984 = vmatmul.f32.gmra.mxu0 %v2549
    %v5985 = vpop.f32.mrf.mxu0
    %v5986 = vadd.f32 %v5825, %v5985
    %5987 = vmatmul.f32.gmra.mxu0 %v2567
    %v5988 = vpop.f32.mrf.mxu0
    %v5989 = vadd.f32 %v5828, %v5988
    %5990 = vmatmul.f32.gmra.mxu0 %v2585
    %v5991 = vpop.f32.mrf.mxu0
    %v5992 = vadd.f32 %v5831, %v5991
    %5993 = vmatmul.f32.gmra.mxu0 %v2603
    %v5994 = vpop.f32.mrf.mxu0
    %v5995 = vadd.f32 %v5834, %v5994
    %5996 = vmatmul.f32.gmra.mxu0 %v2621
    %v5997 = vpop.f32.mrf.mxu0
    %v5998 = vadd.f32 %v5837, %v5997
    %5999 = vmatmul.f32.gmra.mxu0 %v2639
    %v6000 = vpop.f32.mrf.mxu0
    %v6001 = vadd.f32 %v5840, %v6000
    %6002 = vmatmul.f32.gmra.mxu0 %v2657
    %v6003 = vpop.f32.mrf.mxu0
    %v6004 = vadd.f32 %v5843, %v6003
    %6005 = vmatmul.f32.gmra.mxu0 %v2675
    %v6006 = vpop.f32.mrf.mxu0
    %v6007 = vadd.f32 %v5846, %v6006
    %6008 = vmatmul.f32.gmra.mxu0 %v2693
    %v6009 = vpop.f32.mrf.mxu0
    %v6010 = vadd.f32 %v5849, %v6009
    %6011 = vmatmul.f32.gmra.mxu0 %v2711
    %v6012 = vpop.f32.mrf.mxu0
    %v6013 = vadd.f32 %v5852, %v6012
    %6014 = vmatmul.f32.gmra.mxu0 %v2729
    %v6015 = vpop.f32.mrf.mxu0
    %v6016 = vadd.f32 %v5855, %v6015
    %6017 = vmatmul.f32.gmra.mxu0 %v2747
    %v6018 = vpop.f32.mrf.mxu0
    %v6019 = vadd.f32 %v5858, %v6018
    %6020 = vmatmul.f32.gmra.mxu0 %v2765
    %v6021 = vpop.f32.mrf.mxu0
    %v6022 = vadd.f32 %v5861, %v6021
    %6023 = vmatmul.f32.gmra.mxu0 %v2783
    %v6024 = vpop.f32.mrf.mxu0
    %v6025 = vadd.f32 %v5864, %v6024
    %6026 = vmatmul.f32.gmra.mxu0 %v2801
    %v6027 = vpop.f32.mrf.mxu0
    %v6028 = vadd.f32 %v5867, %v6027
    %6029 = vmatmul.f32.gmra.mxu0 %v2819
    %v6030 = vpop.f32.mrf.mxu0
    %v6031 = vadd.f32 %v5870, %v6030
    %6032 = vmatmul.f32.gmra.mxu0 %v2837
    %v6033 = vpop.f32.mrf.mxu0
    %v6034 = vadd.f32 %v5873, %v6033
    %6035 = vmatmul.f32.gmra.mxu0 %v2855
    %v6036 = vpop.f32.mrf.mxu0
    %v6037 = vadd.f32 %v5876, %v6036
    %6038 = vmatmul.f32.gmra.mxu0 %v2873
    %v6039 = vpop.f32.mrf.mxu0
    %v6040 = vadd.f32 %v5879, %v6039
    %6041 = vmatmul.f32.gmra.mxu0 %v2891
    %v6042 = vpop.f32.mrf.mxu0
    %v6043 = vadd.f32 %v5882, %v6042
    %6044 = vmatmul.f32.gmra.mxu0 %v2909
    %v6045 = vpop.f32.mrf.mxu0
    %v6046 = vadd.f32 %v5885, %v6045
    %6047 = vmatmul.f32.gmra.mxu0 %v2927
    %v6048 = vpop.f32.mrf.mxu0
    %v6049 = vadd.f32 %v5888, %v6048
    %6050 = vmatmul.f32.gmra.mxu0 %v2945
    %v6051 = vpop.f32.mrf.mxu0
    %v6052 = vadd.f32 %v5891, %v6051
    %6053 = vmatmul.f32.gmra.mxu0 %v2963
    %v6054 = vpop.f32.mrf.mxu0
    %v6055 = vadd.f32 %v5894, %v6054
    %6056 = vmatmul.f32.gmra.mxu0 %v2981
    %v6057 = vpop.f32.mrf.mxu0
    %v6058 = vadd.f32 %v5897, %v6057
    %6059 = vmatmul.f32.gmra.mxu0 %v2999
    %v6060 = vpop.f32.mrf.mxu0
    %v6061 = vadd.f32 %v5900, %v6060
    %6062 = vmatmul.f32.gmra.mxu0 %v3017
    %v6063 = vpop.f32.mrf.mxu0
    %v6064 = vadd.f32 %v5903, %v6063
    %6065 = vmatmul.f32.gmra.mxu0 %v3035
    %v6066 = vpop.f32.mrf.mxu0
    %v6067 = vadd.f32 %v5906, %v6066
    %6068 = vmatmul.f32.gmra.mxu0 %v3053
    %v6069 = vpop.f32.mrf.mxu0
    %v6070 = vadd.f32 %v5909, %v6069
    %6071 = vmatmul.f32.gmra.mxu0 %v3071
    %v6072 = vpop.f32.mrf.mxu0
    %v6073 = vadd.f32 %v5912, %v6072
    %6074 = vmatmul.f32.gmra.mxu0 %v3089
    %v6075 = vpop.f32.mrf.mxu0
    %v6076 = vadd.f32 %v5915, %v6075
    %6077 = vmatmul.f32.gmra.mxu0 %v3107
    %v6078 = vpop.f32.mrf.mxu0
    %v6079 = vadd.f32 %v5918, %v6078
    %6080 = vmatmul.f32.gmra.mxu0 %v3125
    %v6081 = vpop.f32.mrf.mxu0
    %v6082 = vadd.f32 %v5921, %v6081
    %6083 = vmatmul.f32.gmra.mxu0 %v3143
    %v6084 = vpop.f32.mrf.mxu0
    %v6085 = vadd.f32 %v5924, %v6084
    %6086 = vmatmul.f32.gmra.mxu0 %v3161
    %v6087 = vpop.f32.mrf.mxu0
    %v6088 = vadd.f32 %v5927, %v6087
    %6089 = vmatmul.f32.gmra.mxu0 %v3179
    %v6090 = vpop.f32.mrf.mxu0
    %v6091 = vadd.f32 %v5930, %v6090
    %6092 = vmatmul.f32.gmra.mxu0 %v3197
    %v6093 = vpop.f32.mrf.mxu0
    %v6094 = vadd.f32 %v5933, %v6093
    %6095 = vdwg.mxu0
    %vm6096 = vcmask 400384
    %6097 = vst.msk [vmem:[%s3] sm:$0xff] %vm6096, %v5953
    %6098 = vst.msk [vmem:[%s3 + $0x8] sm:$0xff] %vm6096, %v5956
    %6099 = vst.msk [vmem:[%s3 + $0x10] sm:$0xff] %vm6096, %v5959
    %6100 = vst.msk [vmem:[%s3 + $0x18] sm:$0xff] %vm6096, %v5962
    %6101 = vst.msk [vmem:[%s3 + $0x20] sm:$0xff] %vm6096, %v5965
    %6102 = vst.msk [vmem:[%s3 + $0x28] sm:$0xff] %vm6096, %v5968
    %6103 = vst.msk [vmem:[%s3 + $0x30] sm:$0xff] %vm6096, %v5971
    %6104 = vst.msk [vmem:[%s3 + $0x38] sm:$0xff] %vm6096, %v5974
    %6105 = vst.msk [vmem:[%s3 + $0x40] sm:$0xff] %vm6096, %v5977
    %6106 = vst.msk [vmem:[%s3 + $0x48] sm:$0xff] %vm6096, %v5980
    %6107 = vst.msk [vmem:[%s3 + $0x50] sm:$0xff] %vm6096, %v5983
    %6108 = vst.msk [vmem:[%s3 + $0x58] sm:$0xff] %vm6096, %v5986
    %6109 = vst.msk [vmem:[%s3 + $0x60] sm:$0xff] %vm6096, %v5989
    %6110 = vst.msk [vmem:[%s3 + $0x68] sm:$0xff] %vm6096, %v5992
    %6111 = vst.msk [vmem:[%s3 + $0x70] sm:$0xff] %vm6096, %v5995
    %6112 = vst.msk [vmem:[%s3 + $0x78] sm:$0xff] %vm6096, %v5998
    %6113 = vst.msk [vmem:[%s3 + $0x80] sm:$0xff] %vm6096, %v6001
    %6114 = vst.msk [vmem:[%s3 + $0x88] sm:$0xff] %vm6096, %v6004
    %6115 = vst.msk [vmem:[%s3 + $0x90] sm:$0xff] %vm6096, %v6007
    %6116 = vst.msk [vmem:[%s3 + $0x98] sm:$0xff] %vm6096, %v6010
    %6117 = vst.msk [vmem:[%s3 + $0xa0] sm:$0xff] %vm6096, %v6013
    %6118 = vst.msk [vmem:[%s3 + $0xa8] sm:$0xff] %vm6096, %v6016
    %6119 = vst.msk [vmem:[%s3 + $0xb0] sm:$0xff] %vm6096, %v6019
    %6120 = vst.msk [vmem:[%s3 + $0xb8] sm:$0xff] %vm6096, %v6022
    %6121 = vst.msk [vmem:[%s3 + $0xc0] sm:$0xff] %vm6096, %v6025
    %6122 = vst.msk [vmem:[%s3 + $0xc8] sm:$0xff] %vm6096, %v6028
    %6123 = vst.msk [vmem:[%s3 + $0xd0] sm:$0xff] %vm6096, %v6031
    %6124 = vst.msk [vmem:[%s3 + $0xd8] sm:$0xff] %vm6096, %v6034
    %6125 = vst.msk [vmem:[%s3 + $0xe0] sm:$0xff] %vm6096, %v6037
    %6126 = vst.msk [vmem:[%s3 + $0xe8] sm:$0xff] %vm6096, %v6040
    %6127 = vst.msk [vmem:[%s3 + $0xf0] sm:$0xff] %vm6096, %v6043
    %6128 = vst.msk [vmem:[%s3 + $0xf8] sm:$0xff] %vm6096, %v6046
    %6129 = vst.msk [vmem:[%s3 + $0x100] sm:$0xff] %vm6096, %v6049
    %6130 = vst.msk [vmem:[%s3 + $0x108] sm:$0xff] %vm6096, %v6052
    %6131 = vst.msk [vmem:[%s3 + $0x110] sm:$0xff] %vm6096, %v6055
    %6132 = vst.msk [vmem:[%s3 + $0x118] sm:$0xff] %vm6096, %v6058
    %6133 = vst.msk [vmem:[%s3 + $0x120] sm:$0xff] %vm6096, %v6061
    %6134 = vst.msk [vmem:[%s3 + $0x128] sm:$0xff] %vm6096, %v6064
    %6135 = vst.msk [vmem:[%s3 + $0x130] sm:$0xff] %vm6096, %v6067
    %6136 = vst.msk [vmem:[%s3 + $0x138] sm:$0xff] %vm6096, %v6070
    %6137 = vst.msk [vmem:[%s3 + $0x140] sm:$0xff] %vm6096, %v6073
    %6138 = vst.msk [vmem:[%s3 + $0x148] sm:$0xff] %vm6096, %v6076
    %6139 = vst.msk [vmem:[%s3 + $0x150] sm:$0xff] %vm6096, %v6079
    %6140 = vst.msk [vmem:[%s3 + $0x158] sm:$0xff] %vm6096, %v6082
    %6141 = vst.msk [vmem:[%s3 + $0x160] sm:$0xff] %vm6096, %v6085
    %6142 = vst.msk [vmem:[%s3 + $0x168] sm:$0xff] %vm6096, %v6088
    %6143 = vst.msk [vmem:[%s3 + $0x170] sm:$0xff] %vm6096, %v6091
    %6144 = vst.msk [vmem:[%s3 + $0x178] sm:$0xff] %vm6096, %v6094
    // Predicated region
    $region18: #{tpu_custom_call.1} parent=1 // pred_check
      _
    $region19: #{tpu_custom_call.1} parent=1 // pred_check_branch
      %6146 = sbr.rel (0) target = $region21
    $region20: #{tpu_custom_call.1} parent=1 // pred_region
      _
    $region21: #{tpu_custom_call.1} parent=1 // pred_fallthru
      _
    // Predicated region
    $region22: #{tpu_custom_call.1} parent=1 // pred_check
      _
    $region23: #{tpu_custom_call.1} parent=1 // pred_check_branch
      %6148 = sbr.rel (0) target = $region25
    $region24: #{tpu_custom_call.1} parent=1 // pred_region
      _
    $region25: #{tpu_custom_call.1} parent=1 // pred_fallthru
      _
    %6149 = vsyncpa [#allocation3], 1

</llo_original>
